<compile_context>
chip_gen: v5e
topology: v5e:2x2
jax: 0.10.0
libtpu: 0.0.40
codegen_flags: <defaults>
</compile_context>

<pallas_src>
import functools

import jax
import jax.numpy as jnp
from jax.experimental import pallas as pl
from jax.experimental.pallas import tpu as pltpu


# ----------------------------------------------------------------------------
# Kernel 1: per-tile CE reductions + (single-stream) Lovasz errors / fg masks
# ----------------------------------------------------------------------------
def _ce_err_kernel(logit_ref, tgt_ref, nerr_ref, fg_ref, wnll_ref, wpix_ref, gts_ref):
    t = pl.program_id(1)

    # wnll/wpix/gts output blocks are resident across the P-tile axis -> accumulators.
    @pl.when(t == 0)
    def _():
        wnll_ref[...] = jnp.zeros_like(wnll_ref)
        wpix_ref[...] = jnp.zeros_like(wpix_ref)
        gts_ref[...] = jnp.zeros_like(gts_ref)

    x = logit_ref[0]                                   # (2, Pt) f32 logits
    y = tgt_ref[0]                                     # (1, Pt) int32 labels

    # Binary (C == 2) softmax via the logit margin: p1 = sigmoid(x1 - x0), p0 = 1 - p1.
    d = x[1:2, :] - x[0:1, :]                          # (1, Pt)
    fg1 = (y == 1).astype(jnp.float32)                 # class-1 one-hot
    s = jnp.where(y == 1, -d, d)                       # "wrongness" logit of the true class

    z = jnp.exp(-jnp.abs(s))                           # EUP
    inv = 1.0 / (1.0 + z)
    # sigmoid(s) == |onehot_c - p_c| for BOTH classes (identical when C == 2).
    err = jnp.where(s >= 0.0, inv, z * inv)
    # softplus(s) == -log p_{y}  (stable form), i.e. the per-pixel NLL.
    nll = jnp.maximum(s, 0.0) + jnp.log(1.0 + z)

    nerr_ref[0] = -err                                 # negated -> ascending sort == desc. error
    fg_ref[0] = fg1.astype(jnp.bfloat16)               # exact in bf16, halves HBM traffic

    # class-weighted NLL (PyTorch CrossEntropyLoss(weight=[0.5, 1.0]), reduction='mean'):
    wpix = jnp.where(y == 0, jnp.float32(0.5), jnp.float32(1.0))
    wnll_ref[...] += jnp.sum(wpix * nll)               # scalar accumulate
    wpix_ref[...] += jnp.sum(wpix)
    gts_ref[...] += jnp.sum(fg1)                       # per-image class-1 fg count


def _pick_p_tile(P):
    for cand in (32768, 16384, 8192, 4096, 2048, 1024, 512, 256, 128):
        if P % cand == 0:
            return cand
    return P  # full-extent block (allowed when not a multiple of 128)


def ce_and_errors(logits_ncp, targets_n1p, p_tile):
    N, C, P = logits_ncp.shape
    grid_spec = pltpu.PrefetchScalarGridSpec(
        num_scalar_prefetch=0,
        grid=(N, P // p_tile),
        in_specs=[
            pl.BlockSpec((1, C, p_tile), lambda i, t: (i, 0, t)),
            pl.BlockSpec((1, 1, p_tile), lambda i, t: (i, 0, t)),
        ],
        out_specs=[
            pl.BlockSpec((1, 1, p_tile), lambda i, t: (i, 0, t)),
            pl.BlockSpec((1, 1, p_tile), lambda i, t: (i, 0, t)),
            pl.BlockSpec((1, 1, 1), lambda i, t: (i, 0, 0)),
            pl.BlockSpec((1, 1, 1), lambda i, t: (i, 0, 0)),
            pl.BlockSpec((1, 1, 1), lambda i, t: (i, 0, 0)),
        ],
    )
    out_shape = (
        jax.ShapeDtypeStruct((N, 1, P), jnp.float32),    # negated Lovasz errors (shared by C=2)
        jax.ShapeDtypeStruct((N, 1, P), jnp.bfloat16),   # class-1 fg mask
        jax.ShapeDtypeStruct((N, 1, 1), jnp.float32),    # sum_i w[y_i] * nll_i  (per image)
        jax.ShapeDtypeStruct((N, 1, 1), jnp.float32),    # sum_i w[y_i]          (per image)
        jax.ShapeDtypeStruct((N, 1, 1), jnp.float32),    # per-image class-1 fg count = gts1
    )
    # TODO(synk): if N == 1 the "parallel" axis collapses to 1 block (half a v7x chip idle);
    # splitting the P axis into per-core halves with separate accumulators would fix that.
    return pl.pallas_call(
        _ce_err_kernel,
        out_shape=out_shape,
        grid_spec=grid_spec,
        compiler_params=pltpu.CompilerParams(
            dimension_semantics=("parallel", "arbitrary")),
    )(logits_ncp, targets_n1p)


# ----------------------------------------------------------------------------
# Kernel 2: chunked Lovasz per-row loss for BOTH classes from the single sorted
#           (negated error, class-1 fg) stream. Rows are pre-sorted ascending by
#           negated error == descending by error.
# ----------------------------------------------------------------------------
def _lovasz_rows_kernel(gts1_ref, nerr_ref, fg_ref, loss0_ref, loss1_ref,
                        carry_ref, cum_ref, *, p_real):
    c = pl.program_id(1)
    K = nerr_ref.shape[-1]

    @pl.when(c == 0)
    def _():
        loss0_ref[...] = jnp.zeros_like(loss0_ref)    # resident accumulators across chunks
        loss1_ref[...] = jnp.zeros_like(loss1_ref)
        carry_ref[...] = jnp.zeros_like(carry_ref)    # running cumsum carry
        # K x K upper-triangular cumsum matrix built once per row-block in VMEM scratch
        # (no HBM operand, no pipeline double-buffer).
        r = jax.lax.broadcasted_iota(jnp.int32, (K, K), 0)
        q = jax.lax.broadcasted_iota(jnp.int32, (K, K), 1)
        cum_ref[...] = (r <= q).astype(jnp.bfloat16)

    f16 = fg_ref[...]                                 # (Gt, K) bf16 class-1 fg, sorted
    f1 = f16.astype(jnp.float32)
    e = -nerr_ref[...]                                # un-negate in VMEM (free VPU op)
    gts1 = gts1_ref[...]                              # (Gt, 1) class-1 pixel count
    gts0 = p_real - gts1                              # class-0 pixel count (P is static)

    # cumsum(fg1_sorted) within this lane chunk via (Gt,K)x(K,K) bf16 MXU matmul + carry.
    cs1 = jnp.dot(f16, cum_ref[...], preferred_element_type=jnp.float32) + carry_ref[...]

    lane = jax.lax.broadcasted_iota(jnp.int32, e.shape, 1).astype(jnp.float32)
    count = lane + (c * K).astype(jnp.float32) + 1.0  # global 1-based position
    cnt_p = count - 1.0
    is_first = count == 1.0

    cs1_p = cs1 - f1                                  # cumsum at previous position
    cs0 = count - cs1                                 # class-0 cumsum (fg0 = 1 - fg1)
    cs0_p = cnt_p - cs1_p

    # lovasz_grad adjacent difference: grad[j] = jac[j] - jac[j-1], grad[0] = jac[0];
    # jac[j-1] is recomputed analytically, so no cross-chunk jaccard carry is needed.
    jac1 = 1.0 - (gts1 - cs1) / (gts1 + count - cs1)
    den1_p = jnp.where(is_first, 1.0, gts1 + cnt_p - cs1_p)
    jac1_p = jnp.where(is_first, 0.0, 1.0 - (gts1 - cs1_p) / den1_p)

    jac0 = 1.0 - (gts0 - cs0) / (gts0 + cs1)          # union0 = gts0 + count - cs0 = gts0 + cs1
    den0_p = jnp.where(is_first, 1.0, gts0 + cs1_p)
    jac0_p = jnp.where(is_first, 0.0, 1.0 - (gts0 - cs0_p) / den0_p)

    loss1_ref[...] += jnp.sum(e * (jac1 - jac1_p), axis=-1, keepdims=True)   # (Gt, 1)
    loss0_ref[...] += jnp.sum(e * (jac0 - jac0_p), axis=-1, keepdims=True)
    carry_ref[...] = cs1[:, K - 1:K]


def lovasz_row_losses(gts1_rows, nerr_sorted, fg_sorted, p_real, row_tile, k_chunk):
    Gp, Pp = nerr_sorted.shape
    kernel = functools.partial(_lovasz_rows_kernel, p_real=p_real)
    grid_spec = pltpu.PrefetchScalarGridSpec(
        num_scalar_prefetch=0,
        grid=(Gp // row_tile, Pp // k_chunk),
        in_specs=[
            pl.BlockSpec((row_tile, 1), lambda i, c: (i, 0)),
            pl.BlockSpec((row_tile, k_chunk), lambda i, c: (i, c)),
            pl.BlockSpec((row_tile, k_chunk), lambda i, c: (i, c)),
        ],
        out_specs=[
            pl.BlockSpec((row_tile, 1), lambda i, c: (i, 0)),
            pl.BlockSpec((row_tile, 1), lambda i, c: (i, 0)),
        ],
        scratch_shapes=[
            pltpu.VMEM((row_tile, 1), jnp.float32),        # running cumsum carry
            pltpu.VMEM((k_chunk, k_chunk), jnp.bfloat16),  # triangular cumsum matrix
        ],
    )
    return pl.pallas_call(
        kernel,
        out_shape=(jax.ShapeDtypeStruct((Gp, 1), jnp.float32),   # class-0 per-image loss
                   jax.ShapeDtypeStruct((Gp, 1), jnp.float32)),  # class-1 per-image loss
        grid_spec=grid_spec,
        compiler_params=pltpu.CompilerParams(
            dimension_semantics=("parallel", "arbitrary")),
    )(gts1_rows, nerr_sorted, fg_sorted)


# ----------------------------------------------------------------------------
# Full forward:  0.8 * CE(weight=[0.5, 1.0]) + 0.2 * Lovasz(multiclass, per_image)
# ----------------------------------------------------------------------------
_K_CHUNK = 512   # cum scratch = 512 KiB bf16; err/fg blocks stay tiny -> fits every generation


@jax.jit
def lovasz_bce_loss2(inputs_nchw, targets_nhw):
    N, C, H, W = inputs_nchw.shape
    assert C == 2, "LovaszBCELoss2 is a 2-class loss (CE weight has 2 entries)"
    P = H * W
    logits = inputs_nchw.reshape(N, C, P).astype(jnp.float32)
    targets = targets_nhw.reshape(N, 1, P).astype(jnp.int32)

    p_tile = _pick_p_tile(P)
    nerr, fg, wnll_sum, wpix_sum, gts1 = ce_and_errors(logits, targets, p_tile)
    ce = jnp.sum(wnll_sum) / jnp.sum(wpix_sum)

    nerr_flat = nerr.reshape(N, P)
    fg_flat = fg.reshape(N, P)
    gts1_rows = gts1.reshape(N, 1)

    # TODO(synk): no TPU Pallas sort primitive — single ascending key/value sort in JAX.
    # Keys are already negated by kernel 1 (ascending == descending error) and C == 2 means
    # both classes share the same error stream, so exactly ONE (N, P) sort is needed.
    nerr_sorted, fg_sorted = jax.lax.sort((nerr_flat, fg_flat), dimension=-1, num_keys=1)

    # Pad rows to a multiple of 16 (so the row axis keeps 2 "parallel" blocks for v7x
    # megacore) and lanes to the chunk size. Padded pixels/rows have err = 0 and sit at the
    # end of the sorted order, so they contribute exactly 0 to both class losses.
    Gpad = max(16, ((N + 15) // 16) * 16)
    Ppad = ((P + _K_CHUNK - 1) // _K_CHUNK) * _K_CHUNK
    if Gpad != N or Ppad != P:
        nerr_sorted = jnp.pad(nerr_sorted, ((0, Gpad - N), (0, Ppad - P)))
        fg_sorted = jnp.pad(fg_sorted, ((0, Gpad - N), (0, Ppad - P)))
        gts1_rows = jnp.pad(gts1_rows, ((0, Gpad - N), (0, 0)))

    row_tile = Gpad // 2
    loss0, loss1 = lovasz_row_losses(gts1_rows, nerr_sorted, fg_sorted,
                                     float(P), row_tile, _K_CHUNK)

    l0 = loss0[:N, 0]
    l1 = loss1[:N, 0]
    g1 = gts1.reshape(N)
    present0 = (g1 < P).astype(jnp.float32)            # classes='present'
    present1 = (g1 > 0).astype(jnp.float32)
    per_image = (l0 * present0 + l1 * present1) / jnp.maximum(present0 + present1, 1.0)
    lovasz = jnp.mean(per_image)

    return 0.8 * ce + 0.2 * lovasz


# ----------------------------------------------------------------------------
# Pure-JAX reference (mirrors torch CrossEntropyLoss + smp LovaszLoss semantics)
# ----------------------------------------------------------------------------
def reference_loss(inputs_nchw, targets_nhw):
    N, C, H, W = inputs_nchw.shape
    P = H * W
    x = inputs_nchw.reshape(N, C, P).astype(jnp.float32)
    y = targets_nhw.reshape(N, P).astype(jnp.int32)
    logp = jax.nn.log_softmax(x, axis=1)
    probs = jnp.exp(logp)
    onehot = jax.nn.one_hot(y, C, axis=1, dtype=jnp.float32)       # (N, C, P)
    cw = jnp.array([0.5, 1.0], jnp.float32)
    wpix = cw[y]
    nll = -jnp.sum(onehot * logp, axis=1)
    ce = jnp.sum(wpix * nll) / jnp.sum(wpix)

    errors = jnp.abs(onehot - probs)
    per_image = []
    for i in range(N):
        class_losses = []
        for c in range(C):
            f = onehot[i, c]
            e = errors[i, c]
            if float(jnp.sum(f)) == 0.0:
                continue  # classes='present'
            order = jnp.argsort(-e)
            es = e[order]
            fs = f[order]
            gts = jnp.sum(fs)
            inter = gts - jnp.cumsum(fs)
            union = gts + jnp.cumsum(1.0 - fs)
            jac = 1.0 - inter / union
            grad = jnp.concatenate([jac[:1], jac[1:] - jac[:-1]])
            class_losses.append(jnp.dot(es, grad))
        per_image.append(sum(class_losses) / len(class_losses))
    lovasz = sum(per_image) / N
    return 0.8 * ce + 0.2 * lovasz


if __name__ == "__main__":
    key = jax.random.PRNGKey(0)
    k1, k2 = jax.random.split(key)
    # Small but non-trivial: P = 48*48 = 2304 exercises both the P-tiling in kernel 1
    # (p_tile=256 -> 9 tiles) and the chunked cumsum carry + padding in kernel 2
    # (Ppad=2560 -> 5 chunks of 512, 14 padded rows).
    N, C, H, W = 2, 2, 48, 48
    inputs = jax.random.normal(k1, (N, C, H, W), dtype=jnp.float32)
    targets = jax.random.randint(k2, (N, H, W), 0, C, dtype=jnp.int32)

    loss = jax.block_until_ready(lovasz_bce_loss2(inputs, targets))
    ref = jax.block_until_ready(reference_loss(inputs, targets))

    assert jnp.isfinite(loss), "non-finite loss"
    assert abs(float(loss) - float(ref)) < 1e-4, (float(loss), float(ref))
    print("KERNEL_OK")
</pallas_src>

<mosaic_0001>
module attributes {stable_mosaic.version = 11 : i64} {
  func.func @_ce_err_kernel(%arg0: i32, %arg1: i32, %arg2: memref<1x2x256xf32, #tpu.memory_space<vmem>>, %arg3: memref<1x1x256xi32, #tpu.memory_space<vmem>>, %arg4: memref<1x1x256xf32, #tpu.memory_space<vmem>>, %arg5: memref<1x1x256xbf16, #tpu.memory_space<vmem>>, %arg6: memref<1x1x1xf32, #tpu.memory_space<vmem>>, %arg7: memref<1x1x1xf32, #tpu.memory_space<vmem>>, %arg8: memref<1x1x1xf32, #tpu.memory_space<vmem>>) attributes {dimension_semantics = [#tpu.dimension_semantics<parallel>, #tpu.dimension_semantics<arbitrary>], iteration_bounds = array<i64: 2, 9>, scalar_prefetch = 0 : i64, scratch_operands = 0 : i64, tpu.core_type = #tpu.core_type<tc>, window_params = [{transform_indices = @transform_0, window_bounds = array<i64: 1, 2, 256>}, {transform_indices = @transform_1, window_bounds = array<i64: 1, 1, 256>}, {transform_indices = @transform_2, window_bounds = array<i64: 1, 1, 256>}, {transform_indices = @transform_3, window_bounds = array<i64: 1, 1, 256>}, {transform_indices = @transform_4, window_bounds = array<i64: 1, 1, 1>}, {transform_indices = @transform_5, window_bounds = array<i64: 1, 1, 1>}, {transform_indices = @transform_6, window_bounds = array<i64: 1, 1, 1>}]} {
    %c0_i32 = arith.constant 0 : i32
    %0 = arith.cmpi eq, %arg1, %c0_i32 : i32
    %1 = arith.extui %0 : i1 to i32
    %c0_i32_0 = arith.constant 0 : i32
    %2 = arith.cmpi ne, %1, %c0_i32_0 : i32
    scf.if %2 {
      %cst_44 = arith.constant 0.000000e+00 : f32
      %76 = vector.broadcast %cst_44 : f32 to vector<1x1x1xf32>
      %c0_45 = arith.constant 0 : index
      %c0_46 = arith.constant 0 : index
      %c0_47 = arith.constant 0 : index
      %77 = vector.load %arg6[%c0_45, %c0_46, %c0_47] : memref<1x1x1xf32, #tpu.memory_space<vmem>>, vector<1x1x1xf32>
      tpu.vector_store %arg6[%c0_45, %c0_46, %c0_47], %76 {strides = array<i32>} : memref<1x1x1xf32, #tpu.memory_space<vmem>>, vector<1x1x1xf32>,
      %cst_48 = arith.constant 0.000000e+00 : f32
      %78 = vector.broadcast %cst_48 : f32 to vector<1x1x1xf32>
      %c0_49 = arith.constant 0 : index
      %c0_50 = arith.constant 0 : index
      %c0_51 = arith.constant 0 : index
      %79 = vector.load %arg7[%c0_49, %c0_50, %c0_51] : memref<1x1x1xf32, #tpu.memory_space<vmem>>, vector<1x1x1xf32>
      tpu.vector_store %arg7[%c0_49, %c0_50, %c0_51], %78 {strides = array<i32>} : memref<1x1x1xf32, #tpu.memory_space<vmem>>, vector<1x1x1xf32>,
      %cst_52 = arith.constant 0.000000e+00 : f32
      %80 = vector.broadcast %cst_52 : f32 to vector<1x1x1xf32>
      %c0_53 = arith.constant 0 : index
      %c0_54 = arith.constant 0 : index
      %c0_55 = arith.constant 0 : index
      %81 = vector.load %arg8[%c0_53, %c0_54, %c0_55] : memref<1x1x1xf32, #tpu.memory_space<vmem>>, vector<1x1x1xf32>
      tpu.vector_store %arg8[%c0_53, %c0_54, %c0_55], %80 {strides = array<i32>} : memref<1x1x1xf32, #tpu.memory_space<vmem>>, vector<1x1x1xf32>,
    } else {
    }
    %c0 = arith.constant 0 : index
    %c0_1 = arith.constant 0 : index
    %c0_2 = arith.constant 0 : index
    %3 = vector.load %arg2[%c0, %c0_1, %c0_2] : memref<1x2x256xf32, #tpu.memory_space<vmem>>, vector<1x2x256xf32>
    %4 = vector.shape_cast %3 : vector<1x2x256xf32> to vector<2x256xf32>
    %c0_3 = arith.constant 0 : index
    %c0_4 = arith.constant 0 : index
    %c0_5 = arith.constant 0 : index
    %5 = vector.load %arg3[%c0_3, %c0_4, %c0_5] : memref<1x1x256xi32, #tpu.memory_space<vmem>>, vector<1x1x256xi32>
    %6 = vector.shape_cast %5 : vector<1x1x256xi32> to vector<1x256xi32>
    %7 = vector.extract_strided_slice %4 {offsets = [1, 0], sizes = [1, 256], strides = [1, 1]} : vector<2x256xf32> to vector<1x256xf32>
    %8 = vector.extract_strided_slice %4 {offsets = [0, 0], sizes = [1, 256], strides = [1, 1]} : vector<2x256xf32> to vector<1x256xf32>
    %9 = arith.subf %7, %8 : vector<1x256xf32>
    %c1_i32 = arith.constant 1 : i32
    %10 = vector.broadcast %c1_i32 : i32 to vector<1x256xi32>
    %11 = arith.cmpi eq, %6, %10 : vector<1x256xi32>
    %12 = arith.extui %11 : vector<1x256xi1> to vector<1x256xi32>
    %13 = arith.sitofp %12 : vector<1x256xi32> to vector<1x256xf32>
    %c1_i32_6 = arith.constant 1 : i32
    %14 = vector.broadcast %c1_i32_6 : i32 to vector<1x256xi32>
    %15 = arith.cmpi eq, %6, %14 : vector<1x256xi32>
    %cst = arith.constant 0.000000e+00 : f32
    %16 = vector.broadcast %cst : f32 to vector<1x256xf32>
    %17 = arith.subf %16, %9 : vector<1x256xf32>
    %18 = arith.select %15, %17, %9 : vector<1x256xi1>, vector<1x256xf32>
    %19 = math.absf %18 : vector<1x256xf32>
    %cst_7 = arith.constant 0.000000e+00 : f32
    %20 = vector.broadcast %cst_7 : f32 to vector<1x256xf32>
    %21 = arith.subf %20, %19 : vector<1x256xf32>
    %22 = math.exp %21 : vector<1x256xf32>
    %cst_8 = arith.constant 1.000000e+00 : f32
    %23 = vector.broadcast %cst_8 : f32 to vector<1x256xf32>
    %24 = arith.addf %23, %22 : vector<1x256xf32>
    %cst_9 = arith.constant 1.000000e+00 : f32
    %25 = vector.broadcast %cst_9 : f32 to vector<1x256xf32>
    %26 = arith.divf %25, %24 : vector<1x256xf32>
    %cst_10 = arith.constant 0.000000e+00 : f32
    %27 = vector.broadcast %cst_10 : f32 to vector<1x256xf32>
    %28 = arith.cmpf oge, %18, %27 : vector<1x256xf32>
    %29 = arith.mulf %22, %26 : vector<1x256xf32>
    %30 = arith.select %28, %26, %29 : vector<1x256xi1>, vector<1x256xf32>
    %cst_11 = arith.constant 0.000000e+00 : f32
    %31 = vector.broadcast %cst_11 : f32 to vector<1x256xf32>
    %32 = arith.maximumf %18, %31 : vector<1x256xf32>
    %cst_12 = arith.constant 1.000000e+00 : f32
    %33 = vector.broadcast %cst_12 : f32 to vector<1x256xf32>
    %34 = arith.addf %33, %22 : vector<1x256xf32>
    %35 = math.log %34 : vector<1x256xf32>
    %36 = arith.addf %32, %35 : vector<1x256xf32>
    %cst_13 = arith.constant 0.000000e+00 : f32
    %37 = vector.broadcast %cst_13 : f32 to vector<1x256xf32>
    %38 = arith.subf %37, %30 : vector<1x256xf32>
    %c0_14 = arith.constant 0 : index
    %c0_15 = arith.constant 0 : index
    %c0_16 = arith.constant 0 : index
    %39 = vector.load %arg4[%c0_14, %c0_15, %c0_16] : memref<1x1x256xf32, #tpu.memory_space<vmem>>, vector<1x1x256xf32>
    %40 = vector.shape_cast %39 : vector<1x1x256xf32> to vector<1x256xf32>
    %41 = vector.shape_cast %38 : vector<1x256xf32> to vector<1x1x256xf32>
    tpu.vector_store %arg4[%c0_14, %c0_15, %c0_16], %41 {strides = array<i32>} : memref<1x1x256xf32, #tpu.memory_space<vmem>>, vector<1x1x256xf32>,
    %42 = arith.truncf %13 : vector<1x256xf32> to vector<1x256xbf16>
    %c0_17 = arith.constant 0 : index
    %c0_18 = arith.constant 0 : index
    %c0_19 = arith.constant 0 : index
    %43 = vector.load %arg5[%c0_17, %c0_18, %c0_19] : memref<1x1x256xbf16, #tpu.memory_space<vmem>>, vector<1x1x256xbf16>
    %44 = vector.shape_cast %43 : vector<1x1x256xbf16> to vector<1x256xbf16>
    %45 = vector.shape_cast %42 : vector<1x256xbf16> to vector<1x1x256xbf16>
    tpu.vector_store %arg5[%c0_17, %c0_18, %c0_19], %45 {strides = array<i32>} : memref<1x1x256xbf16, #tpu.memory_space<vmem>>, vector<1x1x256xbf16>,
    %c0_i32_20 = arith.constant 0 : i32
    %46 = vector.broadcast %c0_i32_20 : i32 to vector<1x256xi32>
    %47 = arith.cmpi eq, %6, %46 : vector<1x256xi32>
    %cst_21 = arith.constant 5.000000e-01 : f32
    %cst_22 = arith.constant 1.000000e+00 : f32
    %48 = vector.broadcast %cst_21 : f32 to vector<1x256xf32>
    %49 = vector.broadcast %cst_22 : f32 to vector<1x256xf32>
    %50 = arith.select %47, %48, %49 : vector<1x256xi1>, vector<1x256xf32>
    %c0_23 = arith.constant 0 : index
    %c0_24 = arith.constant 0 : index
    %c0_25 = arith.constant 0 : index
    %51 = vector.load %arg6[%c0_23, %c0_24, %c0_25] : memref<1x1x1xf32, #tpu.memory_space<vmem>>, vector<1x1x1xf32>
    %52 = arith.mulf %50, %36 : vector<1x256xf32>
    %53 = vector.shape_cast %52 : vector<1x256xf32> to vector<1x1x256xf32>
    %cst_26 = arith.constant dense<0.000000e+00> : vector<1xf32>
    %54 = vector.multi_reduction <add>, %53, %cst_26 [1, 2] : vector<1x1x256xf32> to vector<1xf32>
    %55 = vector.shape_cast %54 : vector<1xf32> to vector<1x1x1xf32>
    %56 = vector.extract %55[0, 0, 0] : f32 from vector<1x1x1xf32>
    %57 = vector.broadcast %56 : f32 to vector<1x1x1xf32>
    %58 = arith.addf %51, %57 : vector<1x1x1xf32>
    %c0_27 = arith.constant 0 : index
    %c0_28 = arith.constant 0 : index
    %c0_29 = arith.constant 0 : index
    %59 = vector.load %arg6[%c0_27, %c0_28, %c0_29] : memref<1x1x1xf32, #tpu.memory_space<vmem>>, vector<1x1x1xf32>
    tpu.vector_store %arg6[%c0_27, %c0_28, %c0_29], %58 {strides = array<i32>} : memref<1x1x1xf32, #tpu.memory_space<vmem>>, vector<1x1x1xf32>,
    %c0_30 = arith.constant 0 : index
    %c0_31 = arith.constant 0 : index
    %c0_32 = arith.constant 0 : index
    %60 = vector.load %arg7[%c0_30, %c0_31, %c0_32] : memref<1x1x1xf32, #tpu.memory_space<vmem>>, vector<1x1x1xf32>
    %61 = vector.shape_cast %50 : vector<1x256xf32> to vector<1x1x256xf32>
    %cst_33 = arith.constant dense<0.000000e+00> : vector<1xf32>
    %62 = vector.multi_reduction <add>, %61, %cst_33 [1, 2] : vector<1x1x256xf32> to vector<1xf32>
    %63 = vector.shape_cast %62 : vector<1xf32> to vector<1x1x1xf32>
    %64 = vector.extract %63[0, 0, 0] : f32 from vector<1x1x1xf32>
    %65 = vector.broadcast %64 : f32 to vector<1x1x1xf32>
    %66 = arith.addf %60, %65 : vector<1x1x1xf32>
    %c0_34 = arith.constant 0 : index
    %c0_35 = arith.constant 0 : index
    %c0_36 = arith.constant 0 : index
    %67 = vector.load %arg7[%c0_34, %c0_35, %c0_36] : memref<1x1x1xf32, #tpu.memory_space<vmem>>, vector<1x1x1xf32>
    tpu.vector_store %arg7[%c0_34, %c0_35, %c0_36], %66 {strides = array<i32>} : memref<1x1x1xf32, #tpu.memory_space<vmem>>, vector<1x1x1xf32>,
    %c0_37 = arith.constant 0 : index
    %c0_38 = arith.constant 0 : index
    %c0_39 = arith.constant 0 : index
    %68 = vector.load %arg8[%c0_37, %c0_38, %c0_39] : memref<1x1x1xf32, #tpu.memory_space<vmem>>, vector<1x1x1xf32>
    %69 = vector.shape_cast %13 : vector<1x256xf32> to vector<1x1x256xf32>
    %cst_40 = arith.constant dense<0.000000e+00> : vector<1xf32>
    %70 = vector.multi_reduction <add>, %69, %cst_40 [1, 2] : vector<1x1x256xf32> to vector<1xf32>
    %71 = vector.shape_cast %70 : vector<1xf32> to vector<1x1x1xf32>
    %72 = vector.extract %71[0, 0, 0] : f32 from vector<1x1x1xf32>
    %73 = vector.broadcast %72 : f32 to vector<1x1x1xf32>
    %74 = arith.addf %68, %73 : vector<1x1x1xf32>
    %c0_41 = arith.constant 0 : index
    %c0_42 = arith.constant 0 : index
    %c0_43 = arith.constant 0 : index
    %75 = vector.load %arg8[%c0_41, %c0_42, %c0_43] : memref<1x1x1xf32, #tpu.memory_space<vmem>>, vector<1x1x1xf32>
    tpu.vector_store %arg8[%c0_41, %c0_42, %c0_43], %74 {strides = array<i32>} : memref<1x1x1xf32, #tpu.memory_space<vmem>>, vector<1x1x1xf32>,
    return
  }
  func.func @transform_0(%arg0: i32, %arg1: i32) -> (i32, i32, i32) {
    %c0_i32 = arith.constant 0 : i32
    %c0_i32_0 = arith.constant 0 : i32
    return %arg0, %c0_i32, %arg1 : i32, i32, i32
  }
  func.func @transform_1(%arg0: i32, %arg1: i32) -> (i32, i32, i32) {
    %c0_i32 = arith.constant 0 : i32
    %c0_i32_0 = arith.constant 0 : i32
    return %arg0, %c0_i32, %arg1 : i32, i32, i32
  }
  func.func @transform_2(%arg0: i32, %arg1: i32) -> (i32, i32, i32) {
    %c0_i32 = arith.constant 0 : i32
    %c0_i32_0 = arith.constant 0 : i32
    return %arg0, %c0_i32, %arg1 : i32, i32, i32
  }
  func.func @transform_3(%arg0: i32, %arg1: i32) -> (i32, i32, i32) {
    %c0_i32 = arith.constant 0 : i32
    %c0_i32_0 = arith.constant 0 : i32
    return %arg0, %c0_i32, %arg1 : i32, i32, i32
  }
  func.func @transform_4(%arg0: i32, %arg1: i32) -> (i32, i32, i32) {
    %c0_i32 = arith.constant 0 : i32
    %c0_i32_0 = arith.constant 0 : i32
    %c0_i32_1 = arith.constant 0 : i32
    return %arg0, %c0_i32, %c0_i32_0 : i32, i32, i32
  }
  func.func @transform_5(%arg0: i32, %arg1: i32) -> (i32, i32, i32) {
    %c0_i32 = arith.constant 0 : i32
    %c0_i32_0 = arith.constant 0 : i32
    %c0_i32_1 = arith.constant 0 : i32
    return %arg0, %c0_i32, %c0_i32_0 : i32, i32, i32
  }
  func.func @transform_6(%arg0: i32, %arg1: i32) -> (i32, i32, i32) {
    %c0_i32 = arith.constant 0 : i32
    %c0_i32_0 = arith.constant 0 : i32
    %c0_i32_1 = arith.constant 0 : i32
    return %arg0, %c0_i32, %c0_i32_0 : i32, i32, i32
  }
}

module attributes {stable_mosaic.version = 11 : i64} {
  func.func @_lovasz_rows_kernel(%arg0: i32, %arg1: i32, %arg2: memref<8x1xf32, #tpu.memory_space<vmem>>, %arg3: memref<8x512xf32, #tpu.memory_space<vmem>>, %arg4: memref<8x512xbf16, #tpu.memory_space<vmem>>, %arg5: memref<8x1xf32, #tpu.memory_space<vmem>>, %arg6: memref<8x1xf32, #tpu.memory_space<vmem>>, %arg7: memref<8x1xf32, #tpu.memory_space<vmem>>, %arg8: memref<512x512xbf16, #tpu.memory_space<vmem>>) attributes {dimension_semantics = [#tpu.dimension_semantics<parallel>, #tpu.dimension_semantics<arbitrary>], iteration_bounds = array<i64: 2, 5>, scalar_prefetch = 0 : i64, scratch_operands = 2 : i64, tpu.core_type = #tpu.core_type<tc>, window_params = [{transform_indices = @transform_0, window_bounds = array<i64: 8, 1>}, {transform_indices = @transform_1, window_bounds = array<i64: 8, 512>}, {transform_indices = @transform_2, window_bounds = array<i64: 8, 512>}, {transform_indices = @transform_3, window_bounds = array<i64: 8, 1>}, {transform_indices = @transform_4, window_bounds = array<i64: 8, 1>}]} {
    %c0_i32 = arith.constant 0 : i32
    %0 = arith.cmpi eq, %arg1, %c0_i32 : i32
    %1 = arith.extui %0 : i1 to i32
    %c0_i32_0 = arith.constant 0 : i32
    %2 = arith.cmpi ne, %1, %c0_i32_0 : i32
    scf.if %2 {
      %cst_35 = arith.constant 0.000000e+00 : f32
      %85 = vector.broadcast %cst_35 : f32 to vector<8x1xf32>
      %c0_36 = arith.constant 0 : index
      %c0_37 = arith.constant 0 : index
      %86 = vector.load %arg5[%c0_36, %c0_37] : memref<8x1xf32, #tpu.memory_space<vmem>>, vector<8x1xf32>
      tpu.vector_store %arg5[%c0_36, %c0_37], %85 {strides = array<i32>} : memref<8x1xf32, #tpu.memory_space<vmem>>, vector<8x1xf32>,
      %cst_38 = arith.constant 0.000000e+00 : f32
      %87 = vector.broadcast %cst_38 : f32 to vector<8x1xf32>
      %c0_39 = arith.constant 0 : index
      %c0_40 = arith.constant 0 : index
      %88 = vector.load %arg6[%c0_39, %c0_40] : memref<8x1xf32, #tpu.memory_space<vmem>>, vector<8x1xf32>
      tpu.vector_store %arg6[%c0_39, %c0_40], %87 {strides = array<i32>} : memref<8x1xf32, #tpu.memory_space<vmem>>, vector<8x1xf32>,
      %cst_41 = arith.constant 0.000000e+00 : f32
      %89 = vector.broadcast %cst_41 : f32 to vector<8x1xf32>
      %c0_42 = arith.constant 0 : index
      %c0_43 = arith.constant 0 : index
      %90 = vector.load %arg7[%c0_42, %c0_43] : memref<8x1xf32, #tpu.memory_space<vmem>>, vector<8x1xf32>
      tpu.vector_store %arg7[%c0_42, %c0_43], %89 {strides = array<i32>} : memref<8x1xf32, #tpu.memory_space<vmem>>, vector<8x1xf32>,
      %91 = tpu.iota {dimensions = array<i32: 0>} : vector<512x512xi32>
      %92 = tpu.iota {dimensions = array<i32: 1>} : vector<512x512xi32>
      %93 = arith.cmpi sle, %91, %92 : vector<512x512xi32>
      %94 = arith.extui %93 : vector<512x512xi1> to vector<512x512xi32>
      %95 = arith.sitofp %94 : vector<512x512xi32> to vector<512x512xf32>
      %96 = arith.truncf %95 : vector<512x512xf32> to vector<512x512xbf16>
      %c0_44 = arith.constant 0 : index
      %c0_45 = arith.constant 0 : index
      %97 = vector.load %arg8[%c0_44, %c0_45] : memref<512x512xbf16, #tpu.memory_space<vmem>>, vector<512x512xbf16>
      tpu.vector_store %arg8[%c0_44, %c0_45], %96 {strides = array<i32>} : memref<512x512xbf16, #tpu.memory_space<vmem>>, vector<512x512xbf16>,
    } else {
    }
    %c0 = arith.constant 0 : index
    %c0_1 = arith.constant 0 : index
    %3 = vector.load %arg4[%c0, %c0_1] : memref<8x512xbf16, #tpu.memory_space<vmem>>, vector<8x512xbf16>
    %4 = arith.extf %3 : vector<8x512xbf16> to vector<8x512xf32>
    %c0_2 = arith.constant 0 : index
    %c0_3 = arith.constant 0 : index
    %5 = vector.load %arg3[%c0_2, %c0_3] : memref<8x512xf32, #tpu.memory_space<vmem>>, vector<8x512xf32>
    %cst = arith.constant 0.000000e+00 : f32
    %6 = vector.broadcast %cst : f32 to vector<8x512xf32>
    %7 = arith.subf %6, %5 : vector<8x512xf32>
    %c0_4 = arith.constant 0 : index
    %c0_5 = arith.constant 0 : index
    %8 = vector.load %arg2[%c0_4, %c0_5] : memref<8x1xf32, #tpu.memory_space<vmem>>, vector<8x1xf32>
    %cst_6 = arith.constant 2.304000e+03 : f32
    %9 = vector.broadcast %cst_6 : f32 to vector<8x1xf32>
    %10 = arith.subf %9, %8 : vector<8x1xf32>
    %c0_7 = arith.constant 0 : index
    %c0_8 = arith.constant 0 : index
    %11 = vector.load %arg8[%c0_7, %c0_8] : memref<512x512xbf16, #tpu.memory_space<vmem>>, vector<512x512xbf16>
    %cst_9 = arith.constant dense<0.000000e+00> : vector<8x512xf32>
    %12 = tpu.matmul %3, %11, %cst_9 {dimension_numbers = #tpu.dot_dimension_numbers<[1], [0], [0], [1], [0, 0, 1, 1], [], []>} : vector<8x512xbf16>, vector<512x512xbf16>, vector<8x512xf32> -> vector<8x512xf32>
    %c0_10 = arith.constant 0 : index
    %c0_11 = arith.constant 0 : index
    %13 = vector.load %arg7[%c0_10, %c0_11] : memref<8x1xf32, #tpu.memory_space<vmem>>, vector<8x1xf32>
    %14 = vector.broadcast %13 : vector<8x1xf32> to vector<8x512xf32>
    %15 = arith.addf %12, %14 : vector<8x512xf32>
    %16 = tpu.iota {dimensions = array<i32: 1>} : vector<8x512xi32>
    %17 = arith.sitofp %16 : vector<8x512xi32> to vector<8x512xf32>
    %c512_i32 = arith.constant 512 : i32
    %18 = arith.muli %arg1, %c512_i32 : i32
    %19 = arith.sitofp %18 : i32 to f32
    %20 = vector.broadcast %19 : f32 to vector<8x512xf32>
    %21 = arith.addf %17, %20 : vector<8x512xf32>
    %cst_12 = arith.constant 1.000000e+00 : f32
    %22 = vector.broadcast %cst_12 : f32 to vector<8x512xf32>
    %23 = arith.addf %21, %22 : vector<8x512xf32>
    %cst_13 = arith.constant 1.000000e+00 : f32
    %24 = vector.broadcast %cst_13 : f32 to vector<8x512xf32>
    %25 = arith.subf %23, %24 : vector<8x512xf32>
    %cst_14 = arith.constant 1.000000e+00 : f32
    %26 = vector.broadcast %cst_14 : f32 to vector<8x512xf32>
    %27 = arith.cmpf oeq, %23, %26 : vector<8x512xf32>
    %28 = arith.subf %15, %4 : vector<8x512xf32>
    %29 = arith.subf %23, %15 : vector<8x512xf32>
    %30 = arith.subf %25, %28 : vector<8x512xf32>
    %31 = vector.broadcast %8 : vector<8x1xf32> to vector<8x512xf32>
    %32 = arith.subf %31, %15 : vector<8x512xf32>
    %33 = vector.broadcast %8 : vector<8x1xf32> to vector<8x512xf32>
    %34 = arith.addf %33, %23 : vector<8x512xf32>
    %35 = arith.subf %34, %15 : vector<8x512xf32>
    %36 = arith.divf %32, %35 : vector<8x512xf32>
    %cst_15 = arith.constant 1.000000e+00 : f32
    %37 = vector.broadcast %cst_15 : f32 to vector<8x512xf32>
    %38 = arith.subf %37, %36 : vector<8x512xf32>
    %39 = vector.broadcast %8 : vector<8x1xf32> to vector<8x512xf32>
    %40 = arith.addf %39, %25 : vector<8x512xf32>
    %41 = arith.subf %40, %28 : vector<8x512xf32>
    %cst_16 = arith.constant 1.000000e+00 : f32
    %42 = vector.broadcast %cst_16 : f32 to vector<8x512xf32>
    %43 = arith.select %27, %42, %41 : vector<8x512xi1>, vector<8x512xf32>
    %44 = vector.broadcast %8 : vector<8x1xf32> to vector<8x512xf32>
    %45 = arith.subf %44, %28 : vector<8x512xf32>
    %46 = arith.divf %45, %43 : vector<8x512xf32>
    %cst_17 = arith.constant 1.000000e+00 : f32
    %47 = vector.broadcast %cst_17 : f32 to vector<8x512xf32>
    %48 = arith.subf %47, %46 : vector<8x512xf32>
    %cst_18 = arith.constant 0.000000e+00 : f32
    %49 = vector.broadcast %cst_18 : f32 to vector<8x512xf32>
    %50 = arith.select %27, %49, %48 : vector<8x512xi1>, vector<8x512xf32>
    %51 = vector.broadcast %10 : vector<8x1xf32> to vector<8x512xf32>
    %52 = arith.subf %51, %29 : vector<8x512xf32>
    %53 = vector.broadcast %10 : vector<8x1xf32> to vector<8x512xf32>
    %54 = arith.addf %53, %15 : vector<8x512xf32>
    %55 = arith.divf %52, %54 : vector<8x512xf32>
    %cst_19 = arith.constant 1.000000e+00 : f32
    %56 = vector.broadcast %cst_19 : f32 to vector<8x512xf32>
    %57 = arith.subf %56, %55 : vector<8x512xf32>
    %58 = vector.broadcast %10 : vector<8x1xf32> to vector<8x512xf32>
    %59 = arith.addf %58, %28 : vector<8x512xf32>
    %cst_20 = arith.constant 1.000000e+00 : f32
    %60 = vector.broadcast %cst_20 : f32 to vector<8x512xf32>
    %61 = arith.select %27, %60, %59 : vector<8x512xi1>, vector<8x512xf32>
    %62 = vector.broadcast %10 : vector<8x1xf32> to vector<8x512xf32>
    %63 = arith.subf %62, %30 : vector<8x512xf32>
    %64 = arith.divf %63, %61 : vector<8x512xf32>
    %cst_21 = arith.constant 1.000000e+00 : f32
    %65 = vector.broadcast %cst_21 : f32 to vector<8x512xf32>
    %66 = arith.subf %65, %64 : vector<8x512xf32>
    %cst_22 = arith.constant 0.000000e+00 : f32
    %67 = vector.broadcast %cst_22 : f32 to vector<8x512xf32>
    %68 = arith.select %27, %67, %66 : vector<8x512xi1>, vector<8x512xf32>
    %c0_23 = arith.constant 0 : index
    %c0_24 = arith.constant 0 : index
    %69 = vector.load %arg6[%c0_23, %c0_24] : memref<8x1xf32, #tpu.memory_space<vmem>>, vector<8x1xf32>
    %70 = arith.subf %38, %50 : vector<8x512xf32>
    %71 = arith.mulf %7, %70 : vector<8x512xf32>
    %cst_25 = arith.constant dense<0.000000e+00> : vector<8xf32>
    %72 = vector.multi_reduction <add>, %71, %cst_25 [1] : vector<8x512xf32> to vector<8xf32>
    %73 = vector.shape_cast %72 : vector<8xf32> to vector<8x1xf32>
    %74 = arith.addf %69, %73 : vector<8x1xf32>
    %c0_26 = arith.constant 0 : index
    %c0_27 = arith.constant 0 : index
    %75 = vector.load %arg6[%c0_26, %c0_27] : memref<8x1xf32, #tpu.memory_space<vmem>>, vector<8x1xf32>
    tpu.vector_store %arg6[%c0_26, %c0_27], %74 {strides = array<i32>} : memref<8x1xf32, #tpu.memory_space<vmem>>, vector<8x1xf32>,
    %c0_28 = arith.constant 0 : index
    %c0_29 = arith.constant 0 : index
    %76 = vector.load %arg5[%c0_28, %c0_29] : memref<8x1xf32, #tpu.memory_space<vmem>>, vector<8x1xf32>
    %77 = arith.subf %57, %68 : vector<8x512xf32>
    %78 = arith.mulf %7, %77 : vector<8x512xf32>
    %cst_30 = arith.constant dense<0.000000e+00> : vector<8xf32>
    %79 = vector.multi_reduction <add>, %78, %cst_30 [1] : vector<8x512xf32> to vector<8xf32>
    %80 = vector.shape_cast %79 : vector<8xf32> to vector<8x1xf32>
    %81 = arith.addf %76, %80 : vector<8x1xf32>
    %c0_31 = arith.constant 0 : index
    %c0_32 = arith.constant 0 : index
    %82 = vector.load %arg5[%c0_31, %c0_32] : memref<8x1xf32, #tpu.memory_space<vmem>>, vector<8x1xf32>
    tpu.vector_store %arg5[%c0_31, %c0_32], %81 {strides = array<i32>} : memref<8x1xf32, #tpu.memory_space<vmem>>, vector<8x1xf32>,
    %83 = vector.extract_strided_slice %15 {offsets = [0, 511], sizes = [8, 1], strides = [1, 1]} : vector<8x512xf32> to vector<8x1xf32>
    %c0_33 = arith.constant 0 : index
    %c0_34 = arith.constant 0 : index
    %84 = vector.load %arg7[%c0_33, %c0_34] : memref<8x1xf32, #tpu.memory_space<vmem>>, vector<8x1xf32>
    tpu.vector_store %arg7[%c0_33, %c0_34], %83 {strides = array<i32>} : memref<8x1xf32, #tpu.memory_space<vmem>>, vector<8x1xf32>,
    return
  }
  func.func @transform_0(%arg0: i32, %arg1: i32) -> (i32, i32) {
    %c0_i32 = arith.constant 0 : i32
    %c0_i32_0 = arith.constant 0 : i32
    return %arg0, %c0_i32 : i32, i32
  }
  func.func @transform_1(%arg0: i32, %arg1: i32) -> (i32, i32) {
    %c0_i32 = arith.constant 0 : i32
    return %arg0, %arg1 : i32, i32
  }
  func.func @transform_2(%arg0: i32, %arg1: i32) -> (i32, i32) {
    %c0_i32 = arith.constant 0 : i32
    return %arg0, %arg1 : i32, i32
  }
  func.func @transform_3(%arg0: i32, %arg1: i32) -> (i32, i32) {
    %c0_i32 = arith.constant 0 : i32
    %c0_i32_0 = arith.constant 0 : i32
    return %arg0, %c0_i32 : i32, i32
  }
  func.func @transform_4(%arg0: i32, %arg1: i32) -> (i32, i32) {
    %c0_i32 = arith.constant 0 : i32
    %c0_i32_0 = arith.constant 0 : i32
    return %arg0, %c0_i32 : i32, i32
  }
}

</mosaic_0001>

<llo_original>
// kernel: lovasz_bce_loss2.2
$region0: #{lovasz_bce_loss2.2}
  #allocation0 [shape = 'u32[]', space=smem, size = 0x4, offset = 0x4, fixed_abs, tag = 'smem constant byte address 0x4 - core index']
  #allocation1 [shape = 'u32[72,128]{1,0:T(1,128)}', space=vmem, size = 0x9000, scoped, tag = 'internal scratch']
  %s0 = inlined_call_operand.vmem [shape: f32[2,2,2304], index: 0, kind: input, shape index: {}]
  %s1 = inlined_call_operand.vmem [shape: s32[2,1,2304], index: 1, kind: input, shape index: {}]
  %s2 = inlined_call_operand.vmem [shape: f32[2,1,2304], index: 2, kind: output, shape index: {0}]
  %s3 = inlined_call_operand.vmem [shape: bf16[2,1,2304], index: 3, kind: output, shape index: {1}]
  %s4 = inlined_call_operand.vmem [shape: f32[2,1,1], index: 4, kind: output, shape index: {2}]
  %s5 = inlined_call_operand.vmem [shape: f32[2,1,1], index: 5, kind: output, shape index: {3}]
  %s6 = inlined_call_operand.vmem [shape: f32[2,1,1], index: 6, kind: output, shape index: {4}]
  %7 = xla_tuple %s2, %s3, %s4, %s5, %s6
  %s8 = sld [smem:[#allocation0]]
  $region77: #{lovasz_bce_loss2.2} parent=0
    _
  %s10 = ssub.s32 1, %s8
  %s11 = scalar_select 0, %s10, %s8
  loop: start=0, step=1, limit=20
  $region2: #{lovasz_bce_loss2.2} parent=0 // loop_pre_header
    _
  $region3: #{lovasz_bce_loss2.2} parent=0 // loop_header
    %s13 = sphi 0, %s17
    %p14 = scmp.ge.s32.totalorder %s13, 20
    %s20 = sphi 0, %s32
    %s21 = sphi 0, %s28
    %s22 = sphi 0, %s20
    %s23 = sphi 0, %s21
    %s24 = sphi 0, %s22
    %s25 = sphi 0, %s23
    %s37 = sphi 0, %s39
    %s40 = sphi 0, %s37
    %s41 = sphi 0, %s40
    %s57 = sphi 0, %s41
    %s65 = sphi 0, %s67
    %s68 = sphi 0, %s65
    %s69 = sphi 0, %s68
    %s85 = sphi 0, %s69
    %s93 = sphi 0, %s95
    %s96 = sphi 0, %s93
    %s97 = sphi 0, %s96
    %s113 = sphi 0, %s97
    %s121 = sphi 0, %s123
    %s124 = sphi 0, %s121
    %s125 = sphi 0, %s124
    %s141 = sphi 0, %s125
    %s147 = sphi 0, %s149
    %s150 = sphi 0, %s147
    %s151 = sphi 0, %s150
    %s167 = sphi 0, %s151
    %s173 = sphi 0, %s175
    %s176 = sphi 0, %s173
    %s177 = sphi 0, %s176
    %s193 = sphi 0, %s177
    %s199 = sphi 0, %s201
    %s202 = sphi 0, %s199
    %s203 = sphi 0, %s202
    %s219 = sphi 0, %s203
  $region4: #{lovasz_bce_loss2.2} parent=0 // loop_header_branch
    %16 = sbr.rel (%p14) target = $region8
  $region5: #{lovasz_bce_loss2.2} parent=0 // loop_body
    %s18 = ssub.s32 %s13, 1
    %s19 = ssub.s32 %s13, 2
    %s26 = sadd.s32 1, %s21
    %p27 = scmp.ge.s32.totalorder %s26, 9
    %s28 = scalar_select %p27, 0, %s26
    %s29 = sadd.s32 1, %s20
    %s30 = scalar_select %p27, %s29, %s20
    %p31 = scmp.ge.s32.totalorder %s30, 2
    %s32 = scalar_select %p31, 0, %s30
    %s33 = ssub.s32 %s20, %s32
    %s34 = ssub.s32 %s21, %s28
    %s35 = sor.u32 %s33, %s34
    %p36 = scmp.eq.s32.totalorder %s35, 0
    %s38 = sadd.s32 %s37, 1
    %s39 = scalar_select %p36, %s37, %s38
    %p42 = pneg %p36
    %p43 = scmp.eq.s32.totalorder %s13, 17
    %p44 = por %p42, %p43
    %p45 = scmp.ne.s32.totalorder %s37, %s40
    %p46 = scmp.eq.s32.totalorder %s13, 0
    %p47 = por %p45, %p46
    %p48 = scmp.ne.s32.totalorder %s37, %s40
    %p49 = scmp.eq.s32.totalorder %s18, 17
    %p50 = por %p48, %p49
    %p51 = scmp.ne.s32.totalorder %s40, %s41
    %p52 = scmp.eq.s32.totalorder %s18, 0
    %p53 = por %p51, %p52
    %p54 = scmp.ne.s32.totalorder %s40, %s41
    %p55 = scmp.eq.s32.totalorder %s19, 17
    %p56 = por %p54, %p55
    %p58 = scmp.ne.s32.totalorder %s41, %s57
    %p59 = scmp.eq.s32.totalorder %s19, 0
    %p60 = por %p58, %p59
    %s61 = ssub.s32 %s20, %s32
    %s62 = ssub.s32 %s21, %s28
    %s63 = sor.u32 %s61, %s62
    %p64 = scmp.eq.s32.totalorder %s63, 0
    %s66 = sadd.s32 %s65, 1
    %s67 = scalar_select %p64, %s65, %s66
    %p70 = pneg %p64
    %p71 = scmp.eq.s32.totalorder %s13, 17
    %p72 = por %p70, %p71
    %p73 = scmp.ne.s32.totalorder %s65, %s68
    %p74 = scmp.eq.s32.totalorder %s13, 0
    %p75 = por %p73, %p74
    %p76 = scmp.ne.s32.totalorder %s65, %s68
    %p77 = scmp.eq.s32.totalorder %s18, 17
    %p78 = por %p76, %p77
    %p79 = scmp.ne.s32.totalorder %s68, %s69
    %p80 = scmp.eq.s32.totalorder %s18, 0
    %p81 = por %p79, %p80
    %p82 = scmp.ne.s32.totalorder %s68, %s69
    %p83 = scmp.eq.s32.totalorder %s19, 17
    %p84 = por %p82, %p83
    %p86 = scmp.ne.s32.totalorder %s69, %s85
    %p87 = scmp.eq.s32.totalorder %s19, 0
    %p88 = por %p86, %p87
    %s89 = ssub.s32 %s20, %s32
    %s90 = ssub.s32 %s21, %s28
    %s91 = sor.u32 %s89, %s90
    %p92 = scmp.eq.s32.totalorder %s91, 0
    %s94 = sadd.s32 %s93, 1
    %s95 = scalar_select %p92, %s93, %s94
    %p98 = pneg %p92
    %p99 = scmp.eq.s32.totalorder %s13, 17
    %p100 = por %p98, %p99
    %p101 = scmp.ne.s32.totalorder %s93, %s96
    %p102 = scmp.eq.s32.totalorder %s13, 0
    %p103 = por %p101, %p102
    %p104 = scmp.ne.s32.totalorder %s93, %s96
    %p105 = scmp.eq.s32.totalorder %s18, 17
    %p106 = por %p104, %p105
    %p107 = scmp.ne.s32.totalorder %s96, %s97
    %p108 = scmp.eq.s32.totalorder %s18, 0
    %p109 = por %p107, %p108
    %p110 = scmp.ne.s32.totalorder %s96, %s97
    %p111 = scmp.eq.s32.totalorder %s19, 17
    %p112 = por %p110, %p111
    %p114 = scmp.ne.s32.totalorder %s97, %s113
    %p115 = scmp.eq.s32.totalorder %s19, 0
    %p116 = por %p114, %p115
    %s117 = ssub.s32 %s20, %s32
    %s118 = ssub.s32 %s21, %s28
    %s119 = sor.u32 %s117, %s118
    %p120 = scmp.eq.s32.totalorder %s119, 0
    %s122 = sadd.s32 %s121, 1
    %s123 = scalar_select %p120, %s121, %s122
    %p126 = pneg %p120
    %p127 = scmp.eq.s32.totalorder %s13, 17
    %p128 = por %p126, %p127
    %p129 = scmp.ne.s32.totalorder %s121, %s124
    %p130 = scmp.eq.s32.totalorder %s13, 0
    %p131 = por %p129, %p130
    %p132 = scmp.ne.s32.totalorder %s121, %s124
    %p133 = scmp.eq.s32.totalorder %s18, 17
    %p134 = por %p132, %p133
    %p135 = scmp.ne.s32.totalorder %s124, %s125
    %p136 = scmp.eq.s32.totalorder %s18, 0
    %p137 = por %p135, %p136
    %p138 = scmp.ne.s32.totalorder %s124, %s125
    %p139 = scmp.eq.s32.totalorder %s19, 17
    %p140 = por %p138, %p139
    %p142 = scmp.ne.s32.totalorder %s125, %s141
    %p143 = scmp.eq.s32.totalorder %s19, 0
    %p144 = por %p142, %p143
    %s145 = ssub.s32 %s20, %s32
    %p146 = scmp.eq.s32.totalorder %s145, 0
    %s148 = sadd.s32 %s147, 1
    %s149 = scalar_select %p146, %s147, %s148
    %p152 = pneg %p146
    %p153 = scmp.eq.s32.totalorder %s13, 17
    %p154 = por %p152, %p153
    %p155 = scmp.ne.s32.totalorder %s147, %s150
    %p156 = scmp.eq.s32.totalorder %s13, 0
    %p157 = por %p155, %p156
    %p158 = scmp.ne.s32.totalorder %s147, %s150
    %p159 = scmp.eq.s32.totalorder %s18, 17
    %p160 = por %p158, %p159
    %p161 = scmp.ne.s32.totalorder %s150, %s151
    %p162 = scmp.eq.s32.totalorder %s18, 0
    %p163 = por %p161, %p162
    %p164 = scmp.ne.s32.totalorder %s150, %s151
    %p165 = scmp.eq.s32.totalorder %s19, 17
    %p166 = por %p164, %p165
    %p168 = scmp.ne.s32.totalorder %s151, %s167
    %p169 = scmp.eq.s32.totalorder %s19, 0
    %p170 = por %p168, %p169
    %s171 = ssub.s32 %s20, %s32
    %p172 = scmp.eq.s32.totalorder %s171, 0
    %s174 = sadd.s32 %s173, 1
    %s175 = scalar_select %p172, %s173, %s174
    %p178 = pneg %p172
    %p179 = scmp.eq.s32.totalorder %s13, 17
    %p180 = por %p178, %p179
    %p181 = scmp.ne.s32.totalorder %s173, %s176
    %p182 = scmp.eq.s32.totalorder %s13, 0
    %p183 = por %p181, %p182
    %p184 = scmp.ne.s32.totalorder %s173, %s176
    %p185 = scmp.eq.s32.totalorder %s18, 17
    %p186 = por %p184, %p185
    %p187 = scmp.ne.s32.totalorder %s176, %s177
    %p188 = scmp.eq.s32.totalorder %s18, 0
    %p189 = por %p187, %p188
    %p190 = scmp.ne.s32.totalorder %s176, %s177
    %p191 = scmp.eq.s32.totalorder %s19, 17
    %p192 = por %p190, %p191
    %p194 = scmp.ne.s32.totalorder %s177, %s193
    %p195 = scmp.eq.s32.totalorder %s19, 0
    %p196 = por %p194, %p195
    %s197 = ssub.s32 %s20, %s32
    %p198 = scmp.eq.s32.totalorder %s197, 0
    %s200 = sadd.s32 %s199, 1
    %s201 = scalar_select %p198, %s199, %s200
    %p204 = pneg %p198
    %p205 = scmp.eq.s32.totalorder %s13, 17
    %p206 = por %p204, %p205
    %p207 = scmp.ne.s32.totalorder %s199, %s202
    %p208 = scmp.eq.s32.totalorder %s13, 0
    %p209 = por %p207, %p208
    %p210 = scmp.ne.s32.totalorder %s199, %s202
    %p211 = scmp.eq.s32.totalorder %s18, 17
    %p212 = por %p210, %p211
    %p213 = scmp.ne.s32.totalorder %s202, %s203
    %p214 = scmp.eq.s32.totalorder %s18, 0
    %p215 = por %p213, %p214
    %p216 = scmp.ne.s32.totalorder %s202, %s203
    %p217 = scmp.eq.s32.totalorder %s19, 17
    %p218 = por %p216, %p217
    %p220 = scmp.ne.s32.totalorder %s203, %s219
    %p221 = scmp.eq.s32.totalorder %s19, 0
    %p222 = por %p220, %p221
    %p223 = scmp.le.s32.totalorder 1, %s13
    %p224 = scmp.lt.s32.totalorder %s13, 19
    %p225 = pnand %p223, %p224
    %p226 = pneg %p225
    // Predicated region
    $region9: #{lovasz_bce_loss2.2} parent=5 // pred_check
      _
    $region10: #{lovasz_bce_loss2.2} parent=5 // pred_check_branch
      %228 = sbr.rel (%p225) target = $region12
    $region11: #{lovasz_bce_loss2.2} parent=5 // pred_region
      %s229 = ssub.s32 %s13, 1
    $region12: #{lovasz_bce_loss2.2} parent=5 // pred_fallthru
      _
    %p230 = scmp.lt.s32.totalorder %s13, 18
    // Predicated region
    $region13: #{lovasz_bce_loss2.2} parent=5 // pred_check
      %p231 = pneg %p230
    $region14: #{lovasz_bce_loss2.2} parent=5 // pred_check_branch
      %233 = sbr.rel (%p231) target = $region16
    $region15: #{lovasz_bce_loss2.2} parent=5 // pred_region
      // Predicated region
      $region17: #{lovasz_bce_loss2.2} parent=15 // pred_check
        %p234 = pneg %p47
      $region18: #{lovasz_bce_loss2.2} parent=15 // pred_check_branch
        %236 = sbr.rel (%p234) target = $region20
      $region19: #{lovasz_bce_loss2.2} parent=15 // pred_region
        %s237 = smul.u32 2, %s21
        %p238 = scmp.lt.s32.totalorder %s20, 1
        %s239 = scalar_select %p238, %s20, 1
        %p240 = scmp.lt.s32.totalorder %s237, 17
        %s241 = scalar_select %p240, %s237, 17
        %s242 = smul.addr %s239, 18
        %s243 = sadd.s32 %s241, %s242
        %s244 = smul.addr %s243, 2
        %s245 = scalar_lea.vmem %s0, %s244
        %s246 = smul.u32 2, %s21
      $region20: #{lovasz_bce_loss2.2} parent=15 // pred_fallthru
        _
      // Predicated region
      $region21: #{lovasz_bce_loss2.2} parent=15 // pred_check
        %p247 = pneg %p75
      $region22: #{lovasz_bce_loss2.2} parent=15 // pred_check_branch
        %249 = sbr.rel (%p247) target = $region24
      $region23: #{lovasz_bce_loss2.2} parent=15 // pred_region
        %s250 = smul.u32 2, %s21
        %p251 = scmp.lt.s32.totalorder %s20, 1
        %s252 = scalar_select %p251, %s20, 1
        %p253 = scmp.lt.s32.totalorder %s250, 17
        %s254 = scalar_select %p253, %s250, 17
        %s255 = smul.addr %s252, 18
        %s256 = sadd.s32 %s254, %s255
        %s257 = scalar_lea.vmem %s1, %s256
        %s258 = smul.u32 2, %s21
      $region24: #{lovasz_bce_loss2.2} parent=15 // pred_fallthru
        _
    $region16: #{lovasz_bce_loss2.2} parent=5 // pred_fallthru
      _
    %p259 = scmp.le.s32.totalorder 1, %s13
    %p260 = scmp.lt.s32.totalorder %s13, 19
    %p261 = pnand %p259, %p260
    %p262 = pneg %p261
    // Predicated region
    $region25: #{lovasz_bce_loss2.2} parent=5 // pred_check
      _
    $region26: #{lovasz_bce_loss2.2} parent=5 // pred_check_branch
      %264 = sbr.rel (%p261) target = $region28
    $region27: #{lovasz_bce_loss2.2} parent=5 // pred_region
      %s265 = ssub.s32 %s13, 1
      %s266 = smul.u32 2, %s23
      %p267 = scmp.lt.s32.totalorder %s22, 1
      %s268 = scalar_select %p267, %s22, 1
      %p269 = scmp.lt.s32.totalorder %s266, 17
      %s270 = scalar_select %p269, %s266, 17
      %s271 = smul.addr %s268, 18
      %s272 = sadd.s32 %s270, %s271
      %s273 = smul.addr %s272, 2
      %s274 = scalar_lea.vmem %s0, %s273
      %p275 = pneg %p53
      %p276 = pneg %p50
      %s277 = smul.u32 2, %s23
      %p278 = scmp.lt.s32.totalorder %s22, 1
      %s279 = scalar_select %p278, %s22, 1
      %p280 = scmp.lt.s32.totalorder %s277, 17
      %s281 = scalar_select %p280, %s277, 17
      %s282 = smul.addr %s279, 18
      %s283 = sadd.s32 %s281, %s282
      %s284 = scalar_lea.vmem %s1, %s283
      %p285 = pneg %p81
      %p286 = pneg %p78
      %p287 = pneg %p109
      %p288 = pneg %p106
      %s289 = smul.u32 2, %s23
      %p290 = scmp.lt.s32.totalorder %s22, 1
      %s291 = scalar_select %p290, %s22, 1
      %p292 = scmp.lt.s32.totalorder %s289, 17
      %s293 = scalar_select %p292, %s289, 17
      %s294 = smul.addr %s291, 18
      %s295 = sadd.s32 %s293, %s294
      %s296 = scalar_lea.vmem %s2, %s295
      %p297 = pneg %p137
      %p298 = pneg %p134
      %s299 = smul.u32 2, %s23
      %p300 = scmp.lt.s32.totalorder %s22, 1
      %s301 = scalar_select %p300, %s22, 1
      %p302 = scmp.lt.s32.totalorder %s299, 17
      %s303 = scalar_select %p302, %s299, 17
      %s304 = smul.addr %s301, 18
      %s305 = sadd.s32 %s303, %s304
      %s306 = scalar_lea.vmem %s3, %s305
      %p307 = pneg %p163
      %p308 = pneg %p160
      %p309 = scmp.lt.s32.totalorder %s22, 1
      %s310 = scalar_select %p309, %s22, 1
      %s311 = scalar_lea.vmem %s4, %s310
      %p312 = pneg %p189
      %p313 = pneg %p186
      %p314 = scmp.lt.s32.totalorder %s22, 1
      %s315 = scalar_select %p314, %s22, 1
      %s316 = scalar_lea.vmem %s5, %s315
      %p317 = pneg %p215
      %p318 = pneg %p212
      %p319 = scmp.lt.s32.totalorder %s22, 1
      %s320 = scalar_select %p319, %s22, 1
      %s321 = scalar_lea.vmem %s6, %s320
      %s322 = smul.u32 2, %s23
      %p323 = scmp.lt.s32.totalorder %s22, 1
      %s324 = scalar_select %p323, %s22, 1
      %p325 = scmp.lt.s32.totalorder %s322, 17
      %s326 = scalar_select %p325, %s322, 17
      %s327 = smul.addr %s324, 18
      %s328 = sadd.s32 %s326, %s327
      %s329 = smul.addr %s328, 2
      %s330 = scalar_lea.vmem %s0, %s329
      %s331 = smul.u32 2, %s23
      %s332 = smul.u32 2, %s23
      %p333 = scmp.lt.s32.totalorder %s22, 1
      %s334 = scalar_select %p333, %s22, 1
      %p335 = scmp.lt.s32.totalorder %s332, 17
      %s336 = scalar_select %p335, %s332, 17
      %s337 = smul.addr %s334, 18
      %s338 = sadd.s32 %s336, %s337
      %s339 = scalar_lea.vmem %s1, %s338
      %s340 = smul.u32 2, %s23
      %s341 = smul.u32 2, %s23
      %p342 = scmp.lt.s32.totalorder %s22, 1
      %s343 = scalar_select %p342, %s22, 1
      %p344 = scmp.lt.s32.totalorder %s341, 17
      %s345 = scalar_select %p344, %s341, 17
      %s346 = smul.addr %s343, 18
      %s347 = sadd.s32 %s345, %s346
      %s348 = scalar_lea.vmem %s2, %s347
      %s349 = smul.u32 2, %s23
      %s350 = smul.u32 2, %s23
      %p351 = scmp.lt.s32.totalorder %s22, 1
      %s352 = scalar_select %p351, %s22, 1
      %p353 = scmp.lt.s32.totalorder %s350, 17
      %s354 = scalar_select %p353, %s350, 17
      %s355 = smul.addr %s352, 18
      %s356 = sadd.s32 %s354, %s355
      %s357 = scalar_lea.vmem %s3, %s356
      %s358 = smul.u32 2, %s23
      %p359 = scmp.lt.s32.totalorder %s22, 1
      %s360 = scalar_select %p359, %s22, 1
      %s361 = scalar_lea.vmem %s4, %s360
      %p362 = scmp.lt.s32.totalorder %s22, 1
      %s363 = scalar_select %p362, %s22, 1
      %s364 = scalar_lea.vmem %s5, %s363
      %p365 = scmp.lt.s32.totalorder %s22, 1
      %s366 = scalar_select %p365, %s22, 1
      %s367 = scalar_lea.vmem %s6, %s366
      %p368 = scmp.eq.s32.totalorder %s23, 0
      // Predicated region
      $region29: #{lovasz_bce_loss2.2} parent=27 // pred_check
        %p369 = pneg %p368
      $region30: #{lovasz_bce_loss2.2} parent=27 // pred_check_branch
        %371 = sbr.rel (%p369) target = $region32
      $region31: #{lovasz_bce_loss2.2} parent=27 // pred_region
        %vm372 = vcmask 0
        %373 = vst.msk [vmem:[%s361] sm:$0x1] %vm372, 0.0
        %374 = vst.msk [vmem:[%s364] sm:$0x1] %vm372, 0.0
        %375 = vst.msk [vmem:[%s367] sm:$0x1] %vm372, 0.0
      $region32: #{lovasz_bce_loss2.2} parent=27 // pred_fallthru
        _
      %v376 = vld [vmem:[%s330] sm:$0xf]
      %v377 = vld [vmem:[%s339] sm:$0x3]
      %v379 = vrot.slane %v376, 7
      %v381 = vsub.f32 %v376, %v379
      %vm382 = vcmp.eq.s32.totalorder %v377, 1
      %v383 = vsel %vm382, 1, 0
      %v384 = vcvt.s32.f32 %v383
      %v385 = vsub.f32 0.0, %v381
      %387 = vst [vmem:[#allocation1] sm:$0xff] %v385
      %s388 = scalar_lea.vmem [#allocation1], 1
      %v389 = vld [vmem:[%s388] ss:$2 sm:$0xff]
      %392 = vst [vmem:[#allocation1] sm:$0xff] %v381
      %s393 = scalar_lea.vmem [#allocation1], 1
      %v394 = vld [vmem:[%s393] ss:$2 sm:$0xff]
      %v396 = vsel %vm382, %v389, %v394
      %v397 = vand.u32 2147483647, %v396
      %v398 = vsub.f32 0.0, %v397
      %v399 = vmul.f32 %v398, 1.442695
      %v400 = vpow.pop %v399
      %v401 = vadd.f32 %v400, 1.0
      %v402 = vrcp.pop %v401
      %v403 = vmul.f32 %v401, %v402
      %v404 = vsub.f32 1.0, %v403
      %v405 = vmul.f32 %v402, %v404
      %v406 = vadd.f32 %v402, %v405
      %vm407 = vweird.f32 %v401
      %vm408 = vweird.f32 %v402
      %vm409 = vmor %vm407, %vm408
      %v410 = vsel %vm409, %v402, %v406
      %v411 = vand.u32 2147483647, %v401
      %vm412 = vcmp.eq.f32.partialorder %v411, 8.507059e+37
      %v413 = vand.u32 %v401, 2147483648
      %v414 = vor.u32 1.1754944e-38, %v413
      %v415 = vsel %vm412, %v414, %v410
      %v416 = vmul.f32 1.0, %v415
      %vm417 = vcmp.ge.f32.partialorder %v396, 0.0
      %v418 = vmul.f32 %v400, %v416
      %v419 = vsel %vm417, %v416, %v418
      %v420 = vmax.f32 %v396, 0.0
      %v421 = vlog2.pop %v401
      %v422 = vmul.f32 %v421, 0.6931472
      %v423 = vadd.f32 %v420, %v422
      %v424 = vsub.f32 0.0, %v419
      %v425 = vlaneseq
      %vm426 = vcmp.ge.s32.totalorder %v425, 0
      %vm427 = vcmp.lt.s32.totalorder %v425, 256
      %vm428 = vmand %vm426, %vm427
      %429 = vst.msk [vmem:[%s348] sm:$0x3] %vm428, %v424
      %v431 = vperm.slane %v384, 0
      %v432 = vperm.slane %v384, 1
      %v435 = vpack.c.bf16 %v432, %v431
      %v437 = vrot.slane %v435, 3
      %vm438 = vcmask 1040384
      %v441 = vsel %vm438, %v435, %v437
      %vm443 = vcmask 1040384
      %vm444 = vsmask.f32 256
      %vm445 = vmand %vm443, %vm444
      %vm446 = vcmask 1041409
      %vm447 = vsmask.f32 1280
      %vm448 = vmand %vm446, %vm447
      %vm449 = vmor %vm448, %vm445
      %v450 = vld [vmem:[%s357] sm:$0x3]
      %v451 = vsel %vm449, %v441, %v450
      %452 = vst [vmem:[%s357] sm:$0x3] %v451
      %vm453 = vcmp.eq.s32.totalorder %v377, 0
      %v454 = vsel %vm453, 0.5, 1.0
      %v455 = vld [vmem:[%s361] sm:$0x1]
      %v456 = vmul.f32 %v454, %v423
      %v458 = vperm.slane %v456, 0
      %v459 = vperm.slane %v456, 1
      %v462 = vsel %vm438, %v458, 0.0
      %v463 = vsel %vm438, %v459, 0.0
      %v464 = vadd.f32 %v462, %v463
      %465 = vadd.xlane.f32.xlu0 %v464
      %v466 = vpop.xlane.xlu0 %465
      %v467 = vrot.slane %v466, 4
      %v468 = vadd.f32 %v466, %v467
      %v469 = vrot.slane %v468, 2
      %v470 = vadd.f32 %v468, %v469
      %v471 = vrot.slane %v470, 1
      %v472 = vadd.f32 %v470, %v471
      %s473 = vtos %v472
      %v474 = vstv %s473
      %v475 = vadd.f32 %v455, %v474
      %vm476 = vcmask 0
      %477 = vst.msk [vmem:[%s361] sm:$0x1] %vm476, %v475
      %v478 = vld [vmem:[%s364] sm:$0x1]
      %v480 = vperm.slane %v454, 0
      %v481 = vperm.slane %v454, 1
      %v484 = vsel %vm438, %v480, 0.0
      %v485 = vsel %vm438, %v481, 0.0
      %v486 = vadd.f32 %v484, %v485
      %487 = vadd.xlane.f32.xlu0 %v486
      %v488 = vpop.xlane.xlu0 %487
      %v489 = vrot.slane %v488, 4
      %v490 = vadd.f32 %v488, %v489
      %v491 = vrot.slane %v490, 2
      %v492 = vadd.f32 %v490, %v491
      %v493 = vrot.slane %v492, 1
      %v494 = vadd.f32 %v492, %v493
      %s495 = vtos %v494
      %v496 = vstv %s495
      %v497 = vadd.f32 %v478, %v496
      %498 = vst.msk [vmem:[%s364] sm:$0x1] %vm476, %v497
      %v499 = vld [vmem:[%s367] sm:$0x1]
      %v500 = vsel %vm438, %v431, 0.0
      %v501 = vsel %vm438, %v432, 0.0
      %v502 = vadd.f32 %v500, %v501
      %503 = vadd.xlane.f32.xlu0 %v502
      %v504 = vpop.xlane.xlu0 %503
      %v505 = vrot.slane %v504, 4
      %v506 = vadd.f32 %v504, %v505
      %v507 = vrot.slane %v506, 2
      %v508 = vadd.f32 %v506, %v507
      %v509 = vrot.slane %v508, 1
      %v510 = vadd.f32 %v508, %v509
      %s511 = vtos %v510
      %v512 = vstv %s511
      %v513 = vadd.f32 %v499, %v512
      %514 = vst.msk [vmem:[%s367] sm:$0x1] %vm476, %v513
      %s515 = smul.u32 2, %s23
      %p516 = scmp.lt.s32.totalorder %s22, 1
      %s517 = scalar_select %p516, %s22, 1
      %p518 = scmp.lt.s32.totalorder %s515, 17
      %s519 = scalar_select %p518, %s515, 17
      %s520 = smul.addr %s517, 18
      %s521 = sadd.s32 %s519, %s520
      %s522 = scalar_lea.vmem %s2, %s521
      %s523 = smul.u32 2, %s23
      %p524 = scmp.lt.s32.totalorder %s22, 1
      %s525 = scalar_select %p524, %s22, 1
      %p526 = scmp.lt.s32.totalorder %s523, 17
      %s527 = scalar_select %p526, %s523, 17
      %s528 = smul.addr %s525, 18
      %s529 = sadd.s32 %s527, %s528
      %s530 = scalar_lea.vmem %s3, %s529
      %p531 = scmp.lt.s32.totalorder %s22, 1
      %s532 = scalar_select %p531, %s22, 1
      %s533 = scalar_lea.vmem %s4, %s532
      %p534 = scmp.lt.s32.totalorder %s22, 1
      %s535 = scalar_select %p534, %s22, 1
      %s536 = scalar_lea.vmem %s5, %s535
      %p537 = scmp.lt.s32.totalorder %s22, 1
      %s538 = scalar_select %p537, %s22, 1
      %s539 = scalar_lea.vmem %s6, %s538
      // Predicated region
      $region33: #{lovasz_bce_loss2.2} parent=27 // pred_check
        %p540 = pneg %p106
      $region34: #{lovasz_bce_loss2.2} parent=27 // pred_check_branch
        %542 = sbr.rel (%p540) target = $region36
      $region35: #{lovasz_bce_loss2.2} parent=27 // pred_region
        %s543 = smul.u32 2, %s23
      $region36: #{lovasz_bce_loss2.2} parent=27 // pred_fallthru
        _
      // Predicated region
      $region37: #{lovasz_bce_loss2.2} parent=27 // pred_check
        %p544 = pneg %p134
      $region38: #{lovasz_bce_loss2.2} parent=27 // pred_check_branch
        %546 = sbr.rel (%p544) target = $region40
      $region39: #{lovasz_bce_loss2.2} parent=27 // pred_region
        %s547 = smul.u32 2, %s23
      $region40: #{lovasz_bce_loss2.2} parent=27 // pred_fallthru
        _
      // Predicated region
      $region41: #{lovasz_bce_loss2.2} parent=27 // pred_check
        %p548 = pneg %p160
      $region42: #{lovasz_bce_loss2.2} parent=27 // pred_check_branch
        %550 = sbr.rel (%p548) target = $region44
      $region43: #{lovasz_bce_loss2.2} parent=27 // pred_region
        _
      $region44: #{lovasz_bce_loss2.2} parent=27 // pred_fallthru
        _
      // Predicated region
      $region45: #{lovasz_bce_loss2.2} parent=27 // pred_check
        %p551 = pneg %p186
      $region46: #{lovasz_bce_loss2.2} parent=27 // pred_check_branch
        %553 = sbr.rel (%p551) target = $region48
      $region47: #{lovasz_bce_loss2.2} parent=27 // pred_region
        _
      $region48: #{lovasz_bce_loss2.2} parent=27 // pred_fallthru
        _
      // Predicated region
      $region49: #{lovasz_bce_loss2.2} parent=27 // pred_check
        %p554 = pneg %p212
      $region50: #{lovasz_bce_loss2.2} parent=27 // pred_check_branch
        %556 = sbr.rel (%p554) target = $region52
      $region51: #{lovasz_bce_loss2.2} parent=27 // pred_region
        _
      $region52: #{lovasz_bce_loss2.2} parent=27 // pred_fallthru
        _
    $region28: #{lovasz_bce_loss2.2} parent=5 // pred_fallthru
      _
    %p557 = scmp.le.s32.totalorder 2, %s13
    // Predicated region
    $region53: #{lovasz_bce_loss2.2} parent=5 // pred_check
      %p558 = pneg %p557
    $region54: #{lovasz_bce_loss2.2} parent=5 // pred_check_branch
      %560 = sbr.rel (%p558) target = $region56
    $region55: #{lovasz_bce_loss2.2} parent=5 // pred_region
      %s561 = ssub.s32 %s13, 2
      // Predicated region
      $region57: #{lovasz_bce_loss2.2} parent=55 // pred_check
        %p562 = pneg %p112
      $region58: #{lovasz_bce_loss2.2} parent=55 // pred_check_branch
        %564 = sbr.rel (%p562) target = $region60
      $region59: #{lovasz_bce_loss2.2} parent=55 // pred_region
        %s565 = smul.u32 2, %s25
        %p566 = scmp.lt.s32.totalorder %s24, 1
        %s567 = scalar_select %p566, %s24, 1
        %p568 = scmp.lt.s32.totalorder %s565, 17
        %s569 = scalar_select %p568, %s565, 17
        %s570 = smul.addr %s567, 18
        %s571 = sadd.s32 %s569, %s570
        %s572 = scalar_lea.vmem %s2, %s571
      $region60: #{lovasz_bce_loss2.2} parent=55 // pred_fallthru
        _
      // Predicated region
      $region61: #{lovasz_bce_loss2.2} parent=55 // pred_check
        %p573 = pneg %p140
      $region62: #{lovasz_bce_loss2.2} parent=55 // pred_check_branch
        %575 = sbr.rel (%p573) target = $region64
      $region63: #{lovasz_bce_loss2.2} parent=55 // pred_region
        %s576 = smul.u32 2, %s25
        %p577 = scmp.lt.s32.totalorder %s24, 1
        %s578 = scalar_select %p577, %s24, 1
        %p579 = scmp.lt.s32.totalorder %s576, 17
        %s580 = scalar_select %p579, %s576, 17
        %s581 = smul.addr %s578, 18
        %s582 = sadd.s32 %s580, %s581
        %s583 = scalar_lea.vmem %s3, %s582
      $region64: #{lovasz_bce_loss2.2} parent=55 // pred_fallthru
        _
      // Predicated region
      $region65: #{lovasz_bce_loss2.2} parent=55 // pred_check
        %p584 = pneg %p166
      $region66: #{lovasz_bce_loss2.2} parent=55 // pred_check_branch
        %586 = sbr.rel (%p584) target = $region68
      $region67: #{lovasz_bce_loss2.2} parent=55 // pred_region
        %p587 = scmp.lt.s32.totalorder %s24, 1
        %s588 = scalar_select %p587, %s24, 1
        %s589 = scalar_lea.vmem %s4, %s588
      $region68: #{lovasz_bce_loss2.2} parent=55 // pred_fallthru
        _
      // Predicated region
      $region69: #{lovasz_bce_loss2.2} parent=55 // pred_check
        %p590 = pneg %p192
      $region70: #{lovasz_bce_loss2.2} parent=55 // pred_check_branch
        %592 = sbr.rel (%p590) target = $region72
      $region71: #{lovasz_bce_loss2.2} parent=55 // pred_region
        %p593 = scmp.lt.s32.totalorder %s24, 1
        %s594 = scalar_select %p593, %s24, 1
        %s595 = scalar_lea.vmem %s5, %s594
      $region72: #{lovasz_bce_loss2.2} parent=55 // pred_fallthru
        _
      // Predicated region
      $region73: #{lovasz_bce_loss2.2} parent=55 // pred_check
        %p596 = pneg %p218
      $region74: #{lovasz_bce_loss2.2} parent=55 // pred_check_branch
        %598 = sbr.rel (%p596) target = $region76
      $region75: #{lovasz_bce_loss2.2} parent=55 // pred_region
        %p599 = scmp.lt.s32.totalorder %s24, 1
        %s600 = scalar_select %p599, %s24, 1
        %s601 = scalar_lea.vmem %s6, %s600
      $region76: #{lovasz_bce_loss2.2} parent=55 // pred_fallthru
        _
    $region56: #{lovasz_bce_loss2.2} parent=5 // pred_fallthru
      _
  $region6: #{lovasz_bce_loss2.2} parent=0 // loop_footer
    %s17 = sadd.s32 1, %s13
  $region7: #{lovasz_bce_loss2.2} parent=0 // loop_footer_branch
    %12 = sbr.rel target = $region3
  $region8: #{lovasz_bce_loss2.2} parent=0 // loop_exit
    _

// kernel: lovasz_bce_loss2.3
$region0: #{lovasz_bce_loss2.3}
  #allocation0 [shape = 'u32[]', space=smem, size = 0x4, offset = 0x4, fixed_abs, tag = 'smem constant byte address 0x4 - core index']
  #allocation1 [shape = 'u32[72,128]{1,0:T(1,128)}', space=vmem, size = 0x9000, scoped, tag = 'internal scratch']
  #allocation2 [shape = 'f32[8,1]{1,0:T(8,128)}', space=vmem, size = 0x1000, scoped, tag = 'scratch operand']
  #allocation3 [shape = 'bf16[512,512]{1,0:T(8,128)(2,1)}', space=vmem, size = 0x80000, scoped, tag = 'scratch operand']
  %s0 = inlined_call_operand.vmem [shape: f32[16,1], index: 0, kind: input, shape index: {}]
  %s1 = inlined_call_operand.vmem [shape: f32[16,2560], index: 1, kind: input, shape index: {}]
  %s2 = inlined_call_operand.vmem [shape: bf16[16,2560], index: 2, kind: input, shape index: {}]
  %s3 = inlined_call_operand.vmem [shape: f32[16,1], index: 3, kind: output, shape index: {0}]
  %s4 = inlined_call_operand.vmem [shape: f32[16,1], index: 4, kind: output, shape index: {1}]
  %5 = xla_tuple %s3, %s4
  %s6 = sld [smem:[#allocation0]]
  $region57: #{lovasz_bce_loss2.3} parent=0
    _
  %s8 = ssub.s32 1, %s6
  %s9 = scalar_select 0, %s8, %s6
  loop: start=0, step=1, limit=12
  $region2: #{lovasz_bce_loss2.3} parent=0 // loop_pre_header
    _
  $region3: #{lovasz_bce_loss2.3} parent=0 // loop_header
    %s11 = sphi 0, %s15
    %p12 = scmp.ge.s32.totalorder %s11, 12
    %s18 = sphi 0, %s30
    %s19 = sphi 0, %s26
    %s20 = sphi 0, %s18
    %s21 = sphi 0, %s19
    %s22 = sphi 0, %s20
    %s23 = sphi 0, %s21
    %s33 = sphi 0, %s35
    %s36 = sphi 0, %s33
    %s37 = sphi 0, %s36
    %s53 = sphi 0, %s37
    %s61 = sphi 0, %s63
    %s64 = sphi 0, %s61
    %s65 = sphi 0, %s64
    %s81 = sphi 0, %s65
    %s89 = sphi 0, %s91
    %s92 = sphi 0, %s89
    %s93 = sphi 0, %s92
    %s109 = sphi 0, %s93
    %s115 = sphi 0, %s117
    %s118 = sphi 0, %s115
    %s119 = sphi 0, %s118
    %s135 = sphi 0, %s119
    %s141 = sphi 0, %s143
    %s144 = sphi 0, %s141
    %s145 = sphi 0, %s144
    %s161 = sphi 0, %s145
  $region4: #{lovasz_bce_loss2.3} parent=0 // loop_header_branch
    %14 = sbr.rel (%p12) target = $region8
  $region5: #{lovasz_bce_loss2.3} parent=0 // loop_body
    %s16 = ssub.s32 %s11, 1
    %s17 = ssub.s32 %s11, 2
    %s24 = sadd.s32 1, %s19
    %p25 = scmp.ge.s32.totalorder %s24, 5
    %s26 = scalar_select %p25, 0, %s24
    %s27 = sadd.s32 1, %s18
    %s28 = scalar_select %p25, %s27, %s18
    %p29 = scmp.ge.s32.totalorder %s28, 2
    %s30 = scalar_select %p29, 0, %s28
    %s31 = ssub.s32 %s18, %s30
    %p32 = scmp.eq.s32.totalorder %s31, 0
    %s34 = sadd.s32 %s33, 1
    %s35 = scalar_select %p32, %s33, %s34
    %p38 = pneg %p32
    %p39 = scmp.eq.s32.totalorder %s11, 9
    %p40 = por %p38, %p39
    %p41 = scmp.ne.s32.totalorder %s33, %s36
    %p42 = scmp.eq.s32.totalorder %s11, 0
    %p43 = por %p41, %p42
    %p44 = scmp.ne.s32.totalorder %s33, %s36
    %p45 = scmp.eq.s32.totalorder %s16, 9
    %p46 = por %p44, %p45
    %p47 = scmp.ne.s32.totalorder %s36, %s37
    %p48 = scmp.eq.s32.totalorder %s16, 0
    %p49 = por %p47, %p48
    %p50 = scmp.ne.s32.totalorder %s36, %s37
    %p51 = scmp.eq.s32.totalorder %s17, 9
    %p52 = por %p50, %p51
    %p54 = scmp.ne.s32.totalorder %s37, %s53
    %p55 = scmp.eq.s32.totalorder %s17, 0
    %p56 = por %p54, %p55
    %s57 = ssub.s32 %s18, %s30
    %s58 = ssub.s32 %s19, %s26
    %s59 = sor.u32 %s57, %s58
    %p60 = scmp.eq.s32.totalorder %s59, 0
    %s62 = sadd.s32 %s61, 1
    %s63 = scalar_select %p60, %s61, %s62
    %p66 = pneg %p60
    %p67 = scmp.eq.s32.totalorder %s11, 9
    %p68 = por %p66, %p67
    %p69 = scmp.ne.s32.totalorder %s61, %s64
    %p70 = scmp.eq.s32.totalorder %s11, 0
    %p71 = por %p69, %p70
    %p72 = scmp.ne.s32.totalorder %s61, %s64
    %p73 = scmp.eq.s32.totalorder %s16, 9
    %p74 = por %p72, %p73
    %p75 = scmp.ne.s32.totalorder %s64, %s65
    %p76 = scmp.eq.s32.totalorder %s16, 0
    %p77 = por %p75, %p76
    %p78 = scmp.ne.s32.totalorder %s64, %s65
    %p79 = scmp.eq.s32.totalorder %s17, 9
    %p80 = por %p78, %p79
    %p82 = scmp.ne.s32.totalorder %s65, %s81
    %p83 = scmp.eq.s32.totalorder %s17, 0
    %p84 = por %p82, %p83
    %s85 = ssub.s32 %s18, %s30
    %s86 = ssub.s32 %s19, %s26
    %s87 = sor.u32 %s85, %s86
    %p88 = scmp.eq.s32.totalorder %s87, 0
    %s90 = sadd.s32 %s89, 1
    %s91 = scalar_select %p88, %s89, %s90
    %p94 = pneg %p88
    %p95 = scmp.eq.s32.totalorder %s11, 9
    %p96 = por %p94, %p95
    %p97 = scmp.ne.s32.totalorder %s89, %s92
    %p98 = scmp.eq.s32.totalorder %s11, 0
    %p99 = por %p97, %p98
    %p100 = scmp.ne.s32.totalorder %s89, %s92
    %p101 = scmp.eq.s32.totalorder %s16, 9
    %p102 = por %p100, %p101
    %p103 = scmp.ne.s32.totalorder %s92, %s93
    %p104 = scmp.eq.s32.totalorder %s16, 0
    %p105 = por %p103, %p104
    %p106 = scmp.ne.s32.totalorder %s92, %s93
    %p107 = scmp.eq.s32.totalorder %s17, 9
    %p108 = por %p106, %p107
    %p110 = scmp.ne.s32.totalorder %s93, %s109
    %p111 = scmp.eq.s32.totalorder %s17, 0
    %p112 = por %p110, %p111
    %s113 = ssub.s32 %s18, %s30
    %p114 = scmp.eq.s32.totalorder %s113, 0
    %s116 = sadd.s32 %s115, 1
    %s117 = scalar_select %p114, %s115, %s116
    %p120 = pneg %p114
    %p121 = scmp.eq.s32.totalorder %s11, 9
    %p122 = por %p120, %p121
    %p123 = scmp.ne.s32.totalorder %s115, %s118
    %p124 = scmp.eq.s32.totalorder %s11, 0
    %p125 = por %p123, %p124
    %p126 = scmp.ne.s32.totalorder %s115, %s118
    %p127 = scmp.eq.s32.totalorder %s16, 9
    %p128 = por %p126, %p127
    %p129 = scmp.ne.s32.totalorder %s118, %s119
    %p130 = scmp.eq.s32.totalorder %s16, 0
    %p131 = por %p129, %p130
    %p132 = scmp.ne.s32.totalorder %s118, %s119
    %p133 = scmp.eq.s32.totalorder %s17, 9
    %p134 = por %p132, %p133
    %p136 = scmp.ne.s32.totalorder %s119, %s135
    %p137 = scmp.eq.s32.totalorder %s17, 0
    %p138 = por %p136, %p137
    %s139 = ssub.s32 %s18, %s30
    %p140 = scmp.eq.s32.totalorder %s139, 0
    %s142 = sadd.s32 %s141, 1
    %s143 = scalar_select %p140, %s141, %s142
    %p146 = pneg %p140
    %p147 = scmp.eq.s32.totalorder %s11, 9
    %p148 = por %p146, %p147
    %p149 = scmp.ne.s32.totalorder %s141, %s144
    %p150 = scmp.eq.s32.totalorder %s11, 0
    %p151 = por %p149, %p150
    %p152 = scmp.ne.s32.totalorder %s141, %s144
    %p153 = scmp.eq.s32.totalorder %s16, 9
    %p154 = por %p152, %p153
    %p155 = scmp.ne.s32.totalorder %s144, %s145
    %p156 = scmp.eq.s32.totalorder %s16, 0
    %p157 = por %p155, %p156
    %p158 = scmp.ne.s32.totalorder %s144, %s145
    %p159 = scmp.eq.s32.totalorder %s17, 9
    %p160 = por %p158, %p159
    %p162 = scmp.ne.s32.totalorder %s145, %s161
    %p163 = scmp.eq.s32.totalorder %s17, 0
    %p164 = por %p162, %p163
    %p165 = scmp.le.s32.totalorder 1, %s11
    %p166 = scmp.lt.s32.totalorder %s11, 11
    %p167 = pnand %p165, %p166
    %p168 = pneg %p167
    // Predicated region
    $region9: #{lovasz_bce_loss2.3} parent=5 // pred_check
      _
    $region10: #{lovasz_bce_loss2.3} parent=5 // pred_check_branch
      %170 = sbr.rel (%p167) target = $region12
    $region11: #{lovasz_bce_loss2.3} parent=5 // pred_region
      %s171 = ssub.s32 %s11, 1
    $region12: #{lovasz_bce_loss2.3} parent=5 // pred_fallthru
      _
    %p172 = scmp.lt.s32.totalorder %s11, 10
    // Predicated region
    $region13: #{lovasz_bce_loss2.3} parent=5 // pred_check
      %p173 = pneg %p172
    $region14: #{lovasz_bce_loss2.3} parent=5 // pred_check_branch
      %175 = sbr.rel (%p173) target = $region16
    $region15: #{lovasz_bce_loss2.3} parent=5 // pred_region
      // Predicated region
      $region17: #{lovasz_bce_loss2.3} parent=15 // pred_check
        %p176 = pneg %p43
      $region18: #{lovasz_bce_loss2.3} parent=15 // pred_check_branch
        %178 = sbr.rel (%p176) target = $region20
      $region19: #{lovasz_bce_loss2.3} parent=15 // pred_region
        %p179 = scmp.lt.s32.totalorder %s18, 1
        %s180 = scalar_select %p179, %s18, 1
        %s181 = smul.addr %s180, 8
        %s182 = scalar_lea.vmem %s0, %s181
      $region20: #{lovasz_bce_loss2.3} parent=15 // pred_fallthru
        _
      // Predicated region
      $region21: #{lovasz_bce_loss2.3} parent=15 // pred_check
        %p183 = pneg %p71
      $region22: #{lovasz_bce_loss2.3} parent=15 // pred_check_branch
        %185 = sbr.rel (%p183) target = $region24
      $region23: #{lovasz_bce_loss2.3} parent=15 // pred_region
        %s186 = smul.u32 4, %s19
        %p187 = scmp.lt.s32.totalorder %s18, 1
        %s188 = scalar_select %p187, %s18, 1
        %p189 = scmp.lt.s32.totalorder %s186, 19
        %s190 = scalar_select %p189, %s186, 19
        %s191 = smul.addr %s188, 20
        %s192 = sadd.s32 %s190, %s191
        %s193 = smul.addr %s192, 8
        %s194 = scalar_lea.vmem %s1, %s193
        %s195 = smul.u32 4, %s19
      $region24: #{lovasz_bce_loss2.3} parent=15 // pred_fallthru
        _
      // Predicated region
      $region25: #{lovasz_bce_loss2.3} parent=15 // pred_check
        %p196 = pneg %p99
      $region26: #{lovasz_bce_loss2.3} parent=15 // pred_check_branch
        %198 = sbr.rel (%p196) target = $region28
      $region27: #{lovasz_bce_loss2.3} parent=15 // pred_region
        %s199 = smul.u32 4, %s19
        %p200 = scmp.lt.s32.totalorder %s18, 1
        %s201 = scalar_select %p200, %s18, 1
        %p202 = scmp.lt.s32.totalorder %s199, 19
        %s203 = scalar_select %p202, %s199, 19
        %s204 = smul.addr %s201, 20
        %s205 = sadd.s32 %s203, %s204
        %s206 = smul.addr %s205, 4
        %s207 = scalar_lea.vmem %s2, %s206
        %s208 = smul.u32 4, %s19
      $region28: #{lovasz_bce_loss2.3} parent=15 // pred_fallthru
        _
    $region16: #{lovasz_bce_loss2.3} parent=5 // pred_fallthru
      _
    %p209 = scmp.le.s32.totalorder 1, %s11
    %p210 = scmp.lt.s32.totalorder %s11, 11
    %p211 = pnand %p209, %p210
    %p212 = pneg %p211
    // Predicated region
    $region29: #{lovasz_bce_loss2.3} parent=5 // pred_check
      _
    $region30: #{lovasz_bce_loss2.3} parent=5 // pred_check_branch
      %214 = sbr.rel (%p211) target = $region32
    $region31: #{lovasz_bce_loss2.3} parent=5 // pred_region
      %s215 = ssub.s32 %s11, 1
      %p216 = scmp.lt.s32.totalorder %s20, 1
      %s217 = scalar_select %p216, %s20, 1
      %s218 = smul.addr %s217, 8
      %s219 = scalar_lea.vmem %s0, %s218
      %p220 = pneg %p49
      %p221 = pneg %p46
      %s222 = smul.u32 4, %s21
      %p223 = scmp.lt.s32.totalorder %s20, 1
      %s224 = scalar_select %p223, %s20, 1
      %p225 = scmp.lt.s32.totalorder %s222, 19
      %s226 = scalar_select %p225, %s222, 19
      %s227 = smul.addr %s224, 20
      %s228 = sadd.s32 %s226, %s227
      %s229 = smul.addr %s228, 8
      %s230 = scalar_lea.vmem %s1, %s229
      %p231 = pneg %p77
      %p232 = pneg %p74
      %s233 = smul.u32 4, %s21
      %p234 = scmp.lt.s32.totalorder %s20, 1
      %s235 = scalar_select %p234, %s20, 1
      %p236 = scmp.lt.s32.totalorder %s233, 19
      %s237 = scalar_select %p236, %s233, 19
      %s238 = smul.addr %s235, 20
      %s239 = sadd.s32 %s237, %s238
      %s240 = smul.addr %s239, 4
      %s241 = scalar_lea.vmem %s2, %s240
      %p242 = pneg %p105
      %p243 = pneg %p102
      %p244 = pneg %p131
      %p245 = pneg %p128
      %p246 = scmp.lt.s32.totalorder %s20, 1
      %s247 = scalar_select %p246, %s20, 1
      %s248 = smul.addr %s247, 8
      %s249 = scalar_lea.vmem %s3, %s248
      %p250 = pneg %p157
      %p251 = pneg %p154
      %p252 = scmp.lt.s32.totalorder %s20, 1
      %s253 = scalar_select %p252, %s20, 1
      %s254 = smul.addr %s253, 8
      %s255 = scalar_lea.vmem %s4, %s254
      %p256 = scmp.lt.s32.totalorder %s20, 1
      %s257 = scalar_select %p256, %s20, 1
      %s258 = smul.addr %s257, 8
      %s259 = scalar_lea.vmem %s0, %s258
      %s260 = smul.u32 4, %s21
      %p261 = scmp.lt.s32.totalorder %s20, 1
      %s262 = scalar_select %p261, %s20, 1
      %p263 = scmp.lt.s32.totalorder %s260, 19
      %s264 = scalar_select %p263, %s260, 19
      %s265 = smul.addr %s262, 20
      %s266 = sadd.s32 %s264, %s265
      %s267 = smul.addr %s266, 8
      %s268 = scalar_lea.vmem %s1, %s267
      %s269 = smul.u32 4, %s21
      %s270 = smul.u32 4, %s21
      %p271 = scmp.lt.s32.totalorder %s20, 1
      %s272 = scalar_select %p271, %s20, 1
      %p273 = scmp.lt.s32.totalorder %s270, 19
      %s274 = scalar_select %p273, %s270, 19
      %s275 = smul.addr %s272, 20
      %s276 = sadd.s32 %s274, %s275
      %s277 = smul.addr %s276, 4
      %s278 = scalar_lea.vmem %s2, %s277
      %s279 = smul.u32 4, %s21
      %p280 = scmp.lt.s32.totalorder %s20, 1
      %s281 = scalar_select %p280, %s20, 1
      %s282 = smul.addr %s281, 8
      %s283 = scalar_lea.vmem %s3, %s282
      %p284 = scmp.lt.s32.totalorder %s20, 1
      %s285 = scalar_select %p284, %s20, 1
      %s286 = smul.addr %s285, 8
      %s287 = scalar_lea.vmem %s4, %s286
      %p288 = scmp.eq.s32.totalorder %s21, 0
      // Predicated region
      $region33: #{lovasz_bce_loss2.3} parent=31 // pred_check
        %p289 = pneg %p288
      $region34: #{lovasz_bce_loss2.3} parent=31 // pred_check_branch
        %291 = sbr.rel (%p289) target = $region36
      $region35: #{lovasz_bce_loss2.3} parent=31 // pred_region
        %vm292 = vcmask 7168
        %293 = vst.msk [vmem:[%s283] sm:$0xff] %vm292, 0.0
        %294 = vst.msk [vmem:[%s287] sm:$0xff] %vm292, 0.0
        %295 = vst.msk [vmem:[#allocation2] sm:$0xff] %vm292, 0.0
        %v296 = vlaneseq
        %v297 = vshrl.u32 %v296, 7
        %v298 = vadd.s32 %v297, 8
        %v299 = vadd.s32 %v297, 16
        %v300 = vadd.s32 %v297, 24
        %v301 = vadd.s32 %v297, 32
        %v302 = vadd.s32 %v297, 40
        %v303 = vadd.s32 %v297, 48
        %v304 = vadd.s32 %v297, 56
        %v305 = vadd.s32 %v297, 64
        %v306 = vadd.s32 %v297, 72
        %v307 = vadd.s32 %v297, 80
        %v308 = vadd.s32 %v297, 88
        %v309 = vadd.s32 %v297, 96
        %v310 = vadd.s32 %v297, 104
        %v311 = vadd.s32 %v297, 112
        %v312 = vadd.s32 %v297, 120
        %v313 = vadd.s32 %v297, 128
        %v314 = vadd.s32 %v297, 136
        %v315 = vadd.s32 %v297, 144
        %v316 = vadd.s32 %v297, 152
        %v317 = vadd.s32 %v297, 160
        %v318 = vadd.s32 %v297, 168
        %v319 = vadd.s32 %v297, 176
        %v320 = vadd.s32 %v297, 184
        %v321 = vadd.s32 %v297, 192
        %v322 = vadd.s32 %v297, 200
        %v323 = vadd.s32 %v297, 208
        %v324 = vadd.s32 %v297, 216
        %v325 = vadd.s32 %v297, 224
        %v326 = vadd.s32 %v297, 232
        %v327 = vadd.s32 %v297, 240
        %v328 = vadd.s32 %v297, 248
        %v329 = vadd.s32 %v297, 256
        %v330 = vadd.s32 %v297, 264
        %v331 = vadd.s32 %v297, 272
        %v332 = vadd.s32 %v297, 280
        %v333 = vadd.s32 %v297, 288
        %v334 = vadd.s32 %v297, 296
        %v335 = vadd.s32 %v297, 304
        %v336 = vadd.s32 %v297, 312
        %v337 = vadd.s32 %v297, 320
        %v338 = vadd.s32 %v297, 328
        %v339 = vadd.s32 %v297, 336
        %v340 = vadd.s32 %v297, 344
        %v341 = vadd.s32 %v297, 352
        %v342 = vadd.s32 %v297, 360
        %v343 = vadd.s32 %v297, 368
        %v344 = vadd.s32 %v297, 376
        %v345 = vadd.s32 %v297, 384
        %v346 = vadd.s32 %v297, 392
        %v347 = vadd.s32 %v297, 400
        %v348 = vadd.s32 %v297, 408
        %v349 = vadd.s32 %v297, 416
        %v350 = vadd.s32 %v297, 424
        %v351 = vadd.s32 %v297, 432
        %v352 = vadd.s32 %v297, 440
        %v353 = vadd.s32 %v297, 448
        %v354 = vadd.s32 %v297, 456
        %v355 = vadd.s32 %v297, 464
        %v356 = vadd.s32 %v297, 472
        %v357 = vadd.s32 %v297, 480
        %v358 = vadd.s32 %v297, 488
        %v359 = vadd.s32 %v297, 496
        %v360 = vadd.s32 %v297, 504
        %v361 = vlaneseq
        %v362 = vand.u32 %v361, 127
        %v363 = vadd.s32 %v362, 128
        %v364 = vadd.s32 %v362, 256
        %v365 = vadd.s32 %v362, 384
        %vm366 = vcmp.le.s32.totalorder %v297, %v362
        %vm367 = vcmp.le.s32.totalorder %v297, %v363
        %vm368 = vcmp.le.s32.totalorder %v297, %v364
        %vm369 = vcmp.le.s32.totalorder %v297, %v365
        %vm370 = vcmp.le.s32.totalorder %v298, %v362
        %vm371 = vcmp.le.s32.totalorder %v298, %v363
        %vm372 = vcmp.le.s32.totalorder %v298, %v364
        %vm373 = vcmp.le.s32.totalorder %v298, %v365
        %vm374 = vcmp.le.s32.totalorder %v299, %v362
        %vm375 = vcmp.le.s32.totalorder %v299, %v363
        %vm376 = vcmp.le.s32.totalorder %v299, %v364
        %vm377 = vcmp.le.s32.totalorder %v299, %v365
        %vm378 = vcmp.le.s32.totalorder %v300, %v362
        %vm379 = vcmp.le.s32.totalorder %v300, %v363
        %vm380 = vcmp.le.s32.totalorder %v300, %v364
        %vm381 = vcmp.le.s32.totalorder %v300, %v365
        %vm382 = vcmp.le.s32.totalorder %v301, %v362
        %vm383 = vcmp.le.s32.totalorder %v301, %v363
        %vm384 = vcmp.le.s32.totalorder %v301, %v364
        %vm385 = vcmp.le.s32.totalorder %v301, %v365
        %vm386 = vcmp.le.s32.totalorder %v302, %v362
        %vm387 = vcmp.le.s32.totalorder %v302, %v363
        %vm388 = vcmp.le.s32.totalorder %v302, %v364
        %vm389 = vcmp.le.s32.totalorder %v302, %v365
        %vm390 = vcmp.le.s32.totalorder %v303, %v362
        %vm391 = vcmp.le.s32.totalorder %v303, %v363
        %vm392 = vcmp.le.s32.totalorder %v303, %v364
        %vm393 = vcmp.le.s32.totalorder %v303, %v365
        %vm394 = vcmp.le.s32.totalorder %v304, %v362
        %vm395 = vcmp.le.s32.totalorder %v304, %v363
        %vm396 = vcmp.le.s32.totalorder %v304, %v364
        %vm397 = vcmp.le.s32.totalorder %v304, %v365
        %vm398 = vcmp.le.s32.totalorder %v305, %v362
        %vm399 = vcmp.le.s32.totalorder %v305, %v363
        %vm400 = vcmp.le.s32.totalorder %v305, %v364
        %vm401 = vcmp.le.s32.totalorder %v305, %v365
        %vm402 = vcmp.le.s32.totalorder %v306, %v362
        %vm403 = vcmp.le.s32.totalorder %v306, %v363
        %vm404 = vcmp.le.s32.totalorder %v306, %v364
        %vm405 = vcmp.le.s32.totalorder %v306, %v365
        %vm406 = vcmp.le.s32.totalorder %v307, %v362
        %vm407 = vcmp.le.s32.totalorder %v307, %v363
        %vm408 = vcmp.le.s32.totalorder %v307, %v364
        %vm409 = vcmp.le.s32.totalorder %v307, %v365
        %vm410 = vcmp.le.s32.totalorder %v308, %v362
        %vm411 = vcmp.le.s32.totalorder %v308, %v363
        %vm412 = vcmp.le.s32.totalorder %v308, %v364
        %vm413 = vcmp.le.s32.totalorder %v308, %v365
        %vm414 = vcmp.le.s32.totalorder %v309, %v362
        %vm415 = vcmp.le.s32.totalorder %v309, %v363
        %vm416 = vcmp.le.s32.totalorder %v309, %v364
        %vm417 = vcmp.le.s32.totalorder %v309, %v365
        %vm418 = vcmp.le.s32.totalorder %v310, %v362
        %vm419 = vcmp.le.s32.totalorder %v310, %v363
        %vm420 = vcmp.le.s32.totalorder %v310, %v364
        %vm421 = vcmp.le.s32.totalorder %v310, %v365
        %vm422 = vcmp.le.s32.totalorder %v311, %v362
        %vm423 = vcmp.le.s32.totalorder %v311, %v363
        %vm424 = vcmp.le.s32.totalorder %v311, %v364
        %vm425 = vcmp.le.s32.totalorder %v311, %v365
        %vm426 = vcmp.le.s32.totalorder %v312, %v362
        %vm427 = vcmp.le.s32.totalorder %v312, %v363
        %vm428 = vcmp.le.s32.totalorder %v312, %v364
        %vm429 = vcmp.le.s32.totalorder %v312, %v365
        %vm430 = vcmp.le.s32.totalorder %v313, %v362
        %vm431 = vcmp.le.s32.totalorder %v313, %v363
        %vm432 = vcmp.le.s32.totalorder %v313, %v364
        %vm433 = vcmp.le.s32.totalorder %v313, %v365
        %vm434 = vcmp.le.s32.totalorder %v314, %v362
        %vm435 = vcmp.le.s32.totalorder %v314, %v363
        %vm436 = vcmp.le.s32.totalorder %v314, %v364
        %vm437 = vcmp.le.s32.totalorder %v314, %v365
        %vm438 = vcmp.le.s32.totalorder %v315, %v362
        %vm439 = vcmp.le.s32.totalorder %v315, %v363
        %vm440 = vcmp.le.s32.totalorder %v315, %v364
        %vm441 = vcmp.le.s32.totalorder %v315, %v365
        %vm442 = vcmp.le.s32.totalorder %v316, %v362
        %vm443 = vcmp.le.s32.totalorder %v316, %v363
        %vm444 = vcmp.le.s32.totalorder %v316, %v364
        %vm445 = vcmp.le.s32.totalorder %v316, %v365
        %vm446 = vcmp.le.s32.totalorder %v317, %v362
        %vm447 = vcmp.le.s32.totalorder %v317, %v363
        %vm448 = vcmp.le.s32.totalorder %v317, %v364
        %vm449 = vcmp.le.s32.totalorder %v317, %v365
        %vm450 = vcmp.le.s32.totalorder %v318, %v362
        %vm451 = vcmp.le.s32.totalorder %v318, %v363
        %vm452 = vcmp.le.s32.totalorder %v318, %v364
        %vm453 = vcmp.le.s32.totalorder %v318, %v365
        %vm454 = vcmp.le.s32.totalorder %v319, %v362
        %vm455 = vcmp.le.s32.totalorder %v319, %v363
        %vm456 = vcmp.le.s32.totalorder %v319, %v364
        %vm457 = vcmp.le.s32.totalorder %v319, %v365
        %vm458 = vcmp.le.s32.totalorder %v320, %v362
        %vm459 = vcmp.le.s32.totalorder %v320, %v363
        %vm460 = vcmp.le.s32.totalorder %v320, %v364
        %vm461 = vcmp.le.s32.totalorder %v320, %v365
        %vm462 = vcmp.le.s32.totalorder %v321, %v362
        %vm463 = vcmp.le.s32.totalorder %v321, %v363
        %vm464 = vcmp.le.s32.totalorder %v321, %v364
        %vm465 = vcmp.le.s32.totalorder %v321, %v365
        %vm466 = vcmp.le.s32.totalorder %v322, %v362
        %vm467 = vcmp.le.s32.totalorder %v322, %v363
        %vm468 = vcmp.le.s32.totalorder %v322, %v364
        %vm469 = vcmp.le.s32.totalorder %v322, %v365
        %vm470 = vcmp.le.s32.totalorder %v323, %v362
        %vm471 = vcmp.le.s32.totalorder %v323, %v363
        %vm472 = vcmp.le.s32.totalorder %v323, %v364
        %vm473 = vcmp.le.s32.totalorder %v323, %v365
        %vm474 = vcmp.le.s32.totalorder %v324, %v362
        %vm475 = vcmp.le.s32.totalorder %v324, %v363
        %vm476 = vcmp.le.s32.totalorder %v324, %v364
        %vm477 = vcmp.le.s32.totalorder %v324, %v365
        %vm478 = vcmp.le.s32.totalorder %v325, %v362
        %vm479 = vcmp.le.s32.totalorder %v325, %v363
        %vm480 = vcmp.le.s32.totalorder %v325, %v364
        %vm481 = vcmp.le.s32.totalorder %v325, %v365
        %vm482 = vcmp.le.s32.totalorder %v326, %v362
        %vm483 = vcmp.le.s32.totalorder %v326, %v363
        %vm484 = vcmp.le.s32.totalorder %v326, %v364
        %vm485 = vcmp.le.s32.totalorder %v326, %v365
        %vm486 = vcmp.le.s32.totalorder %v327, %v362
        %vm487 = vcmp.le.s32.totalorder %v327, %v363
        %vm488 = vcmp.le.s32.totalorder %v327, %v364
        %vm489 = vcmp.le.s32.totalorder %v327, %v365
        %vm490 = vcmp.le.s32.totalorder %v328, %v362
        %vm491 = vcmp.le.s32.totalorder %v328, %v363
        %vm492 = vcmp.le.s32.totalorder %v328, %v364
        %vm493 = vcmp.le.s32.totalorder %v328, %v365
        %vm494 = vcmp.le.s32.totalorder %v329, %v362
        %vm495 = vcmp.le.s32.totalorder %v329, %v363
        %vm496 = vcmp.le.s32.totalorder %v329, %v364
        %vm497 = vcmp.le.s32.totalorder %v329, %v365
        %vm498 = vcmp.le.s32.totalorder %v330, %v362
        %vm499 = vcmp.le.s32.totalorder %v330, %v363
        %vm500 = vcmp.le.s32.totalorder %v330, %v364
        %vm501 = vcmp.le.s32.totalorder %v330, %v365
        %vm502 = vcmp.le.s32.totalorder %v331, %v362
        %vm503 = vcmp.le.s32.totalorder %v331, %v363
        %vm504 = vcmp.le.s32.totalorder %v331, %v364
        %vm505 = vcmp.le.s32.totalorder %v331, %v365
        %vm506 = vcmp.le.s32.totalorder %v332, %v362
        %vm507 = vcmp.le.s32.totalorder %v332, %v363
        %vm508 = vcmp.le.s32.totalorder %v332, %v364
        %vm509 = vcmp.le.s32.totalorder %v332, %v365
        %vm510 = vcmp.le.s32.totalorder %v333, %v362
        %vm511 = vcmp.le.s32.totalorder %v333, %v363
        %vm512 = vcmp.le.s32.totalorder %v333, %v364
        %vm513 = vcmp.le.s32.totalorder %v333, %v365
        %vm514 = vcmp.le.s32.totalorder %v334, %v362
        %vm515 = vcmp.le.s32.totalorder %v334, %v363
        %vm516 = vcmp.le.s32.totalorder %v334, %v364
        %vm517 = vcmp.le.s32.totalorder %v334, %v365
        %vm518 = vcmp.le.s32.totalorder %v335, %v362
        %vm519 = vcmp.le.s32.totalorder %v335, %v363
        %vm520 = vcmp.le.s32.totalorder %v335, %v364
        %vm521 = vcmp.le.s32.totalorder %v335, %v365
        %vm522 = vcmp.le.s32.totalorder %v336, %v362
        %vm523 = vcmp.le.s32.totalorder %v336, %v363
        %vm524 = vcmp.le.s32.totalorder %v336, %v364
        %vm525 = vcmp.le.s32.totalorder %v336, %v365
        %vm526 = vcmp.le.s32.totalorder %v337, %v362
        %vm527 = vcmp.le.s32.totalorder %v337, %v363
        %vm528 = vcmp.le.s32.totalorder %v337, %v364
        %vm529 = vcmp.le.s32.totalorder %v337, %v365
        %vm530 = vcmp.le.s32.totalorder %v338, %v362
        %vm531 = vcmp.le.s32.totalorder %v338, %v363
        %vm532 = vcmp.le.s32.totalorder %v338, %v364
        %vm533 = vcmp.le.s32.totalorder %v338, %v365
        %vm534 = vcmp.le.s32.totalorder %v339, %v362
        %vm535 = vcmp.le.s32.totalorder %v339, %v363
        %vm536 = vcmp.le.s32.totalorder %v339, %v364
        %vm537 = vcmp.le.s32.totalorder %v339, %v365
        %vm538 = vcmp.le.s32.totalorder %v340, %v362
        %vm539 = vcmp.le.s32.totalorder %v340, %v363
        %vm540 = vcmp.le.s32.totalorder %v340, %v364
        %vm541 = vcmp.le.s32.totalorder %v340, %v365
        %vm542 = vcmp.le.s32.totalorder %v341, %v362
        %vm543 = vcmp.le.s32.totalorder %v341, %v363
        %vm544 = vcmp.le.s32.totalorder %v341, %v364
        %vm545 = vcmp.le.s32.totalorder %v341, %v365
        %vm546 = vcmp.le.s32.totalorder %v342, %v362
        %vm547 = vcmp.le.s32.totalorder %v342, %v363
        %vm548 = vcmp.le.s32.totalorder %v342, %v364
        %vm549 = vcmp.le.s32.totalorder %v342, %v365
        %vm550 = vcmp.le.s32.totalorder %v343, %v362
        %vm551 = vcmp.le.s32.totalorder %v343, %v363
        %vm552 = vcmp.le.s32.totalorder %v343, %v364
        %vm553 = vcmp.le.s32.totalorder %v343, %v365
        %vm554 = vcmp.le.s32.totalorder %v344, %v362
        %vm555 = vcmp.le.s32.totalorder %v344, %v363
        %vm556 = vcmp.le.s32.totalorder %v344, %v364
        %vm557 = vcmp.le.s32.totalorder %v344, %v365
        %vm558 = vcmp.le.s32.totalorder %v345, %v362
        %vm559 = vcmp.le.s32.totalorder %v345, %v363
        %vm560 = vcmp.le.s32.totalorder %v345, %v364
        %vm561 = vcmp.le.s32.totalorder %v345, %v365
        %vm562 = vcmp.le.s32.totalorder %v346, %v362
        %vm563 = vcmp.le.s32.totalorder %v346, %v363
        %vm564 = vcmp.le.s32.totalorder %v346, %v364
        %vm565 = vcmp.le.s32.totalorder %v346, %v365
        %vm566 = vcmp.le.s32.totalorder %v347, %v362
        %vm567 = vcmp.le.s32.totalorder %v347, %v363
        %vm568 = vcmp.le.s32.totalorder %v347, %v364
        %vm569 = vcmp.le.s32.totalorder %v347, %v365
        %vm570 = vcmp.le.s32.totalorder %v348, %v362
        %vm571 = vcmp.le.s32.totalorder %v348, %v363
        %vm572 = vcmp.le.s32.totalorder %v348, %v364
        %vm573 = vcmp.le.s32.totalorder %v348, %v365
        %vm574 = vcmp.le.s32.totalorder %v349, %v362
        %vm575 = vcmp.le.s32.totalorder %v349, %v363
        %vm576 = vcmp.le.s32.totalorder %v349, %v364
        %vm577 = vcmp.le.s32.totalorder %v349, %v365
        %vm578 = vcmp.le.s32.totalorder %v350, %v362
        %vm579 = vcmp.le.s32.totalorder %v350, %v363
        %vm580 = vcmp.le.s32.totalorder %v350, %v364
        %vm581 = vcmp.le.s32.totalorder %v350, %v365
        %vm582 = vcmp.le.s32.totalorder %v351, %v362
        %vm583 = vcmp.le.s32.totalorder %v351, %v363
        %vm584 = vcmp.le.s32.totalorder %v351, %v364
        %vm585 = vcmp.le.s32.totalorder %v351, %v365
        %vm586 = vcmp.le.s32.totalorder %v352, %v362
        %vm587 = vcmp.le.s32.totalorder %v352, %v363
        %vm588 = vcmp.le.s32.totalorder %v352, %v364
        %vm589 = vcmp.le.s32.totalorder %v352, %v365
        %vm590 = vcmp.le.s32.totalorder %v353, %v362
        %vm591 = vcmp.le.s32.totalorder %v353, %v363
        %vm592 = vcmp.le.s32.totalorder %v353, %v364
        %vm593 = vcmp.le.s32.totalorder %v353, %v365
        %vm594 = vcmp.le.s32.totalorder %v354, %v362
        %vm595 = vcmp.le.s32.totalorder %v354, %v363
        %vm596 = vcmp.le.s32.totalorder %v354, %v364
        %vm597 = vcmp.le.s32.totalorder %v354, %v365
        %vm598 = vcmp.le.s32.totalorder %v355, %v362
        %vm599 = vcmp.le.s32.totalorder %v355, %v363
        %vm600 = vcmp.le.s32.totalorder %v355, %v364
        %vm601 = vcmp.le.s32.totalorder %v355, %v365
        %vm602 = vcmp.le.s32.totalorder %v356, %v362
        %vm603 = vcmp.le.s32.totalorder %v356, %v363
        %vm604 = vcmp.le.s32.totalorder %v356, %v364
        %vm605 = vcmp.le.s32.totalorder %v356, %v365
        %vm606 = vcmp.le.s32.totalorder %v357, %v362
        %vm607 = vcmp.le.s32.totalorder %v357, %v363
        %vm608 = vcmp.le.s32.totalorder %v357, %v364
        %vm609 = vcmp.le.s32.totalorder %v357, %v365
        %vm610 = vcmp.le.s32.totalorder %v358, %v362
        %vm611 = vcmp.le.s32.totalorder %v358, %v363
        %vm612 = vcmp.le.s32.totalorder %v358, %v364
        %vm613 = vcmp.le.s32.totalorder %v358, %v365
        %vm614 = vcmp.le.s32.totalorder %v359, %v362
        %vm615 = vcmp.le.s32.totalorder %v359, %v363
        %vm616 = vcmp.le.s32.totalorder %v359, %v364
        %vm617 = vcmp.le.s32.totalorder %v359, %v365
        %vm618 = vcmp.le.s32.totalorder %v360, %v362
        %vm619 = vcmp.le.s32.totalorder %v360, %v363
        %vm620 = vcmp.le.s32.totalorder %v360, %v364
        %vm621 = vcmp.le.s32.totalorder %v360, %v365
        %v622 = vsel %vm366, 1, 0
        %v623 = vsel %vm367, 1, 0
        %v624 = vsel %vm368, 1, 0
        %v625 = vsel %vm369, 1, 0
        %v626 = vsel %vm370, 1, 0
        %v627 = vsel %vm371, 1, 0
        %v628 = vsel %vm372, 1, 0
        %v629 = vsel %vm373, 1, 0
        %v630 = vsel %vm374, 1, 0
        %v631 = vsel %vm375, 1, 0
        %v632 = vsel %vm376, 1, 0
        %v633 = vsel %vm377, 1, 0
        %v634 = vsel %vm378, 1, 0
        %v635 = vsel %vm379, 1, 0
        %v636 = vsel %vm380, 1, 0
        %v637 = vsel %vm381, 1, 0
        %v638 = vsel %vm382, 1, 0
        %v639 = vsel %vm383, 1, 0
        %v640 = vsel %vm384, 1, 0
        %v641 = vsel %vm385, 1, 0
        %v642 = vsel %vm386, 1, 0
        %v643 = vsel %vm387, 1, 0
        %v644 = vsel %vm388, 1, 0
        %v645 = vsel %vm389, 1, 0
        %v646 = vsel %vm390, 1, 0
        %v647 = vsel %vm391, 1, 0
        %v648 = vsel %vm392, 1, 0
        %v649 = vsel %vm393, 1, 0
        %v650 = vsel %vm394, 1, 0
        %v651 = vsel %vm395, 1, 0
        %v652 = vsel %vm396, 1, 0
        %v653 = vsel %vm397, 1, 0
        %v654 = vsel %vm398, 1, 0
        %v655 = vsel %vm399, 1, 0
        %v656 = vsel %vm400, 1, 0
        %v657 = vsel %vm401, 1, 0
        %v658 = vsel %vm402, 1, 0
        %v659 = vsel %vm403, 1, 0
        %v660 = vsel %vm404, 1, 0
        %v661 = vsel %vm405, 1, 0
        %v662 = vsel %vm406, 1, 0
        %v663 = vsel %vm407, 1, 0
        %v664 = vsel %vm408, 1, 0
        %v665 = vsel %vm409, 1, 0
        %v666 = vsel %vm410, 1, 0
        %v667 = vsel %vm411, 1, 0
        %v668 = vsel %vm412, 1, 0
        %v669 = vsel %vm413, 1, 0
        %v670 = vsel %vm414, 1, 0
        %v671 = vsel %vm415, 1, 0
        %v672 = vsel %vm416, 1, 0
        %v673 = vsel %vm417, 1, 0
        %v674 = vsel %vm418, 1, 0
        %v675 = vsel %vm419, 1, 0
        %v676 = vsel %vm420, 1, 0
        %v677 = vsel %vm421, 1, 0
        %v678 = vsel %vm422, 1, 0
        %v679 = vsel %vm423, 1, 0
        %v680 = vsel %vm424, 1, 0
        %v681 = vsel %vm425, 1, 0
        %v682 = vsel %vm426, 1, 0
        %v683 = vsel %vm427, 1, 0
        %v684 = vsel %vm428, 1, 0
        %v685 = vsel %vm429, 1, 0
        %v686 = vsel %vm430, 1, 0
        %v687 = vsel %vm431, 1, 0
        %v688 = vsel %vm432, 1, 0
        %v689 = vsel %vm433, 1, 0
        %v690 = vsel %vm434, 1, 0
        %v691 = vsel %vm435, 1, 0
        %v692 = vsel %vm436, 1, 0
        %v693 = vsel %vm437, 1, 0
        %v694 = vsel %vm438, 1, 0
        %v695 = vsel %vm439, 1, 0
        %v696 = vsel %vm440, 1, 0
        %v697 = vsel %vm441, 1, 0
        %v698 = vsel %vm442, 1, 0
        %v699 = vsel %vm443, 1, 0
        %v700 = vsel %vm444, 1, 0
        %v701 = vsel %vm445, 1, 0
        %v702 = vsel %vm446, 1, 0
        %v703 = vsel %vm447, 1, 0
        %v704 = vsel %vm448, 1, 0
        %v705 = vsel %vm449, 1, 0
        %v706 = vsel %vm450, 1, 0
        %v707 = vsel %vm451, 1, 0
        %v708 = vsel %vm452, 1, 0
        %v709 = vsel %vm453, 1, 0
        %v710 = vsel %vm454, 1, 0
        %v711 = vsel %vm455, 1, 0
        %v712 = vsel %vm456, 1, 0
        %v713 = vsel %vm457, 1, 0
        %v714 = vsel %vm458, 1, 0
        %v715 = vsel %vm459, 1, 0
        %v716 = vsel %vm460, 1, 0
        %v717 = vsel %vm461, 1, 0
        %v718 = vsel %vm462, 1, 0
        %v719 = vsel %vm463, 1, 0
        %v720 = vsel %vm464, 1, 0
        %v721 = vsel %vm465, 1, 0
        %v722 = vsel %vm466, 1, 0
        %v723 = vsel %vm467, 1, 0
        %v724 = vsel %vm468, 1, 0
        %v725 = vsel %vm469, 1, 0
        %v726 = vsel %vm470, 1, 0
        %v727 = vsel %vm471, 1, 0
        %v728 = vsel %vm472, 1, 0
        %v729 = vsel %vm473, 1, 0
        %v730 = vsel %vm474, 1, 0
        %v731 = vsel %vm475, 1, 0
        %v732 = vsel %vm476, 1, 0
        %v733 = vsel %vm477, 1, 0
        %v734 = vsel %vm478, 1, 0
        %v735 = vsel %vm479, 1, 0
        %v736 = vsel %vm480, 1, 0
        %v737 = vsel %vm481, 1, 0
        %v738 = vsel %vm482, 1, 0
        %v739 = vsel %vm483, 1, 0
        %v740 = vsel %vm484, 1, 0
        %v741 = vsel %vm485, 1, 0
        %v742 = vsel %vm486, 1, 0
        %v743 = vsel %vm487, 1, 0
        %v744 = vsel %vm488, 1, 0
        %v745 = vsel %vm489, 1, 0
        %v746 = vsel %vm490, 1, 0
        %v747 = vsel %vm491, 1, 0
        %v748 = vsel %vm492, 1, 0
        %v749 = vsel %vm493, 1, 0
        %v750 = vsel %vm494, 1, 0
        %v751 = vsel %vm495, 1, 0
        %v752 = vsel %vm496, 1, 0
        %v753 = vsel %vm497, 1, 0
        %v754 = vsel %vm498, 1, 0
        %v755 = vsel %vm499, 1, 0
        %v756 = vsel %vm500, 1, 0
        %v757 = vsel %vm501, 1, 0
        %v758 = vsel %vm502, 1, 0
        %v759 = vsel %vm503, 1, 0
        %v760 = vsel %vm504, 1, 0
        %v761 = vsel %vm505, 1, 0
        %v762 = vsel %vm506, 1, 0
        %v763 = vsel %vm507, 1, 0
        %v764 = vsel %vm508, 1, 0
        %v765 = vsel %vm509, 1, 0
        %v766 = vsel %vm510, 1, 0
        %v767 = vsel %vm511, 1, 0
        %v768 = vsel %vm512, 1, 0
        %v769 = vsel %vm513, 1, 0
        %v770 = vsel %vm514, 1, 0
        %v771 = vsel %vm515, 1, 0
        %v772 = vsel %vm516, 1, 0
        %v773 = vsel %vm517, 1, 0
        %v774 = vsel %vm518, 1, 0
        %v775 = vsel %vm519, 1, 0
        %v776 = vsel %vm520, 1, 0
        %v777 = vsel %vm521, 1, 0
        %v778 = vsel %vm522, 1, 0
        %v779 = vsel %vm523, 1, 0
        %v780 = vsel %vm524, 1, 0
        %v781 = vsel %vm525, 1, 0
        %v782 = vsel %vm526, 1, 0
        %v783 = vsel %vm527, 1, 0
        %v784 = vsel %vm528, 1, 0
        %v785 = vsel %vm529, 1, 0
        %v786 = vsel %vm530, 1, 0
        %v787 = vsel %vm531, 1, 0
        %v788 = vsel %vm532, 1, 0
        %v789 = vsel %vm533, 1, 0
        %v790 = vsel %vm534, 1, 0
        %v791 = vsel %vm535, 1, 0
        %v792 = vsel %vm536, 1, 0
        %v793 = vsel %vm537, 1, 0
        %v794 = vsel %vm538, 1, 0
        %v795 = vsel %vm539, 1, 0
        %v796 = vsel %vm540, 1, 0
        %v797 = vsel %vm541, 1, 0
        %v798 = vsel %vm542, 1, 0
        %v799 = vsel %vm543, 1, 0
        %v800 = vsel %vm544, 1, 0
        %v801 = vsel %vm545, 1, 0
        %v802 = vsel %vm546, 1, 0
        %v803 = vsel %vm547, 1, 0
        %v804 = vsel %vm548, 1, 0
        %v805 = vsel %vm549, 1, 0
        %v806 = vsel %vm550, 1, 0
        %v807 = vsel %vm551, 1, 0
        %v808 = vsel %vm552, 1, 0
        %v809 = vsel %vm553, 1, 0
        %v810 = vsel %vm554, 1, 0
        %v811 = vsel %vm555, 1, 0
        %v812 = vsel %vm556, 1, 0
        %v813 = vsel %vm557, 1, 0
        %v814 = vsel %vm558, 1, 0
        %v815 = vsel %vm559, 1, 0
        %v816 = vsel %vm560, 1, 0
        %v817 = vsel %vm561, 1, 0
        %v818 = vsel %vm562, 1, 0
        %v819 = vsel %vm563, 1, 0
        %v820 = vsel %vm564, 1, 0
        %v821 = vsel %vm565, 1, 0
        %v822 = vsel %vm566, 1, 0
        %v823 = vsel %vm567, 1, 0
        %v824 = vsel %vm568, 1, 0
        %v825 = vsel %vm569, 1, 0
        %v826 = vsel %vm570, 1, 0
        %v827 = vsel %vm571, 1, 0
        %v828 = vsel %vm572, 1, 0
        %v829 = vsel %vm573, 1, 0
        %v830 = vsel %vm574, 1, 0
        %v831 = vsel %vm575, 1, 0
        %v832 = vsel %vm576, 1, 0
        %v833 = vsel %vm577, 1, 0
        %v834 = vsel %vm578, 1, 0
        %v835 = vsel %vm579, 1, 0
        %v836 = vsel %vm580, 1, 0
        %v837 = vsel %vm581, 1, 0
        %v838 = vsel %vm582, 1, 0
        %v839 = vsel %vm583, 1, 0
        %v840 = vsel %vm584, 1, 0
        %v841 = vsel %vm585, 1, 0
        %v842 = vsel %vm586, 1, 0
        %v843 = vsel %vm587, 1, 0
        %v844 = vsel %vm588, 1, 0
        %v845 = vsel %vm589, 1, 0
        %v846 = vsel %vm590, 1, 0
        %v847 = vsel %vm591, 1, 0
        %v848 = vsel %vm592, 1, 0
        %v849 = vsel %vm593, 1, 0
        %v850 = vsel %vm594, 1, 0
        %v851 = vsel %vm595, 1, 0
        %v852 = vsel %vm596, 1, 0
        %v853 = vsel %vm597, 1, 0
        %v854 = vsel %vm598, 1, 0
        %v855 = vsel %vm599, 1, 0
        %v856 = vsel %vm600, 1, 0
        %v857 = vsel %vm601, 1, 0
        %v858 = vsel %vm602, 1, 0
        %v859 = vsel %vm603, 1, 0
        %v860 = vsel %vm604, 1, 0
        %v861 = vsel %vm605, 1, 0
        %v862 = vsel %vm606, 1, 0
        %v863 = vsel %vm607, 1, 0
        %v864 = vsel %vm608, 1, 0
        %v865 = vsel %vm609, 1, 0
        %v866 = vsel %vm610, 1, 0
        %v867 = vsel %vm611, 1, 0
        %v868 = vsel %vm612, 1, 0
        %v869 = vsel %vm613, 1, 0
        %v870 = vsel %vm614, 1, 0
        %v871 = vsel %vm615, 1, 0
        %v872 = vsel %vm616, 1, 0
        %v873 = vsel %vm617, 1, 0
        %v874 = vsel %vm618, 1, 0
        %v875 = vsel %vm619, 1, 0
        %v876 = vsel %vm620, 1, 0
        %v877 = vsel %vm621, 1, 0
        %v878 = vcvt.s32.f32 %v622
        %v879 = vcvt.s32.f32 %v623
        %v880 = vcvt.s32.f32 %v624
        %v881 = vcvt.s32.f32 %v625
        %v882 = vcvt.s32.f32 %v626
        %v883 = vcvt.s32.f32 %v627
        %v884 = vcvt.s32.f32 %v628
        %v885 = vcvt.s32.f32 %v629
        %v886 = vcvt.s32.f32 %v630
        %v887 = vcvt.s32.f32 %v631
        %v888 = vcvt.s32.f32 %v632
        %v889 = vcvt.s32.f32 %v633
        %v890 = vcvt.s32.f32 %v634
        %v891 = vcvt.s32.f32 %v635
        %v892 = vcvt.s32.f32 %v636
        %v893 = vcvt.s32.f32 %v637
        %v894 = vcvt.s32.f32 %v638
        %v895 = vcvt.s32.f32 %v639
        %v896 = vcvt.s32.f32 %v640
        %v897 = vcvt.s32.f32 %v641
        %v898 = vcvt.s32.f32 %v642
        %v899 = vcvt.s32.f32 %v643
        %v900 = vcvt.s32.f32 %v644
        %v901 = vcvt.s32.f32 %v645
        %v902 = vcvt.s32.f32 %v646
        %v903 = vcvt.s32.f32 %v647
        %v904 = vcvt.s32.f32 %v648
        %v905 = vcvt.s32.f32 %v649
        %v906 = vcvt.s32.f32 %v650
        %v907 = vcvt.s32.f32 %v651
        %v908 = vcvt.s32.f32 %v652
        %v909 = vcvt.s32.f32 %v653
        %v910 = vcvt.s32.f32 %v654
        %v911 = vcvt.s32.f32 %v655
        %v912 = vcvt.s32.f32 %v656
        %v913 = vcvt.s32.f32 %v657
        %v914 = vcvt.s32.f32 %v658
        %v915 = vcvt.s32.f32 %v659
        %v916 = vcvt.s32.f32 %v660
        %v917 = vcvt.s32.f32 %v661
        %v918 = vcvt.s32.f32 %v662
        %v919 = vcvt.s32.f32 %v663
        %v920 = vcvt.s32.f32 %v664
        %v921 = vcvt.s32.f32 %v665
        %v922 = vcvt.s32.f32 %v666
        %v923 = vcvt.s32.f32 %v667
        %v924 = vcvt.s32.f32 %v668
        %v925 = vcvt.s32.f32 %v669
        %v926 = vcvt.s32.f32 %v670
        %v927 = vcvt.s32.f32 %v671
        %v928 = vcvt.s32.f32 %v672
        %v929 = vcvt.s32.f32 %v673
        %v930 = vcvt.s32.f32 %v674
        %v931 = vcvt.s32.f32 %v675
        %v932 = vcvt.s32.f32 %v676
        %v933 = vcvt.s32.f32 %v677
        %v934 = vcvt.s32.f32 %v678
        %v935 = vcvt.s32.f32 %v679
        %v936 = vcvt.s32.f32 %v680
        %v937 = vcvt.s32.f32 %v681
        %v938 = vcvt.s32.f32 %v682
        %v939 = vcvt.s32.f32 %v683
        %v940 = vcvt.s32.f32 %v684
        %v941 = vcvt.s32.f32 %v685
        %v942 = vcvt.s32.f32 %v686
        %v943 = vcvt.s32.f32 %v687
        %v944 = vcvt.s32.f32 %v688
        %v945 = vcvt.s32.f32 %v689
        %v946 = vcvt.s32.f32 %v690
        %v947 = vcvt.s32.f32 %v691
        %v948 = vcvt.s32.f32 %v692
        %v949 = vcvt.s32.f32 %v693
        %v950 = vcvt.s32.f32 %v694
        %v951 = vcvt.s32.f32 %v695
        %v952 = vcvt.s32.f32 %v696
        %v953 = vcvt.s32.f32 %v697
        %v954 = vcvt.s32.f32 %v698
        %v955 = vcvt.s32.f32 %v699
        %v956 = vcvt.s32.f32 %v700
        %v957 = vcvt.s32.f32 %v701
        %v958 = vcvt.s32.f32 %v702
        %v959 = vcvt.s32.f32 %v703
        %v960 = vcvt.s32.f32 %v704
        %v961 = vcvt.s32.f32 %v705
        %v962 = vcvt.s32.f32 %v706
        %v963 = vcvt.s32.f32 %v707
        %v964 = vcvt.s32.f32 %v708
        %v965 = vcvt.s32.f32 %v709
        %v966 = vcvt.s32.f32 %v710
        %v967 = vcvt.s32.f32 %v711
        %v968 = vcvt.s32.f32 %v712
        %v969 = vcvt.s32.f32 %v713
        %v970 = vcvt.s32.f32 %v714
        %v971 = vcvt.s32.f32 %v715
        %v972 = vcvt.s32.f32 %v716
        %v973 = vcvt.s32.f32 %v717
        %v974 = vcvt.s32.f32 %v718
        %v975 = vcvt.s32.f32 %v719
        %v976 = vcvt.s32.f32 %v720
        %v977 = vcvt.s32.f32 %v721
        %v978 = vcvt.s32.f32 %v722
        %v979 = vcvt.s32.f32 %v723
        %v980 = vcvt.s32.f32 %v724
        %v981 = vcvt.s32.f32 %v725
        %v982 = vcvt.s32.f32 %v726
        %v983 = vcvt.s32.f32 %v727
        %v984 = vcvt.s32.f32 %v728
        %v985 = vcvt.s32.f32 %v729
        %v986 = vcvt.s32.f32 %v730
        %v987 = vcvt.s32.f32 %v731
        %v988 = vcvt.s32.f32 %v732
        %v989 = vcvt.s32.f32 %v733
        %v990 = vcvt.s32.f32 %v734
        %v991 = vcvt.s32.f32 %v735
        %v992 = vcvt.s32.f32 %v736
        %v993 = vcvt.s32.f32 %v737
        %v994 = vcvt.s32.f32 %v738
        %v995 = vcvt.s32.f32 %v739
        %v996 = vcvt.s32.f32 %v740
        %v997 = vcvt.s32.f32 %v741
        %v998 = vcvt.s32.f32 %v742
        %v999 = vcvt.s32.f32 %v743
        %v1000 = vcvt.s32.f32 %v744
        %v1001 = vcvt.s32.f32 %v745
        %v1002 = vcvt.s32.f32 %v746
        %v1003 = vcvt.s32.f32 %v747
        %v1004 = vcvt.s32.f32 %v748
        %v1005 = vcvt.s32.f32 %v749
        %v1006 = vcvt.s32.f32 %v750
        %v1007 = vcvt.s32.f32 %v751
        %v1008 = vcvt.s32.f32 %v752
        %v1009 = vcvt.s32.f32 %v753
        %v1010 = vcvt.s32.f32 %v754
        %v1011 = vcvt.s32.f32 %v755
        %v1012 = vcvt.s32.f32 %v756
        %v1013 = vcvt.s32.f32 %v757
        %v1014 = vcvt.s32.f32 %v758
        %v1015 = vcvt.s32.f32 %v759
        %v1016 = vcvt.s32.f32 %v760
        %v1017 = vcvt.s32.f32 %v761
        %v1018 = vcvt.s32.f32 %v762
        %v1019 = vcvt.s32.f32 %v763
        %v1020 = vcvt.s32.f32 %v764
        %v1021 = vcvt.s32.f32 %v765
        %v1022 = vcvt.s32.f32 %v766
        %v1023 = vcvt.s32.f32 %v767
        %v1024 = vcvt.s32.f32 %v768
        %v1025 = vcvt.s32.f32 %v769
        %v1026 = vcvt.s32.f32 %v770
        %v1027 = vcvt.s32.f32 %v771
        %v1028 = vcvt.s32.f32 %v772
        %v1029 = vcvt.s32.f32 %v773
        %v1030 = vcvt.s32.f32 %v774
        %v1031 = vcvt.s32.f32 %v775
        %v1032 = vcvt.s32.f32 %v776
        %v1033 = vcvt.s32.f32 %v777
        %v1034 = vcvt.s32.f32 %v778
        %v1035 = vcvt.s32.f32 %v779
        %v1036 = vcvt.s32.f32 %v780
        %v1037 = vcvt.s32.f32 %v781
        %v1038 = vcvt.s32.f32 %v782
        %v1039 = vcvt.s32.f32 %v783
        %v1040 = vcvt.s32.f32 %v784
        %v1041 = vcvt.s32.f32 %v785
        %v1042 = vcvt.s32.f32 %v786
        %v1043 = vcvt.s32.f32 %v787
        %v1044 = vcvt.s32.f32 %v788
        %v1045 = vcvt.s32.f32 %v789
        %v1046 = vcvt.s32.f32 %v790
        %v1047 = vcvt.s32.f32 %v791
        %v1048 = vcvt.s32.f32 %v792
        %v1049 = vcvt.s32.f32 %v793
        %v1050 = vcvt.s32.f32 %v794
        %v1051 = vcvt.s32.f32 %v795
        %v1052 = vcvt.s32.f32 %v796
        %v1053 = vcvt.s32.f32 %v797
        %v1054 = vcvt.s32.f32 %v798
        %v1055 = vcvt.s32.f32 %v799
        %v1056 = vcvt.s32.f32 %v800
        %v1057 = vcvt.s32.f32 %v801
        %v1058 = vcvt.s32.f32 %v802
        %v1059 = vcvt.s32.f32 %v803
        %v1060 = vcvt.s32.f32 %v804
        %v1061 = vcvt.s32.f32 %v805
        %v1062 = vcvt.s32.f32 %v806
        %v1063 = vcvt.s32.f32 %v807
        %v1064 = vcvt.s32.f32 %v808
        %v1065 = vcvt.s32.f32 %v809
        %v1066 = vcvt.s32.f32 %v810
        %v1067 = vcvt.s32.f32 %v811
        %v1068 = vcvt.s32.f32 %v812
        %v1069 = vcvt.s32.f32 %v813
        %v1070 = vcvt.s32.f32 %v814
        %v1071 = vcvt.s32.f32 %v815
        %v1072 = vcvt.s32.f32 %v816
        %v1073 = vcvt.s32.f32 %v817
        %v1074 = vcvt.s32.f32 %v818
        %v1075 = vcvt.s32.f32 %v819
        %v1076 = vcvt.s32.f32 %v820
        %v1077 = vcvt.s32.f32 %v821
        %v1078 = vcvt.s32.f32 %v822
        %v1079 = vcvt.s32.f32 %v823
        %v1080 = vcvt.s32.f32 %v824
        %v1081 = vcvt.s32.f32 %v825
        %v1082 = vcvt.s32.f32 %v826
        %v1083 = vcvt.s32.f32 %v827
        %v1084 = vcvt.s32.f32 %v828
        %v1085 = vcvt.s32.f32 %v829
        %v1086 = vcvt.s32.f32 %v830
        %v1087 = vcvt.s32.f32 %v831
        %v1088 = vcvt.s32.f32 %v832
        %v1089 = vcvt.s32.f32 %v833
        %v1090 = vcvt.s32.f32 %v834
        %v1091 = vcvt.s32.f32 %v835
        %v1092 = vcvt.s32.f32 %v836
        %v1093 = vcvt.s32.f32 %v837
        %v1094 = vcvt.s32.f32 %v838
        %v1095 = vcvt.s32.f32 %v839
        %v1096 = vcvt.s32.f32 %v840
        %v1097 = vcvt.s32.f32 %v841
        %v1098 = vcvt.s32.f32 %v842
        %v1099 = vcvt.s32.f32 %v843
        %v1100 = vcvt.s32.f32 %v844
        %v1101 = vcvt.s32.f32 %v845
        %v1102 = vcvt.s32.f32 %v846
        %v1103 = vcvt.s32.f32 %v847
        %v1104 = vcvt.s32.f32 %v848
        %v1105 = vcvt.s32.f32 %v849
        %v1106 = vcvt.s32.f32 %v850
        %v1107 = vcvt.s32.f32 %v851
        %v1108 = vcvt.s32.f32 %v852
        %v1109 = vcvt.s32.f32 %v853
        %v1110 = vcvt.s32.f32 %v854
        %v1111 = vcvt.s32.f32 %v855
        %v1112 = vcvt.s32.f32 %v856
        %v1113 = vcvt.s32.f32 %v857
        %v1114 = vcvt.s32.f32 %v858
        %v1115 = vcvt.s32.f32 %v859
        %v1116 = vcvt.s32.f32 %v860
        %v1117 = vcvt.s32.f32 %v861
        %v1118 = vcvt.s32.f32 %v862
        %v1119 = vcvt.s32.f32 %v863
        %v1120 = vcvt.s32.f32 %v864
        %v1121 = vcvt.s32.f32 %v865
        %v1122 = vcvt.s32.f32 %v866
        %v1123 = vcvt.s32.f32 %v867
        %v1124 = vcvt.s32.f32 %v868
        %v1125 = vcvt.s32.f32 %v869
        %v1126 = vcvt.s32.f32 %v870
        %v1127 = vcvt.s32.f32 %v871
        %v1128 = vcvt.s32.f32 %v872
        %v1129 = vcvt.s32.f32 %v873
        %v1130 = vcvt.s32.f32 %v874
        %v1131 = vcvt.s32.f32 %v875
        %v1132 = vcvt.s32.f32 %v876
        %v1133 = vcvt.s32.f32 %v877
        %v1134 = vpack.c.bf16 %v879, %v878
        %v1135 = vpack.c.bf16 %v881, %v880
        %v1136 = vpack.c.bf16 %v883, %v882
        %v1137 = vpack.c.bf16 %v885, %v884
        %v1138 = vpack.c.bf16 %v887, %v886
        %v1139 = vpack.c.bf16 %v889, %v888
        %v1140 = vpack.c.bf16 %v891, %v890
        %v1141 = vpack.c.bf16 %v893, %v892
        %v1142 = vpack.c.bf16 %v895, %v894
        %v1143 = vpack.c.bf16 %v897, %v896
        %v1144 = vpack.c.bf16 %v899, %v898
        %v1145 = vpack.c.bf16 %v901, %v900
        %v1146 = vpack.c.bf16 %v903, %v902
        %v1147 = vpack.c.bf16 %v905, %v904
        %v1148 = vpack.c.bf16 %v907, %v906
        %v1149 = vpack.c.bf16 %v909, %v908
        %v1150 = vpack.c.bf16 %v911, %v910
        %v1151 = vpack.c.bf16 %v913, %v912
        %v1152 = vpack.c.bf16 %v915, %v914
        %v1153 = vpack.c.bf16 %v917, %v916
        %v1154 = vpack.c.bf16 %v919, %v918
        %v1155 = vpack.c.bf16 %v921, %v920
        %v1156 = vpack.c.bf16 %v923, %v922
        %v1157 = vpack.c.bf16 %v925, %v924
        %v1158 = vpack.c.bf16 %v927, %v926
        %v1159 = vpack.c.bf16 %v929, %v928
        %v1160 = vpack.c.bf16 %v931, %v930
        %v1161 = vpack.c.bf16 %v933, %v932
        %v1162 = vpack.c.bf16 %v935, %v934
        %v1163 = vpack.c.bf16 %v937, %v936
        %v1164 = vpack.c.bf16 %v939, %v938
        %v1165 = vpack.c.bf16 %v941, %v940
        %v1166 = vpack.c.bf16 %v943, %v942
        %v1167 = vpack.c.bf16 %v945, %v944
        %v1168 = vpack.c.bf16 %v947, %v946
        %v1169 = vpack.c.bf16 %v949, %v948
        %v1170 = vpack.c.bf16 %v951, %v950
        %v1171 = vpack.c.bf16 %v953, %v952
        %v1172 = vpack.c.bf16 %v955, %v954
        %v1173 = vpack.c.bf16 %v957, %v956
        %v1174 = vpack.c.bf16 %v959, %v958
        %v1175 = vpack.c.bf16 %v961, %v960
        %v1176 = vpack.c.bf16 %v963, %v962
        %v1177 = vpack.c.bf16 %v965, %v964
        %v1178 = vpack.c.bf16 %v967, %v966
        %v1179 = vpack.c.bf16 %v969, %v968
        %v1180 = vpack.c.bf16 %v971, %v970
        %v1181 = vpack.c.bf16 %v973, %v972
        %v1182 = vpack.c.bf16 %v975, %v974
        %v1183 = vpack.c.bf16 %v977, %v976
        %v1184 = vpack.c.bf16 %v979, %v978
        %v1185 = vpack.c.bf16 %v981, %v980
        %v1186 = vpack.c.bf16 %v983, %v982
        %v1187 = vpack.c.bf16 %v985, %v984
        %v1188 = vpack.c.bf16 %v987, %v986
        %v1189 = vpack.c.bf16 %v989, %v988
        %v1190 = vpack.c.bf16 %v991, %v990
        %v1191 = vpack.c.bf16 %v993, %v992
        %v1192 = vpack.c.bf16 %v995, %v994
        %v1193 = vpack.c.bf16 %v997, %v996
        %v1194 = vpack.c.bf16 %v999, %v998
        %v1195 = vpack.c.bf16 %v1001, %v1000
        %v1196 = vpack.c.bf16 %v1003, %v1002
        %v1197 = vpack.c.bf16 %v1005, %v1004
        %v1198 = vpack.c.bf16 %v1007, %v1006
        %v1199 = vpack.c.bf16 %v1009, %v1008
        %v1200 = vpack.c.bf16 %v1011, %v1010
        %v1201 = vpack.c.bf16 %v1013, %v1012
        %v1202 = vpack.c.bf16 %v1015, %v1014
        %v1203 = vpack.c.bf16 %v1017, %v1016
        %v1204 = vpack.c.bf16 %v1019, %v1018
        %v1205 = vpack.c.bf16 %v1021, %v1020
        %v1206 = vpack.c.bf16 %v1023, %v1022
        %v1207 = vpack.c.bf16 %v1025, %v1024
        %v1208 = vpack.c.bf16 %v1027, %v1026
        %v1209 = vpack.c.bf16 %v1029, %v1028
        %v1210 = vpack.c.bf16 %v1031, %v1030
        %v1211 = vpack.c.bf16 %v1033, %v1032
        %v1212 = vpack.c.bf16 %v1035, %v1034
        %v1213 = vpack.c.bf16 %v1037, %v1036
        %v1214 = vpack.c.bf16 %v1039, %v1038
        %v1215 = vpack.c.bf16 %v1041, %v1040
        %v1216 = vpack.c.bf16 %v1043, %v1042
        %v1217 = vpack.c.bf16 %v1045, %v1044
        %v1218 = vpack.c.bf16 %v1047, %v1046
        %v1219 = vpack.c.bf16 %v1049, %v1048
        %v1220 = vpack.c.bf16 %v1051, %v1050
        %v1221 = vpack.c.bf16 %v1053, %v1052
        %v1222 = vpack.c.bf16 %v1055, %v1054
        %v1223 = vpack.c.bf16 %v1057, %v1056
        %v1224 = vpack.c.bf16 %v1059, %v1058
        %v1225 = vpack.c.bf16 %v1061, %v1060
        %v1226 = vpack.c.bf16 %v1063, %v1062
        %v1227 = vpack.c.bf16 %v1065, %v1064
        %v1228 = vpack.c.bf16 %v1067, %v1066
        %v1229 = vpack.c.bf16 %v1069, %v1068
        %v1230 = vpack.c.bf16 %v1071, %v1070
        %v1231 = vpack.c.bf16 %v1073, %v1072
        %v1232 = vpack.c.bf16 %v1075, %v1074
        %v1233 = vpack.c.bf16 %v1077, %v1076
        %v1234 = vpack.c.bf16 %v1079, %v1078
        %v1235 = vpack.c.bf16 %v1081, %v1080
        %v1236 = vpack.c.bf16 %v1083, %v1082
        %v1237 = vpack.c.bf16 %v1085, %v1084
        %v1238 = vpack.c.bf16 %v1087, %v1086
        %v1239 = vpack.c.bf16 %v1089, %v1088
        %v1240 = vpack.c.bf16 %v1091, %v1090
        %v1241 = vpack.c.bf16 %v1093, %v1092
        %v1242 = vpack.c.bf16 %v1095, %v1094
        %v1243 = vpack.c.bf16 %v1097, %v1096
        %v1244 = vpack.c.bf16 %v1099, %v1098
        %v1245 = vpack.c.bf16 %v1101, %v1100
        %v1246 = vpack.c.bf16 %v1103, %v1102
        %v1247 = vpack.c.bf16 %v1105, %v1104
        %v1248 = vpack.c.bf16 %v1107, %v1106
        %v1249 = vpack.c.bf16 %v1109, %v1108
        %v1250 = vpack.c.bf16 %v1111, %v1110
        %v1251 = vpack.c.bf16 %v1113, %v1112
        %v1252 = vpack.c.bf16 %v1115, %v1114
        %v1253 = vpack.c.bf16 %v1117, %v1116
        %v1254 = vpack.c.bf16 %v1119, %v1118
        %v1255 = vpack.c.bf16 %v1121, %v1120
        %v1256 = vpack.c.bf16 %v1123, %v1122
        %v1257 = vpack.c.bf16 %v1125, %v1124
        %v1258 = vpack.c.bf16 %v1127, %v1126
        %v1259 = vpack.c.bf16 %v1129, %v1128
        %v1260 = vpack.c.bf16 %v1131, %v1130
        %v1261 = vpack.c.bf16 %v1133, %v1132
        %1262 = vst [vmem:[#allocation3] sm:$0xff] %v1134
        %1263 = vst [vmem:[#allocation3 + $0x8] sm:$0xff] %v1135
        %1264 = vst [vmem:[#allocation3 + $0x10] sm:$0xff] %v1136
        %1265 = vst [vmem:[#allocation3 + $0x18] sm:$0xff] %v1137
        %1266 = vst [vmem:[#allocation3 + $0x20] sm:$0xff] %v1138
        %1267 = vst [vmem:[#allocation3 + $0x28] sm:$0xff] %v1139
        %1268 = vst [vmem:[#allocation3 + $0x30] sm:$0xff] %v1140
        %1269 = vst [vmem:[#allocation3 + $0x38] sm:$0xff] %v1141
        %1270 = vst [vmem:[#allocation3 + $0x40] sm:$0xff] %v1142
        %1271 = vst [vmem:[#allocation3 + $0x48] sm:$0xff] %v1143
        %1272 = vst [vmem:[#allocation3 + $0x50] sm:$0xff] %v1144
        %1273 = vst [vmem:[#allocation3 + $0x58] sm:$0xff] %v1145
        %1274 = vst [vmem:[#allocation3 + $0x60] sm:$0xff] %v1146
        %1275 = vst [vmem:[#allocation3 + $0x68] sm:$0xff] %v1147
        %1276 = vst [vmem:[#allocation3 + $0x70] sm:$0xff] %v1148
        %1277 = vst [vmem:[#allocation3 + $0x78] sm:$0xff] %v1149
        %1278 = vst [vmem:[#allocation3 + $0x80] sm:$0xff] %v1150
        %1279 = vst [vmem:[#allocation3 + $0x88] sm:$0xff] %v1151
        %1280 = vst [vmem:[#allocation3 + $0x90] sm:$0xff] %v1152
        %1281 = vst [vmem:[#allocation3 + $0x98] sm:$0xff] %v1153
        %1282 = vst [vmem:[#allocation3 + $0xa0] sm:$0xff] %v1154
        %1283 = vst [vmem:[#allocation3 + $0xa8] sm:$0xff] %v1155
        %1284 = vst [vmem:[#allocation3 + $0xb0] sm:$0xff] %v1156
        %1285 = vst [vmem:[#allocation3 + $0xb8] sm:$0xff] %v1157
        %1286 = vst [vmem:[#allocation3 + $0xc0] sm:$0xff] %v1158
        %1287 = vst [vmem:[#allocation3 + $0xc8] sm:$0xff] %v1159
        %1288 = vst [vmem:[#allocation3 + $0xd0] sm:$0xff] %v1160
        %1289 = vst [vmem:[#allocation3 + $0xd8] sm:$0xff] %v1161
        %1290 = vst [vmem:[#allocation3 + $0xe0] sm:$0xff] %v1162
        %1291 = vst [vmem:[#allocation3 + $0xe8] sm:$0xff] %v1163
        %1292 = vst [vmem:[#allocation3 + $0xf0] sm:$0xff] %v1164
        %1293 = vst [vmem:[#allocation3 + $0xf8] sm:$0xff] %v1165
        %1294 = vst [vmem:[#allocation3 + $0x100] sm:$0xff] %v1166
        %1295 = vst [vmem:[#allocation3 + $0x108] sm:$0xff] %v1167
        %1296 = vst [vmem:[#allocation3 + $0x110] sm:$0xff] %v1168
        %1297 = vst [vmem:[#allocation3 + $0x118] sm:$0xff] %v1169
        %1298 = vst [vmem:[#allocation3 + $0x120] sm:$0xff] %v1170
        %1299 = vst [vmem:[#allocation3 + $0x128] sm:$0xff] %v1171
        %1300 = vst [vmem:[#allocation3 + $0x130] sm:$0xff] %v1172
        %1301 = vst [vmem:[#allocation3 + $0x138] sm:$0xff] %v1173
        %1302 = vst [vmem:[#allocation3 + $0x140] sm:$0xff] %v1174
        %1303 = vst [vmem:[#allocation3 + $0x148] sm:$0xff] %v1175
        %1304 = vst [vmem:[#allocation3 + $0x150] sm:$0xff] %v1176
        %1305 = vst [vmem:[#allocation3 + $0x158] sm:$0xff] %v1177
        %1306 = vst [vmem:[#allocation3 + $0x160] sm:$0xff] %v1178
        %1307 = vst [vmem:[#allocation3 + $0x168] sm:$0xff] %v1179
        %1308 = vst [vmem:[#allocation3 + $0x170] sm:$0xff] %v1180
        %1309 = vst [vmem:[#allocation3 + $0x178] sm:$0xff] %v1181
        %1310 = vst [vmem:[#allocation3 + $0x180] sm:$0xff] %v1182
        %1311 = vst [vmem:[#allocation3 + $0x188] sm:$0xff] %v1183
        %1312 = vst [vmem:[#allocation3 + $0x190] sm:$0xff] %v1184
        %1313 = vst [vmem:[#allocation3 + $0x198] sm:$0xff] %v1185
        %1314 = vst [vmem:[#allocation3 + $0x1a0] sm:$0xff] %v1186
        %1315 = vst [vmem:[#allocation3 + $0x1a8] sm:$0xff] %v1187
        %1316 = vst [vmem:[#allocation3 + $0x1b0] sm:$0xff] %v1188
        %1317 = vst [vmem:[#allocation3 + $0x1b8] sm:$0xff] %v1189
        %1318 = vst [vmem:[#allocation3 + $0x1c0] sm:$0xff] %v1190
        %1319 = vst [vmem:[#allocation3 + $0x1c8] sm:$0xff] %v1191
        %1320 = vst [vmem:[#allocation3 + $0x1d0] sm:$0xff] %v1192
        %1321 = vst [vmem:[#allocation3 + $0x1d8] sm:$0xff] %v1193
        %1322 = vst [vmem:[#allocation3 + $0x1e0] sm:$0xff] %v1194
        %1323 = vst [vmem:[#allocation3 + $0x1e8] sm:$0xff] %v1195
        %1324 = vst [vmem:[#allocation3 + $0x1f0] sm:$0xff] %v1196
        %1325 = vst [vmem:[#allocation3 + $0x1f8] sm:$0xff] %v1197
        %1326 = vst [vmem:[#allocation3 + $0x200] sm:$0xff] %v1198
        %1327 = vst [vmem:[#allocation3 + $0x208] sm:$0xff] %v1199
        %1328 = vst [vmem:[#allocation3 + $0x210] sm:$0xff] %v1200
        %1329 = vst [vmem:[#allocation3 + $0x218] sm:$0xff] %v1201
        %1330 = vst [vmem:[#allocation3 + $0x220] sm:$0xff] %v1202
        %1331 = vst [vmem:[#allocation3 + $0x228] sm:$0xff] %v1203
        %1332 = vst [vmem:[#allocation3 + $0x230] sm:$0xff] %v1204
        %1333 = vst [vmem:[#allocation3 + $0x238] sm:$0xff] %v1205
        %1334 = vst [vmem:[#allocation3 + $0x240] sm:$0xff] %v1206
        %1335 = vst [vmem:[#allocation3 + $0x248] sm:$0xff] %v1207
        %1336 = vst [vmem:[#allocation3 + $0x250] sm:$0xff] %v1208
        %1337 = vst [vmem:[#allocation3 + $0x258] sm:$0xff] %v1209
        %1338 = vst [vmem:[#allocation3 + $0x260] sm:$0xff] %v1210
        %1339 = vst [vmem:[#allocation3 + $0x268] sm:$0xff] %v1211
        %1340 = vst [vmem:[#allocation3 + $0x270] sm:$0xff] %v1212
        %1341 = vst [vmem:[#allocation3 + $0x278] sm:$0xff] %v1213
        %1342 = vst [vmem:[#allocation3 + $0x280] sm:$0xff] %v1214
        %1343 = vst [vmem:[#allocation3 + $0x288] sm:$0xff] %v1215
        %1344 = vst [vmem:[#allocation3 + $0x290] sm:$0xff] %v1216
        %1345 = vst [vmem:[#allocation3 + $0x298] sm:$0xff] %v1217
        %1346 = vst [vmem:[#allocation3 + $0x2a0] sm:$0xff] %v1218
        %1347 = vst [vmem:[#allocation3 + $0x2a8] sm:$0xff] %v1219
        %1348 = vst [vmem:[#allocation3 + $0x2b0] sm:$0xff] %v1220
        %1349 = vst [vmem:[#allocation3 + $0x2b8] sm:$0xff] %v1221
        %1350 = vst [vmem:[#allocation3 + $0x2c0] sm:$0xff] %v1222
        %1351 = vst [vmem:[#allocation3 + $0x2c8] sm:$0xff] %v1223
        %1352 = vst [vmem:[#allocation3 + $0x2d0] sm:$0xff] %v1224
        %1353 = vst [vmem:[#allocation3 + $0x2d8] sm:$0xff] %v1225
        %1354 = vst [vmem:[#allocation3 + $0x2e0] sm:$0xff] %v1226
        %1355 = vst [vmem:[#allocation3 + $0x2e8] sm:$0xff] %v1227
        %1356 = vst [vmem:[#allocation3 + $0x2f0] sm:$0xff] %v1228
        %1357 = vst [vmem:[#allocation3 + $0x2f8] sm:$0xff] %v1229
        %1358 = vst [vmem:[#allocation3 + $0x300] sm:$0xff] %v1230
        %1359 = vst [vmem:[#allocation3 + $0x308] sm:$0xff] %v1231
        %1360 = vst [vmem:[#allocation3 + $0x310] sm:$0xff] %v1232
        %1361 = vst [vmem:[#allocation3 + $0x318] sm:$0xff] %v1233
        %1362 = vst [vmem:[#allocation3 + $0x320] sm:$0xff] %v1234
        %1363 = vst [vmem:[#allocation3 + $0x328] sm:$0xff] %v1235
        %1364 = vst [vmem:[#allocation3 + $0x330] sm:$0xff] %v1236
        %1365 = vst [vmem:[#allocation3 + $0x338] sm:$0xff] %v1237
        %1366 = vst [vmem:[#allocation3 + $0x340] sm:$0xff] %v1238
        %1367 = vst [vmem:[#allocation3 + $0x348] sm:$0xff] %v1239
        %1368 = vst [vmem:[#allocation3 + $0x350] sm:$0xff] %v1240
        %1369 = vst [vmem:[#allocation3 + $0x358] sm:$0xff] %v1241
        %1370 = vst [vmem:[#allocation3 + $0x360] sm:$0xff] %v1242
        %1371 = vst [vmem:[#allocation3 + $0x368] sm:$0xff] %v1243
        %1372 = vst [vmem:[#allocation3 + $0x370] sm:$0xff] %v1244
        %1373 = vst [vmem:[#allocation3 + $0x378] sm:$0xff] %v1245
        %1374 = vst [vmem:[#allocation3 + $0x380] sm:$0xff] %v1246
        %1375 = vst [vmem:[#allocation3 + $0x388] sm:$0xff] %v1247
        %1376 = vst [vmem:[#allocation3 + $0x390] sm:$0xff] %v1248
        %1377 = vst [vmem:[#allocation3 + $0x398] sm:$0xff] %v1249
        %1378 = vst [vmem:[#allocation3 + $0x3a0] sm:$0xff] %v1250
        %1379 = vst [vmem:[#allocation3 + $0x3a8] sm:$0xff] %v1251
        %1380 = vst [vmem:[#allocation3 + $0x3b0] sm:$0xff] %v1252
        %1381 = vst [vmem:[#allocation3 + $0x3b8] sm:$0xff] %v1253
        %1382 = vst [vmem:[#allocation3 + $0x3c0] sm:$0xff] %v1254
        %1383 = vst [vmem:[#allocation3 + $0x3c8] sm:$0xff] %v1255
        %1384 = vst [vmem:[#allocation3 + $0x3d0] sm:$0xff] %v1256
        %1385 = vst [vmem:[#allocation3 + $0x3d8] sm:$0xff] %v1257
        %1386 = vst [vmem:[#allocation3 + $0x3e0] sm:$0xff] %v1258
        %1387 = vst [vmem:[#allocation3 + $0x3e8] sm:$0xff] %v1259
        %1388 = vst [vmem:[#allocation3 + $0x3f0] sm:$0xff] %v1260
        %1389 = vst [vmem:[#allocation3 + $0x3f8] sm:$0xff] %v1261
      $region36: #{lovasz_bce_loss2.3} parent=31 // pred_fallthru
        _
      %v1390 = vld [vmem:[%s278] sm:$0xff]
      %v1391 = vld [vmem:[%s278 + $0x8] sm:$0xff]
      %v1392 = vunpack.c.l.bf16 %v1390
      %v1393 = vunpack.c.h.bf16 %v1390
      %v1394 = vunpack.c.l.bf16 %v1391
      %v1395 = vunpack.c.h.bf16 %v1391
      %v1396 = vld [vmem:[%s268] sm:$0xff]
      %v1397 = vld [vmem:[%s268 + $0x8] sm:$0xff]
      %v1398 = vld [vmem:[%s268 + $0x10] sm:$0xff]
      %v1399 = vld [vmem:[%s268 + $0x18] sm:$0xff]
      %v1400 = vsub.f32 0.0, %v1396
      %v1401 = vsub.f32 0.0, %v1397
      %v1402 = vsub.f32 0.0, %v1398
      %v1403 = vsub.f32 0.0, %v1399
      %v1404 = vld [vmem:[%s259] sm:$0xff]
      %v1405 = vsub.f32 2304.0, %v1404
      %v1406 = vld [vmem:[#allocation3] sm:$0xff]
      %v1407 = vld [vmem:[#allocation3 + $0x8] sm:$0xff]
      %v1408 = vld [vmem:[#allocation3 + $0x10] sm:$0xff]
      %v1409 = vld [vmem:[#allocation3 + $0x18] sm:$0xff]
      %v1410 = vld [vmem:[#allocation3 + $0x20] sm:$0xff]
      %v1411 = vld [vmem:[#allocation3 + $0x28] sm:$0xff]
      %v1412 = vld [vmem:[#allocation3 + $0x30] sm:$0xff]
      %v1413 = vld [vmem:[#allocation3 + $0x38] sm:$0xff]
      %v1414 = vld [vmem:[#allocation3 + $0x40] sm:$0xff]
      %v1415 = vld [vmem:[#allocation3 + $0x48] sm:$0xff]
      %v1416 = vld [vmem:[#allocation3 + $0x50] sm:$0xff]
      %v1417 = vld [vmem:[#allocation3 + $0x58] sm:$0xff]
      %v1418 = vld [vmem:[#allocation3 + $0x60] sm:$0xff]
      %v1419 = vld [vmem:[#allocation3 + $0x68] sm:$0xff]
      %v1420 = vld [vmem:[#allocation3 + $0x70] sm:$0xff]
      %v1421 = vld [vmem:[#allocation3 + $0x78] sm:$0xff]
      %v1422 = vld [vmem:[#allocation3 + $0x80] sm:$0xff]
      %v1423 = vld [vmem:[#allocation3 + $0x88] sm:$0xff]
      %v1424 = vld [vmem:[#allocation3 + $0x90] sm:$0xff]
      %v1425 = vld [vmem:[#allocation3 + $0x98] sm:$0xff]
      %v1426 = vld [vmem:[#allocation3 + $0xa0] sm:$0xff]
      %v1427 = vld [vmem:[#allocation3 + $0xa8] sm:$0xff]
      %v1428 = vld [vmem:[#allocation3 + $0xb0] sm:$0xff]
      %v1429 = vld [vmem:[#allocation3 + $0xb8] sm:$0xff]
      %v1430 = vld [vmem:[#allocation3 + $0xc0] sm:$0xff]
      %v1431 = vld [vmem:[#allocation3 + $0xc8] sm:$0xff]
      %v1432 = vld [vmem:[#allocation3 + $0xd0] sm:$0xff]
      %v1433 = vld [vmem:[#allocation3 + $0xd8] sm:$0xff]
      %v1434 = vld [vmem:[#allocation3 + $0xe0] sm:$0xff]
      %v1435 = vld [vmem:[#allocation3 + $0xe8] sm:$0xff]
      %v1436 = vld [vmem:[#allocation3 + $0xf0] sm:$0xff]
      %v1437 = vld [vmem:[#allocation3 + $0xf8] sm:$0xff]
      %v1438 = vld [vmem:[#allocation3 + $0x100] sm:$0xff]
      %v1439 = vld [vmem:[#allocation3 + $0x108] sm:$0xff]
      %v1440 = vld [vmem:[#allocation3 + $0x110] sm:$0xff]
      %v1441 = vld [vmem:[#allocation3 + $0x118] sm:$0xff]
      %v1442 = vld [vmem:[#allocation3 + $0x120] sm:$0xff]
      %v1443 = vld [vmem:[#allocation3 + $0x128] sm:$0xff]
      %v1444 = vld [vmem:[#allocation3 + $0x130] sm:$0xff]
      %v1445 = vld [vmem:[#allocation3 + $0x138] sm:$0xff]
      %v1446 = vld [vmem:[#allocation3 + $0x140] sm:$0xff]
      %v1447 = vld [vmem:[#allocation3 + $0x148] sm:$0xff]
      %v1448 = vld [vmem:[#allocation3 + $0x150] sm:$0xff]
      %v1449 = vld [vmem:[#allocation3 + $0x158] sm:$0xff]
      %v1450 = vld [vmem:[#allocation3 + $0x160] sm:$0xff]
      %v1451 = vld [vmem:[#allocation3 + $0x168] sm:$0xff]
      %v1452 = vld [vmem:[#allocation3 + $0x170] sm:$0xff]
      %v1453 = vld [vmem:[#allocation3 + $0x178] sm:$0xff]
      %v1454 = vld [vmem:[#allocation3 + $0x180] sm:$0xff]
      %v1455 = vld [vmem:[#allocation3 + $0x188] sm:$0xff]
      %v1456 = vld [vmem:[#allocation3 + $0x190] sm:$0xff]
      %v1457 = vld [vmem:[#allocation3 + $0x198] sm:$0xff]
      %v1458 = vld [vmem:[#allocation3 + $0x1a0] sm:$0xff]
      %v1459 = vld [vmem:[#allocation3 + $0x1a8] sm:$0xff]
      %v1460 = vld [vmem:[#allocation3 + $0x1b0] sm:$0xff]
      %v1461 = vld [vmem:[#allocation3 + $0x1b8] sm:$0xff]
      %v1462 = vld [vmem:[#allocation3 + $0x1c0] sm:$0xff]
      %v1463 = vld [vmem:[#allocation3 + $0x1c8] sm:$0xff]
      %v1464 = vld [vmem:[#allocation3 + $0x1d0] sm:$0xff]
      %v1465 = vld [vmem:[#allocation3 + $0x1d8] sm:$0xff]
      %v1466 = vld [vmem:[#allocation3 + $0x1e0] sm:$0xff]
      %v1467 = vld [vmem:[#allocation3 + $0x1e8] sm:$0xff]
      %v1468 = vld [vmem:[#allocation3 + $0x1f0] sm:$0xff]
      %v1469 = vld [vmem:[#allocation3 + $0x1f8] sm:$0xff]
      %v1470 = vld [vmem:[#allocation3 + $0x200] sm:$0xff]
      %v1471 = vld [vmem:[#allocation3 + $0x208] sm:$0xff]
      %v1472 = vld [vmem:[#allocation3 + $0x210] sm:$0xff]
      %v1473 = vld [vmem:[#allocation3 + $0x218] sm:$0xff]
      %v1474 = vld [vmem:[#allocation3 + $0x220] sm:$0xff]
      %v1475 = vld [vmem:[#allocation3 + $0x228] sm:$0xff]
      %v1476 = vld [vmem:[#allocation3 + $0x230] sm:$0xff]
      %v1477 = vld [vmem:[#allocation3 + $0x238] sm:$0xff]
      %v1478 = vld [vmem:[#allocation3 + $0x240] sm:$0xff]
      %v1479 = vld [vmem:[#allocation3 + $0x248] sm:$0xff]
      %v1480 = vld [vmem:[#allocation3 + $0x250] sm:$0xff]
      %v1481 = vld [vmem:[#allocation3 + $0x258] sm:$0xff]
      %v1482 = vld [vmem:[#allocation3 + $0x260] sm:$0xff]
      %v1483 = vld [vmem:[#allocation3 + $0x268] sm:$0xff]
      %v1484 = vld [vmem:[#allocation3 + $0x270] sm:$0xff]
      %v1485 = vld [vmem:[#allocation3 + $0x278] sm:$0xff]
      %v1486 = vld [vmem:[#allocation3 + $0x280] sm:$0xff]
      %v1487 = vld [vmem:[#allocation3 + $0x288] sm:$0xff]
      %v1488 = vld [vmem:[#allocation3 + $0x290] sm:$0xff]
      %v1489 = vld [vmem:[#allocation3 + $0x298] sm:$0xff]
      %v1490 = vld [vmem:[#allocation3 + $0x2a0] sm:$0xff]
      %v1491 = vld [vmem:[#allocation3 + $0x2a8] sm:$0xff]
      %v1492 = vld [vmem:[#allocation3 + $0x2b0] sm:$0xff]
      %v1493 = vld [vmem:[#allocation3 + $0x2b8] sm:$0xff]
      %v1494 = vld [vmem:[#allocation3 + $0x2c0] sm:$0xff]
      %v1495 = vld [vmem:[#allocation3 + $0x2c8] sm:$0xff]
      %v1496 = vld [vmem:[#allocation3 + $0x2d0] sm:$0xff]
      %v1497 = vld [vmem:[#allocation3 + $0x2d8] sm:$0xff]
      %v1498 = vld [vmem:[#allocation3 + $0x2e0] sm:$0xff]
      %v1499 = vld [vmem:[#allocation3 + $0x2e8] sm:$0xff]
      %v1500 = vld [vmem:[#allocation3 + $0x2f0] sm:$0xff]
      %v1501 = vld [vmem:[#allocation3 + $0x2f8] sm:$0xff]
      %v1502 = vld [vmem:[#allocation3 + $0x300] sm:$0xff]
      %v1503 = vld [vmem:[#allocation3 + $0x308] sm:$0xff]
      %v1504 = vld [vmem:[#allocation3 + $0x310] sm:$0xff]
      %v1505 = vld [vmem:[#allocation3 + $0x318] sm:$0xff]
      %v1506 = vld [vmem:[#allocation3 + $0x320] sm:$0xff]
      %v1507 = vld [vmem:[#allocation3 + $0x328] sm:$0xff]
      %v1508 = vld [vmem:[#allocation3 + $0x330] sm:$0xff]
      %v1509 = vld [vmem:[#allocation3 + $0x338] sm:$0xff]
      %v1510 = vld [vmem:[#allocation3 + $0x340] sm:$0xff]
      %v1511 = vld [vmem:[#allocation3 + $0x348] sm:$0xff]
      %v1512 = vld [vmem:[#allocation3 + $0x350] sm:$0xff]
      %v1513 = vld [vmem:[#allocation3 + $0x358] sm:$0xff]
      %v1514 = vld [vmem:[#allocation3 + $0x360] sm:$0xff]
      %v1515 = vld [vmem:[#allocation3 + $0x368] sm:$0xff]
      %v1516 = vld [vmem:[#allocation3 + $0x370] sm:$0xff]
      %v1517 = vld [vmem:[#allocation3 + $0x378] sm:$0xff]
      %v1518 = vld [vmem:[#allocation3 + $0x380] sm:$0xff]
      %v1519 = vld [vmem:[#allocation3 + $0x388] sm:$0xff]
      %v1520 = vld [vmem:[#allocation3 + $0x390] sm:$0xff]
      %v1521 = vld [vmem:[#allocation3 + $0x398] sm:$0xff]
      %v1522 = vld [vmem:[#allocation3 + $0x3a0] sm:$0xff]
      %v1523 = vld [vmem:[#allocation3 + $0x3a8] sm:$0xff]
      %v1524 = vld [vmem:[#allocation3 + $0x3b0] sm:$0xff]
      %v1525 = vld [vmem:[#allocation3 + $0x3b8] sm:$0xff]
      %v1526 = vld [vmem:[#allocation3 + $0x3c0] sm:$0xff]
      %v1527 = vld [vmem:[#allocation3 + $0x3c8] sm:$0xff]
      %v1528 = vld [vmem:[#allocation3 + $0x3d0] sm:$0xff]
      %v1529 = vld [vmem:[#allocation3 + $0x3d8] sm:$0xff]
      %v1530 = vld [vmem:[#allocation3 + $0x3e0] sm:$0xff]
      %v1531 = vld [vmem:[#allocation3 + $0x3e8] sm:$0xff]
      %v1532 = vld [vmem:[#allocation3 + $0x3f0] sm:$0xff]
      %v1533 = vld [vmem:[#allocation3 + $0x3f8] sm:$0xff]
      %v1534 = vld [vmem:[#allocation2] sm:$0xff]
      %1536 = vset.pattern.permute.xlu0 0
      %1537 = vperm.xlu0 %1536, %v1534
      %v1538 = vpop.permute.xlu0 %1537
      %v1542 = vunpack.c.l.b16 %v1390
      %v1543 = vunpack.c.h.b16 %v1390
      %v1544 = vunpack.c.l.b16 %v1391
      %v1545 = vunpack.c.h.b16 %v1391
      %v1546 = vpack.c.b16 %v1542, %v1542
      %v1547 = vpack.c.b16 %v1543, %v1543
      %v1548 = vpack.c.b16 %v1544, %v1544
      %v1549 = vpack.c.b16 %v1545, %v1545
      %v1682 = vunpack.c.l.b16 %v1406
      %v1683 = vunpack.c.h.b16 %v1406
      %v1684 = vunpack.c.l.b16 %v1407
      %v1685 = vunpack.c.h.b16 %v1407
      %v1686 = vunpack.c.l.b16 %v1408
      %v1687 = vunpack.c.h.b16 %v1408
      %v1688 = vunpack.c.l.b16 %v1409
      %v1689 = vunpack.c.h.b16 %v1409
      %v1690 = vunpack.c.l.b16 %v1410
      %v1691 = vunpack.c.h.b16 %v1410
      %v1692 = vunpack.c.l.b16 %v1411
      %v1693 = vunpack.c.h.b16 %v1411
      %v1694 = vunpack.c.l.b16 %v1412
      %v1695 = vunpack.c.h.b16 %v1412
      %v1696 = vunpack.c.l.b16 %v1413
      %v1697 = vunpack.c.h.b16 %v1413
      %v1698 = vunpack.c.l.b16 %v1414
      %v1699 = vunpack.c.h.b16 %v1414
      %v1700 = vunpack.c.l.b16 %v1415
      %v1701 = vunpack.c.h.b16 %v1415
      %v1702 = vunpack.c.l.b16 %v1416
      %v1703 = vunpack.c.h.b16 %v1416
      %v1704 = vunpack.c.l.b16 %v1417
      %v1705 = vunpack.c.h.b16 %v1417
      %v1706 = vunpack.c.l.b16 %v1418
      %v1707 = vunpack.c.h.b16 %v1418
      %v1708 = vunpack.c.l.b16 %v1419
      %v1709 = vunpack.c.h.b16 %v1419
      %v1710 = vunpack.c.l.b16 %v1420
      %v1711 = vunpack.c.h.b16 %v1420
      %v1712 = vunpack.c.l.b16 %v1421
      %v1713 = vunpack.c.h.b16 %v1421
      %v1714 = vunpack.c.l.b16 %v1422
      %v1715 = vunpack.c.h.b16 %v1422
      %v1716 = vunpack.c.l.b16 %v1423
      %v1717 = vunpack.c.h.b16 %v1423
      %v1718 = vunpack.c.l.b16 %v1424
      %v1719 = vunpack.c.h.b16 %v1424
      %v1720 = vunpack.c.l.b16 %v1425
      %v1721 = vunpack.c.h.b16 %v1425
      %v1722 = vunpack.c.l.b16 %v1426
      %v1723 = vunpack.c.h.b16 %v1426
      %v1724 = vunpack.c.l.b16 %v1427
      %v1725 = vunpack.c.h.b16 %v1427
      %v1726 = vunpack.c.l.b16 %v1428
      %v1727 = vunpack.c.h.b16 %v1428
      %v1728 = vunpack.c.l.b16 %v1429
      %v1729 = vunpack.c.h.b16 %v1429
      %v1730 = vunpack.c.l.b16 %v1430
      %v1731 = vunpack.c.h.b16 %v1430
      %v1732 = vunpack.c.l.b16 %v1431
      %v1733 = vunpack.c.h.b16 %v1431
      %v1734 = vunpack.c.l.b16 %v1432
      %v1735 = vunpack.c.h.b16 %v1432
      %v1736 = vunpack.c.l.b16 %v1433
      %v1737 = vunpack.c.h.b16 %v1433
      %v1738 = vunpack.c.l.b16 %v1434
      %v1739 = vunpack.c.h.b16 %v1434
      %v1740 = vunpack.c.l.b16 %v1435
      %v1741 = vunpack.c.h.b16 %v1435
      %v1742 = vunpack.c.l.b16 %v1436
      %v1743 = vunpack.c.h.b16 %v1436
      %v1744 = vunpack.c.l.b16 %v1437
      %v1745 = vunpack.c.h.b16 %v1437
      %v1746 = vunpack.c.l.b16 %v1438
      %v1747 = vunpack.c.h.b16 %v1438
      %v1748 = vunpack.c.l.b16 %v1439
      %v1749 = vunpack.c.h.b16 %v1439
      %v1750 = vunpack.c.l.b16 %v1440
      %v1751 = vunpack.c.h.b16 %v1440
      %v1752 = vunpack.c.l.b16 %v1441
      %v1753 = vunpack.c.h.b16 %v1441
      %v1754 = vunpack.c.l.b16 %v1442
      %v1755 = vunpack.c.h.b16 %v1442
      %v1756 = vunpack.c.l.b16 %v1443
      %v1757 = vunpack.c.h.b16 %v1443
      %v1758 = vunpack.c.l.b16 %v1444
      %v1759 = vunpack.c.h.b16 %v1444
      %v1760 = vunpack.c.l.b16 %v1445
      %v1761 = vunpack.c.h.b16 %v1445
      %v1762 = vunpack.c.l.b16 %v1446
      %v1763 = vunpack.c.h.b16 %v1446
      %v1764 = vunpack.c.l.b16 %v1447
      %v1765 = vunpack.c.h.b16 %v1447
      %v1766 = vunpack.c.l.b16 %v1448
      %v1767 = vunpack.c.h.b16 %v1448
      %v1768 = vunpack.c.l.b16 %v1449
      %v1769 = vunpack.c.h.b16 %v1449
      %v1770 = vunpack.c.l.b16 %v1450
      %v1771 = vunpack.c.h.b16 %v1450
      %v1772 = vunpack.c.l.b16 %v1451
      %v1773 = vunpack.c.h.b16 %v1451
      %v1774 = vunpack.c.l.b16 %v1452
      %v1775 = vunpack.c.h.b16 %v1452
      %v1776 = vunpack.c.l.b16 %v1453
      %v1777 = vunpack.c.h.b16 %v1453
      %v1778 = vunpack.c.l.b16 %v1454
      %v1779 = vunpack.c.h.b16 %v1454
      %v1780 = vunpack.c.l.b16 %v1455
      %v1781 = vunpack.c.h.b16 %v1455
      %v1782 = vunpack.c.l.b16 %v1456
      %v1783 = vunpack.c.h.b16 %v1456
      %v1784 = vunpack.c.l.b16 %v1457
      %v1785 = vunpack.c.h.b16 %v1457
      %v1786 = vunpack.c.l.b16 %v1458
      %v1787 = vunpack.c.h.b16 %v1458
      %v1788 = vunpack.c.l.b16 %v1459
      %v1789 = vunpack.c.h.b16 %v1459
      %v1790 = vunpack.c.l.b16 %v1460
      %v1791 = vunpack.c.h.b16 %v1460
      %v1792 = vunpack.c.l.b16 %v1461
      %v1793 = vunpack.c.h.b16 %v1461
      %v1794 = vunpack.c.l.b16 %v1462
      %v1795 = vunpack.c.h.b16 %v1462
      %v1796 = vunpack.c.l.b16 %v1463
      %v1797 = vunpack.c.h.b16 %v1463
      %v1798 = vunpack.c.l.b16 %v1464
      %v1799 = vunpack.c.h.b16 %v1464
      %v1800 = vunpack.c.l.b16 %v1465
      %v1801 = vunpack.c.h.b16 %v1465
      %v1802 = vunpack.c.l.b16 %v1466
      %v1803 = vunpack.c.h.b16 %v1466
      %v1804 = vunpack.c.l.b16 %v1467
      %v1805 = vunpack.c.h.b16 %v1467
      %v1806 = vunpack.c.l.b16 %v1468
      %v1807 = vunpack.c.h.b16 %v1468
      %v1808 = vunpack.c.l.b16 %v1469
      %v1809 = vunpack.c.h.b16 %v1469
      %v1810 = vunpack.c.l.b16 %v1470
      %v1811 = vunpack.c.h.b16 %v1470
      %v1812 = vunpack.c.l.b16 %v1471
      %v1813 = vunpack.c.h.b16 %v1471
      %v1814 = vunpack.c.l.b16 %v1472
      %v1815 = vunpack.c.h.b16 %v1472
      %v1816 = vunpack.c.l.b16 %v1473
      %v1817 = vunpack.c.h.b16 %v1473
      %v1818 = vunpack.c.l.b16 %v1474
      %v1819 = vunpack.c.h.b16 %v1474
      %v1820 = vunpack.c.l.b16 %v1475
      %v1821 = vunpack.c.h.b16 %v1475
      %v1822 = vunpack.c.l.b16 %v1476
      %v1823 = vunpack.c.h.b16 %v1476
      %v1824 = vunpack.c.l.b16 %v1477
      %v1825 = vunpack.c.h.b16 %v1477
      %v1826 = vunpack.c.l.b16 %v1478
      %v1827 = vunpack.c.h.b16 %v1478
      %v1828 = vunpack.c.l.b16 %v1479
      %v1829 = vunpack.c.h.b16 %v1479
      %v1830 = vunpack.c.l.b16 %v1480
      %v1831 = vunpack.c.h.b16 %v1480
      %v1832 = vunpack.c.l.b16 %v1481
      %v1833 = vunpack.c.h.b16 %v1481
      %v1834 = vunpack.c.l.b16 %v1482
      %v1835 = vunpack.c.h.b16 %v1482
      %v1836 = vunpack.c.l.b16 %v1483
      %v1837 = vunpack.c.h.b16 %v1483
      %v1838 = vunpack.c.l.b16 %v1484
      %v1839 = vunpack.c.h.b16 %v1484
      %v1840 = vunpack.c.l.b16 %v1485
      %v1841 = vunpack.c.h.b16 %v1485
      %v1842 = vunpack.c.l.b16 %v1486
      %v1843 = vunpack.c.h.b16 %v1486
      %v1844 = vunpack.c.l.b16 %v1487
      %v1845 = vunpack.c.h.b16 %v1487
      %v1846 = vunpack.c.l.b16 %v1488
      %v1847 = vunpack.c.h.b16 %v1488
      %v1848 = vunpack.c.l.b16 %v1489
      %v1849 = vunpack.c.h.b16 %v1489
      %v1850 = vunpack.c.l.b16 %v1490
      %v1851 = vunpack.c.h.b16 %v1490
      %v1852 = vunpack.c.l.b16 %v1491
      %v1853 = vunpack.c.h.b16 %v1491
      %v1854 = vunpack.c.l.b16 %v1492
      %v1855 = vunpack.c.h.b16 %v1492
      %v1856 = vunpack.c.l.b16 %v1493
      %v1857 = vunpack.c.h.b16 %v1493
      %v1858 = vunpack.c.l.b16 %v1494
      %v1859 = vunpack.c.h.b16 %v1494
      %v1860 = vunpack.c.l.b16 %v1495
      %v1861 = vunpack.c.h.b16 %v1495
      %v1862 = vunpack.c.l.b16 %v1496
      %v1863 = vunpack.c.h.b16 %v1496
      %v1864 = vunpack.c.l.b16 %v1497
      %v1865 = vunpack.c.h.b16 %v1497
      %v1866 = vunpack.c.l.b16 %v1498
      %v1867 = vunpack.c.h.b16 %v1498
      %v1868 = vunpack.c.l.b16 %v1499
      %v1869 = vunpack.c.h.b16 %v1499
      %v1870 = vunpack.c.l.b16 %v1500
      %v1871 = vunpack.c.h.b16 %v1500
      %v1872 = vunpack.c.l.b16 %v1501
      %v1873 = vunpack.c.h.b16 %v1501
      %v1874 = vunpack.c.l.b16 %v1502
      %v1875 = vunpack.c.h.b16 %v1502
      %v1876 = vunpack.c.l.b16 %v1503
      %v1877 = vunpack.c.h.b16 %v1503
      %v1878 = vunpack.c.l.b16 %v1504
      %v1879 = vunpack.c.h.b16 %v1504
      %v1880 = vunpack.c.l.b16 %v1505
      %v1881 = vunpack.c.h.b16 %v1505
      %v1882 = vunpack.c.l.b16 %v1506
      %v1883 = vunpack.c.h.b16 %v1506
      %v1884 = vunpack.c.l.b16 %v1507
      %v1885 = vunpack.c.h.b16 %v1507
      %v1886 = vunpack.c.l.b16 %v1508
      %v1887 = vunpack.c.h.b16 %v1508
      %v1888 = vunpack.c.l.b16 %v1509
      %v1889 = vunpack.c.h.b16 %v1509
      %v1890 = vunpack.c.l.b16 %v1510
      %v1891 = vunpack.c.h.b16 %v1510
      %v1892 = vunpack.c.l.b16 %v1511
      %v1893 = vunpack.c.h.b16 %v1511
      %v1894 = vunpack.c.l.b16 %v1512
      %v1895 = vunpack.c.h.b16 %v1512
      %v1896 = vunpack.c.l.b16 %v1513
      %v1897 = vunpack.c.h.b16 %v1513
      %v1898 = vunpack.c.l.b16 %v1514
      %v1899 = vunpack.c.h.b16 %v1514
      %v1900 = vunpack.c.l.b16 %v1515
      %v1901 = vunpack.c.h.b16 %v1515
      %v1902 = vunpack.c.l.b16 %v1516
      %v1903 = vunpack.c.h.b16 %v1516
      %v1904 = vunpack.c.l.b16 %v1517
      %v1905 = vunpack.c.h.b16 %v1517
      %v1906 = vunpack.c.l.b16 %v1518
      %v1907 = vunpack.c.h.b16 %v1518
      %v1908 = vunpack.c.l.b16 %v1519
      %v1909 = vunpack.c.h.b16 %v1519
      %v1910 = vunpack.c.l.b16 %v1520
      %v1911 = vunpack.c.h.b16 %v1520
      %v1912 = vunpack.c.l.b16 %v1521
      %v1913 = vunpack.c.h.b16 %v1521
      %v1914 = vunpack.c.l.b16 %v1522
      %v1915 = vunpack.c.h.b16 %v1522
      %v1916 = vunpack.c.l.b16 %v1523
      %v1917 = vunpack.c.h.b16 %v1523
      %v1918 = vunpack.c.l.b16 %v1524
      %v1919 = vunpack.c.h.b16 %v1524
      %v1920 = vunpack.c.l.b16 %v1525
      %v1921 = vunpack.c.h.b16 %v1525
      %v1922 = vunpack.c.l.b16 %v1526
      %v1923 = vunpack.c.h.b16 %v1526
      %v1924 = vunpack.c.l.b16 %v1527
      %v1925 = vunpack.c.h.b16 %v1527
      %v1926 = vunpack.c.l.b16 %v1528
      %v1927 = vunpack.c.h.b16 %v1528
      %v1928 = vunpack.c.l.b16 %v1529
      %v1929 = vunpack.c.h.b16 %v1529
      %v1930 = vunpack.c.l.b16 %v1530
      %v1931 = vunpack.c.h.b16 %v1530
      %v1932 = vunpack.c.l.b16 %v1531
      %v1933 = vunpack.c.h.b16 %v1531
      %v1934 = vunpack.c.l.b16 %v1532
      %v1935 = vunpack.c.h.b16 %v1532
      %v1936 = vunpack.c.l.b16 %v1533
      %v1937 = vunpack.c.h.b16 %v1533
      %v1938 = vpack.c.b16 %v1686, %v1682
      %v1939 = vpack.c.b16 %v1687, %v1683
      %v1940 = vpack.c.b16 %v1688, %v1684
      %v1941 = vpack.c.b16 %v1689, %v1685
      %v1942 = vpack.c.b16 %v1694, %v1690
      %v1943 = vpack.c.b16 %v1695, %v1691
      %v1944 = vpack.c.b16 %v1696, %v1692
      %v1945 = vpack.c.b16 %v1697, %v1693
      %v1946 = vpack.c.b16 %v1702, %v1698
      %v1947 = vpack.c.b16 %v1703, %v1699
      %v1948 = vpack.c.b16 %v1704, %v1700
      %v1949 = vpack.c.b16 %v1705, %v1701
      %v1950 = vpack.c.b16 %v1710, %v1706
      %v1951 = vpack.c.b16 %v1711, %v1707
      %v1952 = vpack.c.b16 %v1712, %v1708
      %v1953 = vpack.c.b16 %v1713, %v1709
      %v1954 = vpack.c.b16 %v1718, %v1714
      %v1955 = vpack.c.b16 %v1719, %v1715
      %v1956 = vpack.c.b16 %v1720, %v1716
      %v1957 = vpack.c.b16 %v1721, %v1717
      %v1958 = vpack.c.b16 %v1726, %v1722
      %v1959 = vpack.c.b16 %v1727, %v1723
      %v1960 = vpack.c.b16 %v1728, %v1724
      %v1961 = vpack.c.b16 %v1729, %v1725
      %v1962 = vpack.c.b16 %v1734, %v1730
      %v1963 = vpack.c.b16 %v1735, %v1731
      %v1964 = vpack.c.b16 %v1736, %v1732
      %v1965 = vpack.c.b16 %v1737, %v1733
      %v1966 = vpack.c.b16 %v1742, %v1738
      %v1967 = vpack.c.b16 %v1743, %v1739
      %v1968 = vpack.c.b16 %v1744, %v1740
      %v1969 = vpack.c.b16 %v1745, %v1741
      %v1970 = vpack.c.b16 %v1750, %v1746
      %v1971 = vpack.c.b16 %v1751, %v1747
      %v1972 = vpack.c.b16 %v1752, %v1748
      %v1973 = vpack.c.b16 %v1753, %v1749
      %v1974 = vpack.c.b16 %v1758, %v1754
      %v1975 = vpack.c.b16 %v1759, %v1755
      %v1976 = vpack.c.b16 %v1760, %v1756
      %v1977 = vpack.c.b16 %v1761, %v1757
      %v1978 = vpack.c.b16 %v1766, %v1762
      %v1979 = vpack.c.b16 %v1767, %v1763
      %v1980 = vpack.c.b16 %v1768, %v1764
      %v1981 = vpack.c.b16 %v1769, %v1765
      %v1982 = vpack.c.b16 %v1774, %v1770
      %v1983 = vpack.c.b16 %v1775, %v1771
      %v1984 = vpack.c.b16 %v1776, %v1772
      %v1985 = vpack.c.b16 %v1777, %v1773
      %v1986 = vpack.c.b16 %v1782, %v1778
      %v1987 = vpack.c.b16 %v1783, %v1779
      %v1988 = vpack.c.b16 %v1784, %v1780
      %v1989 = vpack.c.b16 %v1785, %v1781
      %v1990 = vpack.c.b16 %v1790, %v1786
      %v1991 = vpack.c.b16 %v1791, %v1787
      %v1992 = vpack.c.b16 %v1792, %v1788
      %v1993 = vpack.c.b16 %v1793, %v1789
      %v1994 = vpack.c.b16 %v1798, %v1794
      %v1995 = vpack.c.b16 %v1799, %v1795
      %v1996 = vpack.c.b16 %v1800, %v1796
      %v1997 = vpack.c.b16 %v1801, %v1797
      %v1998 = vpack.c.b16 %v1806, %v1802
      %v1999 = vpack.c.b16 %v1807, %v1803
      %v2000 = vpack.c.b16 %v1808, %v1804
      %v2001 = vpack.c.b16 %v1809, %v1805
      %v2002 = vpack.c.b16 %v1814, %v1810
      %v2003 = vpack.c.b16 %v1815, %v1811
      %v2004 = vpack.c.b16 %v1816, %v1812
      %v2005 = vpack.c.b16 %v1817, %v1813
      %v2006 = vpack.c.b16 %v1822, %v1818
      %v2007 = vpack.c.b16 %v1823, %v1819
      %v2008 = vpack.c.b16 %v1824, %v1820
      %v2009 = vpack.c.b16 %v1825, %v1821
      %v2010 = vpack.c.b16 %v1830, %v1826
      %v2011 = vpack.c.b16 %v1831, %v1827
      %v2012 = vpack.c.b16 %v1832, %v1828
      %v2013 = vpack.c.b16 %v1833, %v1829
      %v2014 = vpack.c.b16 %v1838, %v1834
      %v2015 = vpack.c.b16 %v1839, %v1835
      %v2016 = vpack.c.b16 %v1840, %v1836
      %v2017 = vpack.c.b16 %v1841, %v1837
      %v2018 = vpack.c.b16 %v1846, %v1842
      %v2019 = vpack.c.b16 %v1847, %v1843
      %v2020 = vpack.c.b16 %v1848, %v1844
      %v2021 = vpack.c.b16 %v1849, %v1845
      %v2022 = vpack.c.b16 %v1854, %v1850
      %v2023 = vpack.c.b16 %v1855, %v1851
      %v2024 = vpack.c.b16 %v1856, %v1852
      %v2025 = vpack.c.b16 %v1857, %v1853
      %v2026 = vpack.c.b16 %v1862, %v1858
      %v2027 = vpack.c.b16 %v1863, %v1859
      %v2028 = vpack.c.b16 %v1864, %v1860
      %v2029 = vpack.c.b16 %v1865, %v1861
      %v2030 = vpack.c.b16 %v1870, %v1866
      %v2031 = vpack.c.b16 %v1871, %v1867
      %v2032 = vpack.c.b16 %v1872, %v1868
      %v2033 = vpack.c.b16 %v1873, %v1869
      %v2034 = vpack.c.b16 %v1878, %v1874
      %v2035 = vpack.c.b16 %v1879, %v1875
      %v2036 = vpack.c.b16 %v1880, %v1876
      %v2037 = vpack.c.b16 %v1881, %v1877
      %v2038 = vpack.c.b16 %v1886, %v1882
      %v2039 = vpack.c.b16 %v1887, %v1883
      %v2040 = vpack.c.b16 %v1888, %v1884
      %v2041 = vpack.c.b16 %v1889, %v1885
      %v2042 = vpack.c.b16 %v1894, %v1890
      %v2043 = vpack.c.b16 %v1895, %v1891
      %v2044 = vpack.c.b16 %v1896, %v1892
      %v2045 = vpack.c.b16 %v1897, %v1893
      %v2046 = vpack.c.b16 %v1902, %v1898
      %v2047 = vpack.c.b16 %v1903, %v1899
      %v2048 = vpack.c.b16 %v1904, %v1900
      %v2049 = vpack.c.b16 %v1905, %v1901
      %v2050 = vpack.c.b16 %v1910, %v1906
      %v2051 = vpack.c.b16 %v1911, %v1907
      %v2052 = vpack.c.b16 %v1912, %v1908
      %v2053 = vpack.c.b16 %v1913, %v1909
      %v2054 = vpack.c.b16 %v1918, %v1914
      %v2055 = vpack.c.b16 %v1919, %v1915
      %v2056 = vpack.c.b16 %v1920, %v1916
      %v2057 = vpack.c.b16 %v1921, %v1917
      %v2058 = vpack.c.b16 %v1926, %v1922
      %v2059 = vpack.c.b16 %v1927, %v1923
      %v2060 = vpack.c.b16 %v1928, %v1924
      %v2061 = vpack.c.b16 %v1929, %v1925
      %v2062 = vpack.c.b16 %v1934, %v1930
      %v2063 = vpack.c.b16 %v1935, %v1931
      %v2064 = vpack.c.b16 %v1936, %v1932
      %v2065 = vpack.c.b16 %v1937, %v1933
      %2194 = vmatpush.bf16.msra.mxu0 %v1966
      %2195 = vmatpush.bf16.msra.mxu0 %v1962
      %2196 = vmatpush.bf16.msra.mxu0 %v1958
      %2197 = vmatpush.bf16.msra.mxu0 %v1954
      %2198 = vmatpush.bf16.msra.mxu0 %v1950
      %2199 = vmatpush.bf16.msra.mxu0 %v1946
      %2200 = vmatpush.bf16.msra.mxu0 %v1942
      %2201 = vmatpush.bf16.msra.mxu0 %v1938
      %2202 = vmatmul.bf16.gmra.mxu0 %v1546
      %v2203 = vpop.f32.mrf.mxu0
      %v2204 = vadd.f32 %v1538, %v2203
      %v2205 = vpop.f32.mrf.mxu0
      %2206 = vdwg.mxu0
      %2207 = vmatpush.bf16.msra.mxu0 %v1998
      %2208 = vmatpush.bf16.msra.mxu0 %v1994
      %2209 = vmatpush.bf16.msra.mxu0 %v1990
      %2210 = vmatpush.bf16.msra.mxu0 %v1986
      %2211 = vmatpush.bf16.msra.mxu0 %v1982
      %2212 = vmatpush.bf16.msra.mxu0 %v1978
      %2213 = vmatpush.bf16.msra.mxu0 %v1974
      %2214 = vmatpush.bf16.msra.mxu0 %v1970
      %2215 = vmatmul.bf16.gmra.mxu0 %v1547
      %v2216 = vpop.f32.mrf.mxu0
      %v2217 = vadd.f32 %v2204, %v2216
      %v2218 = vpop.f32.mrf.mxu0
      %2219 = vdwg.mxu0
      %2220 = vmatpush.bf16.msra.mxu0 %v2030
      %2221 = vmatpush.bf16.msra.mxu0 %v2026
      %2222 = vmatpush.bf16.msra.mxu0 %v2022
      %2223 = vmatpush.bf16.msra.mxu0 %v2018
      %2224 = vmatpush.bf16.msra.mxu0 %v2014
      %2225 = vmatpush.bf16.msra.mxu0 %v2010
      %2226 = vmatpush.bf16.msra.mxu0 %v2006
      %2227 = vmatpush.bf16.msra.mxu0 %v2002
      %2228 = vmatmul.bf16.gmra.mxu0 %v1548
      %v2229 = vpop.f32.mrf.mxu0
      %v2230 = vadd.f32 %v2217, %v2229
      %v2231 = vpop.f32.mrf.mxu0
      %2232 = vdwg.mxu0
      %2233 = vmatpush.bf16.msra.mxu0 %v2062
      %2234 = vmatpush.bf16.msra.mxu0 %v2058
      %2235 = vmatpush.bf16.msra.mxu0 %v2054
      %2236 = vmatpush.bf16.msra.mxu0 %v2050
      %2237 = vmatpush.bf16.msra.mxu0 %v2046
      %2238 = vmatpush.bf16.msra.mxu0 %v2042
      %2239 = vmatpush.bf16.msra.mxu0 %v2038
      %2240 = vmatpush.bf16.msra.mxu0 %v2034
      %2241 = vmatmul.bf16.gmra.mxu0 %v1549
      %v2242 = vpop.f32.mrf.mxu0
      %v2243 = vadd.f32 %v2230, %v2242
      %v2244 = vpop.f32.mrf.mxu0
      %2245 = vdwg.mxu0
      %2246 = vmatpush.bf16.msra.mxu0 %v1967
      %2247 = vmatpush.bf16.msra.mxu0 %v1963
      %2248 = vmatpush.bf16.msra.mxu0 %v1959
      %2249 = vmatpush.bf16.msra.mxu0 %v1955
      %2250 = vmatpush.bf16.msra.mxu0 %v1951
      %2251 = vmatpush.bf16.msra.mxu0 %v1947
      %2252 = vmatpush.bf16.msra.mxu0 %v1943
      %2253 = vmatpush.bf16.msra.mxu0 %v1939
      %2254 = vmatmul.bf16.gmra.mxu0 %v1546
      %v2255 = vpop.f32.mrf.mxu0
      %v2256 = vadd.f32 %v1538, %v2255
      %v2257 = vpop.f32.mrf.mxu0
      %2258 = vdwg.mxu0
      %2259 = vmatpush.bf16.msra.mxu0 %v1999
      %2260 = vmatpush.bf16.msra.mxu0 %v1995
      %2261 = vmatpush.bf16.msra.mxu0 %v1991
      %2262 = vmatpush.bf16.msra.mxu0 %v1987
      %2263 = vmatpush.bf16.msra.mxu0 %v1983
      %2264 = vmatpush.bf16.msra.mxu0 %v1979
      %2265 = vmatpush.bf16.msra.mxu0 %v1975
      %2266 = vmatpush.bf16.msra.mxu0 %v1971
      %2267 = vmatmul.bf16.gmra.mxu0 %v1547
      %v2268 = vpop.f32.mrf.mxu0
      %v2269 = vadd.f32 %v2256, %v2268
      %v2270 = vpop.f32.mrf.mxu0
      %2271 = vdwg.mxu0
      %2272 = vmatpush.bf16.msra.mxu0 %v2031
      %2273 = vmatpush.bf16.msra.mxu0 %v2027
      %2274 = vmatpush.bf16.msra.mxu0 %v2023
      %2275 = vmatpush.bf16.msra.mxu0 %v2019
      %2276 = vmatpush.bf16.msra.mxu0 %v2015
      %2277 = vmatpush.bf16.msra.mxu0 %v2011
      %2278 = vmatpush.bf16.msra.mxu0 %v2007
      %2279 = vmatpush.bf16.msra.mxu0 %v2003
      %2280 = vmatmul.bf16.gmra.mxu0 %v1548
      %v2281 = vpop.f32.mrf.mxu0
      %v2282 = vadd.f32 %v2269, %v2281
      %v2283 = vpop.f32.mrf.mxu0
      %2284 = vdwg.mxu0
      %2285 = vmatpush.bf16.msra.mxu0 %v2063
      %2286 = vmatpush.bf16.msra.mxu0 %v2059
      %2287 = vmatpush.bf16.msra.mxu0 %v2055
      %2288 = vmatpush.bf16.msra.mxu0 %v2051
      %2289 = vmatpush.bf16.msra.mxu0 %v2047
      %2290 = vmatpush.bf16.msra.mxu0 %v2043
      %2291 = vmatpush.bf16.msra.mxu0 %v2039
      %2292 = vmatpush.bf16.msra.mxu0 %v2035
      %2293 = vmatmul.bf16.gmra.mxu0 %v1549
      %v2294 = vpop.f32.mrf.mxu0
      %v2295 = vadd.f32 %v2282, %v2294
      %v2296 = vpop.f32.mrf.mxu0
      %2297 = vdwg.mxu0
      %2298 = vmatpush.bf16.msra.mxu0 %v1968
      %2299 = vmatpush.bf16.msra.mxu0 %v1964
      %2300 = vmatpush.bf16.msra.mxu0 %v1960
      %2301 = vmatpush.bf16.msra.mxu0 %v1956
      %2302 = vmatpush.bf16.msra.mxu0 %v1952
      %2303 = vmatpush.bf16.msra.mxu0 %v1948
      %2304 = vmatpush.bf16.msra.mxu0 %v1944
      %2305 = vmatpush.bf16.msra.mxu0 %v1940
      %2306 = vmatmul.bf16.gmra.mxu0 %v1546
      %v2307 = vpop.f32.mrf.mxu0
      %v2308 = vadd.f32 %v1538, %v2307
      %v2309 = vpop.f32.mrf.mxu0
      %2310 = vdwg.mxu0
      %2311 = vmatpush.bf16.msra.mxu0 %v2000
      %2312 = vmatpush.bf16.msra.mxu0 %v1996
      %2313 = vmatpush.bf16.msra.mxu0 %v1992
      %2314 = vmatpush.bf16.msra.mxu0 %v1988
      %2315 = vmatpush.bf16.msra.mxu0 %v1984
      %2316 = vmatpush.bf16.msra.mxu0 %v1980
      %2317 = vmatpush.bf16.msra.mxu0 %v1976
      %2318 = vmatpush.bf16.msra.mxu0 %v1972
      %2319 = vmatmul.bf16.gmra.mxu0 %v1547
      %v2320 = vpop.f32.mrf.mxu0
      %v2321 = vadd.f32 %v2308, %v2320
      %v2322 = vpop.f32.mrf.mxu0
      %2323 = vdwg.mxu0
      %2324 = vmatpush.bf16.msra.mxu0 %v2032
      %2325 = vmatpush.bf16.msra.mxu0 %v2028
      %2326 = vmatpush.bf16.msra.mxu0 %v2024
      %2327 = vmatpush.bf16.msra.mxu0 %v2020
      %2328 = vmatpush.bf16.msra.mxu0 %v2016
      %2329 = vmatpush.bf16.msra.mxu0 %v2012
      %2330 = vmatpush.bf16.msra.mxu0 %v2008
      %2331 = vmatpush.bf16.msra.mxu0 %v2004
      %2332 = vmatmul.bf16.gmra.mxu0 %v1548
      %v2333 = vpop.f32.mrf.mxu0
      %v2334 = vadd.f32 %v2321, %v2333
      %v2335 = vpop.f32.mrf.mxu0
      %2336 = vdwg.mxu0
      %2337 = vmatpush.bf16.msra.mxu0 %v2064
      %2338 = vmatpush.bf16.msra.mxu0 %v2060
      %2339 = vmatpush.bf16.msra.mxu0 %v2056
      %2340 = vmatpush.bf16.msra.mxu0 %v2052
      %2341 = vmatpush.bf16.msra.mxu0 %v2048
      %2342 = vmatpush.bf16.msra.mxu0 %v2044
      %2343 = vmatpush.bf16.msra.mxu0 %v2040
      %2344 = vmatpush.bf16.msra.mxu0 %v2036
      %2345 = vmatmul.bf16.gmra.mxu0 %v1549
      %v2346 = vpop.f32.mrf.mxu0
      %v2347 = vadd.f32 %v2334, %v2346
      %v2348 = vpop.f32.mrf.mxu0
      %2349 = vdwg.mxu0
      %2350 = vmatpush.bf16.msra.mxu0 %v1969
      %2351 = vmatpush.bf16.msra.mxu0 %v1965
      %2352 = vmatpush.bf16.msra.mxu0 %v1961
      %2353 = vmatpush.bf16.msra.mxu0 %v1957
      %2354 = vmatpush.bf16.msra.mxu0 %v1953
      %2355 = vmatpush.bf16.msra.mxu0 %v1949
      %2356 = vmatpush.bf16.msra.mxu0 %v1945
      %2357 = vmatpush.bf16.msra.mxu0 %v1941
      %2358 = vmatmul.bf16.gmra.mxu0 %v1546
      %v2359 = vpop.f32.mrf.mxu0
      %v2360 = vadd.f32 %v1538, %v2359
      %v2361 = vpop.f32.mrf.mxu0
      %2362 = vdwg.mxu0
      %2363 = vmatpush.bf16.msra.mxu0 %v2001
      %2364 = vmatpush.bf16.msra.mxu0 %v1997
      %2365 = vmatpush.bf16.msra.mxu0 %v1993
      %2366 = vmatpush.bf16.msra.mxu0 %v1989
      %2367 = vmatpush.bf16.msra.mxu0 %v1985
      %2368 = vmatpush.bf16.msra.mxu0 %v1981
      %2369 = vmatpush.bf16.msra.mxu0 %v1977
      %2370 = vmatpush.bf16.msra.mxu0 %v1973
      %2371 = vmatmul.bf16.gmra.mxu0 %v1547
      %v2372 = vpop.f32.mrf.mxu0
      %v2373 = vadd.f32 %v2360, %v2372
      %v2374 = vpop.f32.mrf.mxu0
      %2375 = vdwg.mxu0
      %2376 = vmatpush.bf16.msra.mxu0 %v2033
      %2377 = vmatpush.bf16.msra.mxu0 %v2029
      %2378 = vmatpush.bf16.msra.mxu0 %v2025
      %2379 = vmatpush.bf16.msra.mxu0 %v2021
      %2380 = vmatpush.bf16.msra.mxu0 %v2017
      %2381 = vmatpush.bf16.msra.mxu0 %v2013
      %2382 = vmatpush.bf16.msra.mxu0 %v2009
      %2383 = vmatpush.bf16.msra.mxu0 %v2005
      %2384 = vmatmul.bf16.gmra.mxu0 %v1548
      %v2385 = vpop.f32.mrf.mxu0
      %v2386 = vadd.f32 %v2373, %v2385
      %v2387 = vpop.f32.mrf.mxu0
      %2388 = vdwg.mxu0
      %2389 = vmatpush.bf16.msra.mxu0 %v2065
      %2390 = vmatpush.bf16.msra.mxu0 %v2061
      %2391 = vmatpush.bf16.msra.mxu0 %v2057
      %2392 = vmatpush.bf16.msra.mxu0 %v2053
      %2393 = vmatpush.bf16.msra.mxu0 %v2049
      %2394 = vmatpush.bf16.msra.mxu0 %v2045
      %2395 = vmatpush.bf16.msra.mxu0 %v2041
      %2396 = vmatpush.bf16.msra.mxu0 %v2037
      %2397 = vmatmul.bf16.gmra.mxu0 %v1549
      %v2398 = vpop.f32.mrf.mxu0
      %v2399 = vadd.f32 %v2386, %v2398
      %v2400 = vpop.f32.mrf.mxu0
      %2401 = vdwg.mxu0
      %v2402 = vlaneseq
      %v2403 = vand.u32 %v2402, 127
      %v2404 = vadd.s32 %v2403, 128
      %v2405 = vadd.s32 %v2403, 256
      %v2406 = vadd.s32 %v2403, 384
      %v2407 = vcvt.s32.f32 %v2403
      %v2408 = vcvt.s32.f32 %v2404
      %v2409 = vcvt.s32.f32 %v2405
      %v2410 = vcvt.s32.f32 %v2406
      %s2411 = smul.u32 %s21, 512
      %s2412 = scvt.s32.f32 %s2411
      %v2413 = vstv %s2412
      %v2414 = vadd.f32 %v2407, %v2413
      %v2415 = vadd.f32 %v2408, %v2413
      %v2416 = vadd.f32 %v2409, %v2413
      %v2417 = vadd.f32 %v2410, %v2413
      %v2418 = vadd.f32 %v2414, 1.0
      %v2419 = vadd.f32 %v2415, 1.0
      %v2420 = vadd.f32 %v2416, 1.0
      %v2421 = vadd.f32 %v2417, 1.0
      %v2422 = vsub.f32 %v2418, 1.0
      %v2423 = vsub.f32 %v2419, 1.0
      %v2424 = vsub.f32 %v2420, 1.0
      %v2425 = vsub.f32 %v2421, 1.0
      %vm2426 = vcmp.eq.f32.partialorder %v2418, 1.0
      %vm2427 = vcmp.eq.f32.partialorder %v2419, 1.0
      %vm2428 = vcmp.eq.f32.partialorder %v2420, 1.0
      %vm2429 = vcmp.eq.f32.partialorder %v2421, 1.0
      %v2430 = vsub.f32 %v2243, %v1392
      %v2431 = vsub.f32 %v2295, %v1393
      %v2432 = vsub.f32 %v2347, %v1394
      %v2433 = vsub.f32 %v2399, %v1395
      %v2434 = vsub.f32 %v2418, %v2243
      %v2435 = vsub.f32 %v2419, %v2295
      %v2436 = vsub.f32 %v2420, %v2347
      %v2437 = vsub.f32 %v2421, %v2399
      %v2438 = vsub.f32 %v2422, %v2430
      %v2439 = vsub.f32 %v2423, %v2431
      %v2440 = vsub.f32 %v2424, %v2432
      %v2441 = vsub.f32 %v2425, %v2433
      %2443 = vset.pattern.permute.xlu0 0
      %2444 = vperm.xlu0 %2443, %v1404
      %v2445 = vpop.permute.xlu0 %2444
      %v2447 = vsub.f32 %v2445, %v2243
      %v2448 = vsub.f32 %v2445, %v2295
      %v2449 = vsub.f32 %v2445, %v2347
      %v2450 = vsub.f32 %v2445, %v2399
      %v2451 = vadd.f32 %v2445, %v2418
      %v2452 = vadd.f32 %v2445, %v2419
      %v2453 = vadd.f32 %v2445, %v2420
      %v2454 = vadd.f32 %v2445, %v2421
      %v2455 = vsub.f32 %v2451, %v2243
      %v2456 = vsub.f32 %v2452, %v2295
      %v2457 = vsub.f32 %v2453, %v2347
      %v2458 = vsub.f32 %v2454, %v2399
      %v2459 = vrcp.pop %v2455
      %v2460 = vmul.f32 %v2455, %v2459
      %v2461 = vsub.f32 1.0, %v2460
      %v2462 = vmul.f32 %v2459, %v2461
      %v2463 = vadd.f32 %v2459, %v2462
      %vm2464 = vweird.f32 %v2455
      %vm2465 = vweird.f32 %v2459
      %vm2466 = vmor %vm2464, %vm2465
      %v2467 = vsel %vm2466, %v2459, %v2463
      %v2468 = vand.u32 2147483647, %v2455
      %vm2469 = vcmp.eq.f32.partialorder %v2468, 8.507059e+37
      %v2470 = vand.u32 %v2455, 2147483648
      %v2471 = vor.u32 1.1754944e-38, %v2470
      %v2472 = vsel %vm2469, %v2471, %v2467
      %v2473 = vmul.f32 %v2447, %v2472
      %v2474 = vrcp.pop %v2456
      %v2475 = vmul.f32 %v2456, %v2474
      %v2476 = vsub.f32 1.0, %v2475
      %v2477 = vmul.f32 %v2474, %v2476
      %v2478 = vadd.f32 %v2474, %v2477
      %vm2479 = vweird.f32 %v2456
      %vm2480 = vweird.f32 %v2474
      %vm2481 = vmor %vm2479, %vm2480
      %v2482 = vsel %vm2481, %v2474, %v2478
      %v2483 = vand.u32 2147483647, %v2456
      %vm2484 = vcmp.eq.f32.partialorder %v2483, 8.507059e+37
      %v2485 = vand.u32 %v2456, 2147483648
      %v2486 = vor.u32 1.1754944e-38, %v2485
      %v2487 = vsel %vm2484, %v2486, %v2482
      %v2488 = vmul.f32 %v2448, %v2487
      %v2489 = vrcp.pop %v2457
      %v2490 = vmul.f32 %v2457, %v2489
      %v2491 = vsub.f32 1.0, %v2490
      %v2492 = vmul.f32 %v2489, %v2491
      %v2493 = vadd.f32 %v2489, %v2492
      %vm2494 = vweird.f32 %v2457
      %vm2495 = vweird.f32 %v2489
      %vm2496 = vmor %vm2494, %vm2495
      %v2497 = vsel %vm2496, %v2489, %v2493
      %v2498 = vand.u32 2147483647, %v2457
      %vm2499 = vcmp.eq.f32.partialorder %v2498, 8.507059e+37
      %v2500 = vand.u32 %v2457, 2147483648
      %v2501 = vor.u32 1.1754944e-38, %v2500
      %v2502 = vsel %vm2499, %v2501, %v2497
      %v2503 = vmul.f32 %v2449, %v2502
      %v2504 = vrcp.pop %v2458
      %v2505 = vmul.f32 %v2458, %v2504
      %v2506 = vsub.f32 1.0, %v2505
      %v2507 = vmul.f32 %v2504, %v2506
      %v2508 = vadd.f32 %v2504, %v2507
      %vm2509 = vweird.f32 %v2458
      %vm2510 = vweird.f32 %v2504
      %vm2511 = vmor %vm2509, %vm2510
      %v2512 = vsel %vm2511, %v2504, %v2508
      %v2513 = vand.u32 2147483647, %v2458
      %vm2514 = vcmp.eq.f32.partialorder %v2513, 8.507059e+37
      %v2515 = vand.u32 %v2458, 2147483648
      %v2516 = vor.u32 1.1754944e-38, %v2515
      %v2517 = vsel %vm2514, %v2516, %v2512
      %v2518 = vmul.f32 %v2450, %v2517
      %v2519 = vsub.f32 1.0, %v2473
      %v2520 = vsub.f32 1.0, %v2488
      %v2521 = vsub.f32 1.0, %v2503
      %v2522 = vsub.f32 1.0, %v2518
      %v2523 = vadd.f32 %v2445, %v2422
      %v2524 = vadd.f32 %v2445, %v2423
      %v2525 = vadd.f32 %v2445, %v2424
      %v2526 = vadd.f32 %v2445, %v2425
      %v2527 = vsub.f32 %v2523, %v2430
      %v2528 = vsub.f32 %v2524, %v2431
      %v2529 = vsub.f32 %v2525, %v2432
      %v2530 = vsub.f32 %v2526, %v2433
      %v2531 = vsel %vm2426, 1.0, %v2527
      %v2532 = vsel %vm2427, 1.0, %v2528
      %v2533 = vsel %vm2428, 1.0, %v2529
      %v2534 = vsel %vm2429, 1.0, %v2530
      %v2535 = vsub.f32 %v2445, %v2430
      %v2536 = vsub.f32 %v2445, %v2431
      %v2537 = vsub.f32 %v2445, %v2432
      %v2538 = vsub.f32 %v2445, %v2433
      %v2539 = vrcp.pop %v2531
      %v2540 = vmul.f32 %v2531, %v2539
      %v2541 = vsub.f32 1.0, %v2540
      %v2542 = vmul.f32 %v2539, %v2541
      %v2543 = vadd.f32 %v2539, %v2542
      %vm2544 = vweird.f32 %v2531
      %vm2545 = vweird.f32 %v2539
      %vm2546 = vmor %vm2544, %vm2545
      %v2547 = vsel %vm2546, %v2539, %v2543
      %v2548 = vand.u32 2147483647, %v2531
      %vm2549 = vcmp.eq.f32.partialorder %v2548, 8.507059e+37
      %v2550 = vand.u32 %v2531, 2147483648
      %v2551 = vor.u32 1.1754944e-38, %v2550
      %v2552 = vsel %vm2549, %v2551, %v2547
      %v2553 = vmul.f32 %v2535, %v2552
      %v2554 = vrcp.pop %v2532
      %v2555 = vmul.f32 %v2532, %v2554
      %v2556 = vsub.f32 1.0, %v2555
      %v2557 = vmul.f32 %v2554, %v2556
      %v2558 = vadd.f32 %v2554, %v2557
      %vm2559 = vweird.f32 %v2532
      %vm2560 = vweird.f32 %v2554
      %vm2561 = vmor %vm2559, %vm2560
      %v2562 = vsel %vm2561, %v2554, %v2558
      %v2563 = vand.u32 2147483647, %v2532
      %vm2564 = vcmp.eq.f32.partialorder %v2563, 8.507059e+37
      %v2565 = vand.u32 %v2532, 2147483648
      %v2566 = vor.u32 1.1754944e-38, %v2565
      %v2567 = vsel %vm2564, %v2566, %v2562
      %v2568 = vmul.f32 %v2536, %v2567
      %v2569 = vrcp.pop %v2533
      %v2570 = vmul.f32 %v2533, %v2569
      %v2571 = vsub.f32 1.0, %v2570
      %v2572 = vmul.f32 %v2569, %v2571
      %v2573 = vadd.f32 %v2569, %v2572
      %vm2574 = vweird.f32 %v2533
      %vm2575 = vweird.f32 %v2569
      %vm2576 = vmor %vm2574, %vm2575
      %v2577 = vsel %vm2576, %v2569, %v2573
      %v2578 = vand.u32 2147483647, %v2533
      %vm2579 = vcmp.eq.f32.partialorder %v2578, 8.507059e+37
      %v2580 = vand.u32 %v2533, 2147483648
      %v2581 = vor.u32 1.1754944e-38, %v2580
      %v2582 = vsel %vm2579, %v2581, %v2577
      %v2583 = vmul.f32 %v2537, %v2582
      %v2584 = vrcp.pop %v2534
      %v2585 = vmul.f32 %v2534, %v2584
      %v2586 = vsub.f32 1.0, %v2585
      %v2587 = vmul.f32 %v2584, %v2586
      %v2588 = vadd.f32 %v2584, %v2587
      %vm2589 = vweird.f32 %v2534
      %vm2590 = vweird.f32 %v2584
      %vm2591 = vmor %vm2589, %vm2590
      %v2592 = vsel %vm2591, %v2584, %v2588
      %v2593 = vand.u32 2147483647, %v2534
      %vm2594 = vcmp.eq.f32.partialorder %v2593, 8.507059e+37
      %v2595 = vand.u32 %v2534, 2147483648
      %v2596 = vor.u32 1.1754944e-38, %v2595
      %v2597 = vsel %vm2594, %v2596, %v2592
      %v2598 = vmul.f32 %v2538, %v2597
      %v2599 = vsub.f32 1.0, %v2553
      %v2600 = vsub.f32 1.0, %v2568
      %v2601 = vsub.f32 1.0, %v2583
      %v2602 = vsub.f32 1.0, %v2598
      %v2603 = vsel %vm2426, 0.0, %v2599
      %v2604 = vsel %vm2427, 0.0, %v2600
      %v2605 = vsel %vm2428, 0.0, %v2601
      %v2606 = vsel %vm2429, 0.0, %v2602
      %2608 = vset.pattern.permute.xlu0 0
      %2609 = vperm.xlu0 %2608, %v1405
      %v2610 = vpop.permute.xlu0 %2609
      %v2612 = vsub.f32 %v2610, %v2434
      %v2613 = vsub.f32 %v2610, %v2435
      %v2614 = vsub.f32 %v2610, %v2436
      %v2615 = vsub.f32 %v2610, %v2437
      %v2616 = vadd.f32 %v2610, %v2243
      %v2617 = vadd.f32 %v2610, %v2295
      %v2618 = vadd.f32 %v2610, %v2347
      %v2619 = vadd.f32 %v2610, %v2399
      %v2620 = vrcp.pop %v2616
      %v2621 = vmul.f32 %v2616, %v2620
      %v2622 = vsub.f32 1.0, %v2621
      %v2623 = vmul.f32 %v2620, %v2622
      %v2624 = vadd.f32 %v2620, %v2623
      %vm2625 = vweird.f32 %v2616
      %vm2626 = vweird.f32 %v2620
      %vm2627 = vmor %vm2625, %vm2626
      %v2628 = vsel %vm2627, %v2620, %v2624
      %v2629 = vand.u32 2147483647, %v2616
      %vm2630 = vcmp.eq.f32.partialorder %v2629, 8.507059e+37
      %v2631 = vand.u32 %v2616, 2147483648
      %v2632 = vor.u32 1.1754944e-38, %v2631
      %v2633 = vsel %vm2630, %v2632, %v2628
      %v2634 = vmul.f32 %v2612, %v2633
      %v2635 = vrcp.pop %v2617
      %v2636 = vmul.f32 %v2617, %v2635
      %v2637 = vsub.f32 1.0, %v2636
      %v2638 = vmul.f32 %v2635, %v2637
      %v2639 = vadd.f32 %v2635, %v2638
      %vm2640 = vweird.f32 %v2617
      %vm2641 = vweird.f32 %v2635
      %vm2642 = vmor %vm2640, %vm2641
      %v2643 = vsel %vm2642, %v2635, %v2639
      %v2644 = vand.u32 2147483647, %v2617
      %vm2645 = vcmp.eq.f32.partialorder %v2644, 8.507059e+37
      %v2646 = vand.u32 %v2617, 2147483648
      %v2647 = vor.u32 1.1754944e-38, %v2646
      %v2648 = vsel %vm2645, %v2647, %v2643
      %v2649 = vmul.f32 %v2613, %v2648
      %v2650 = vrcp.pop %v2618
      %v2651 = vmul.f32 %v2618, %v2650
      %v2652 = vsub.f32 1.0, %v2651
      %v2653 = vmul.f32 %v2650, %v2652
      %v2654 = vadd.f32 %v2650, %v2653
      %vm2655 = vweird.f32 %v2618
      %vm2656 = vweird.f32 %v2650
      %vm2657 = vmor %vm2655, %vm2656
      %v2658 = vsel %vm2657, %v2650, %v2654
      %v2659 = vand.u32 2147483647, %v2618
      %vm2660 = vcmp.eq.f32.partialorder %v2659, 8.507059e+37
      %v2661 = vand.u32 %v2618, 2147483648
      %v2662 = vor.u32 1.1754944e-38, %v2661
      %v2663 = vsel %vm2660, %v2662, %v2658
      %v2664 = vmul.f32 %v2614, %v2663
      %v2665 = vrcp.pop %v2619
      %v2666 = vmul.f32 %v2619, %v2665
      %v2667 = vsub.f32 1.0, %v2666
      %v2668 = vmul.f32 %v2665, %v2667
      %v2669 = vadd.f32 %v2665, %v2668
      %vm2670 = vweird.f32 %v2619
      %vm2671 = vweird.f32 %v2665
      %vm2672 = vmor %vm2670, %vm2671
      %v2673 = vsel %vm2672, %v2665, %v2669
      %v2674 = vand.u32 2147483647, %v2619
      %vm2675 = vcmp.eq.f32.partialorder %v2674, 8.507059e+37
      %v2676 = vand.u32 %v2619, 2147483648
      %v2677 = vor.u32 1.1754944e-38, %v2676
      %v2678 = vsel %vm2675, %v2677, %v2673
      %v2679 = vmul.f32 %v2615, %v2678
      %v2680 = vsub.f32 1.0, %v2634
      %v2681 = vsub.f32 1.0, %v2649
      %v2682 = vsub.f32 1.0, %v2664
      %v2683 = vsub.f32 1.0, %v2679
      %v2684 = vadd.f32 %v2610, %v2430
      %v2685 = vadd.f32 %v2610, %v2431
      %v2686 = vadd.f32 %v2610, %v2432
      %v2687 = vadd.f32 %v2610, %v2433
      %v2688 = vsel %vm2426, 1.0, %v2684
      %v2689 = vsel %vm2427, 1.0, %v2685
      %v2690 = vsel %vm2428, 1.0, %v2686
      %v2691 = vsel %vm2429, 1.0, %v2687
      %v2692 = vsub.f32 %v2610, %v2438
      %v2693 = vsub.f32 %v2610, %v2439
      %v2694 = vsub.f32 %v2610, %v2440
      %v2695 = vsub.f32 %v2610, %v2441
      %v2696 = vrcp.pop %v2688
      %v2697 = vmul.f32 %v2688, %v2696
      %v2698 = vsub.f32 1.0, %v2697
      %v2699 = vmul.f32 %v2696, %v2698
      %v2700 = vadd.f32 %v2696, %v2699
      %vm2701 = vweird.f32 %v2688
      %vm2702 = vweird.f32 %v2696
      %vm2703 = vmor %vm2701, %vm2702
      %v2704 = vsel %vm2703, %v2696, %v2700
      %v2705 = vand.u32 2147483647, %v2688
      %vm2706 = vcmp.eq.f32.partialorder %v2705, 8.507059e+37
      %v2707 = vand.u32 %v2688, 2147483648
      %v2708 = vor.u32 1.1754944e-38, %v2707
      %v2709 = vsel %vm2706, %v2708, %v2704
      %v2710 = vmul.f32 %v2692, %v2709
      %v2711 = vrcp.pop %v2689
      %v2712 = vmul.f32 %v2689, %v2711
      %v2713 = vsub.f32 1.0, %v2712
      %v2714 = vmul.f32 %v2711, %v2713
      %v2715 = vadd.f32 %v2711, %v2714
      %vm2716 = vweird.f32 %v2689
      %vm2717 = vweird.f32 %v2711
      %vm2718 = vmor %vm2716, %vm2717
      %v2719 = vsel %vm2718, %v2711, %v2715
      %v2720 = vand.u32 2147483647, %v2689
      %vm2721 = vcmp.eq.f32.partialorder %v2720, 8.507059e+37
      %v2722 = vand.u32 %v2689, 2147483648
      %v2723 = vor.u32 1.1754944e-38, %v2722
      %v2724 = vsel %vm2721, %v2723, %v2719
      %v2725 = vmul.f32 %v2693, %v2724
      %v2726 = vrcp.pop %v2690
      %v2727 = vmul.f32 %v2690, %v2726
      %v2728 = vsub.f32 1.0, %v2727
      %v2729 = vmul.f32 %v2726, %v2728
      %v2730 = vadd.f32 %v2726, %v2729
      %vm2731 = vweird.f32 %v2690
      %vm2732 = vweird.f32 %v2726
      %vm2733 = vmor %vm2731, %vm2732
      %v2734 = vsel %vm2733, %v2726, %v2730
      %v2735 = vand.u32 2147483647, %v2690
      %vm2736 = vcmp.eq.f32.partialorder %v2735, 8.507059e+37
      %v2737 = vand.u32 %v2690, 2147483648
      %v2738 = vor.u32 1.1754944e-38, %v2737
      %v2739 = vsel %vm2736, %v2738, %v2734
      %v2740 = vmul.f32 %v2694, %v2739
      %v2741 = vrcp.pop %v2691
      %v2742 = vmul.f32 %v2691, %v2741
      %v2743 = vsub.f32 1.0, %v2742
      %v2744 = vmul.f32 %v2741, %v2743
      %v2745 = vadd.f32 %v2741, %v2744
      %vm2746 = vweird.f32 %v2691
      %vm2747 = vweird.f32 %v2741
      %vm2748 = vmor %vm2746, %vm2747
      %v2749 = vsel %vm2748, %v2741, %v2745
      %v2750 = vand.u32 2147483647, %v2691
      %vm2751 = vcmp.eq.f32.partialorder %v2750, 8.507059e+37
      %v2752 = vand.u32 %v2691, 2147483648
      %v2753 = vor.u32 1.1754944e-38, %v2752
      %v2754 = vsel %vm2751, %v2753, %v2749
      %v2755 = vmul.f32 %v2695, %v2754
      %v2756 = vsub.f32 1.0, %v2710
      %v2757 = vsub.f32 1.0, %v2725
      %v2758 = vsub.f32 1.0, %v2740
      %v2759 = vsub.f32 1.0, %v2755
      %v2760 = vsel %vm2426, 0.0, %v2756
      %v2761 = vsel %vm2427, 0.0, %v2757
      %v2762 = vsel %vm2428, 0.0, %v2758
      %v2763 = vsel %vm2429, 0.0, %v2759
      %v2764 = vld [vmem:[%s287] sm:$0xff]
      %v2765 = vsub.f32 %v2519, %v2603
      %v2766 = vsub.f32 %v2520, %v2604
      %v2767 = vsub.f32 %v2521, %v2605
      %v2768 = vsub.f32 %v2522, %v2606
      %v2769 = vmul.f32 %v1400, %v2765
      %v2770 = vmul.f32 %v1401, %v2766
      %v2771 = vmul.f32 %v1402, %v2767
      %v2772 = vmul.f32 %v1403, %v2768
      %v2773 = vadd.f32 %v2769, %v2770
      %v2774 = vadd.f32 %v2773, %v2771
      %v2775 = vadd.f32 %v2774, %v2772
      %2776 = vadd.xlane.f32.xlu0 %v2775
      %v2777 = vpop.xlane.xlu0 %2776
      %v2778 = vadd.f32 %v2764, %v2777
      %vm2779 = vcmask 7168
      %2780 = vst.msk [vmem:[%s287] sm:$0xff] %vm2779, %v2778
      %v2781 = vld [vmem:[%s283] sm:$0xff]
      %v2782 = vsub.f32 %v2680, %v2760
      %v2783 = vsub.f32 %v2681, %v2761
      %v2784 = vsub.f32 %v2682, %v2762
      %v2785 = vsub.f32 %v2683, %v2763
      %v2786 = vmul.f32 %v1400, %v2782
      %v2787 = vmul.f32 %v1401, %v2783
      %v2788 = vmul.f32 %v1402, %v2784
      %v2789 = vmul.f32 %v1403, %v2785
      %v2790 = vadd.f32 %v2786, %v2787
      %v2791 = vadd.f32 %v2790, %v2788
      %v2792 = vadd.f32 %v2791, %v2789
      %2793 = vadd.xlane.f32.xlu0 %v2792
      %v2794 = vpop.xlane.xlu0 %2793
      %v2795 = vadd.f32 %v2781, %v2794
      %2796 = vst.msk [vmem:[%s283] sm:$0xff] %vm2779, %v2795
      %2798 = vrot.lane.b32.xlu0 %v2399, 1
      %v2799 = vpop.permute.xlu0 %2798
      %2801 = vst.msk [vmem:[#allocation2] sm:$0xff] %vm2779, %v2799
      %p2802 = scmp.lt.s32.totalorder %s20, 1
      %s2803 = scalar_select %p2802, %s20, 1
      %s2804 = smul.addr %s2803, 8
      %s2805 = scalar_lea.vmem %s3, %s2804
      %p2806 = scmp.lt.s32.totalorder %s20, 1
      %s2807 = scalar_select %p2806, %s20, 1
      %s2808 = smul.addr %s2807, 8
      %s2809 = scalar_lea.vmem %s4, %s2808
      // Predicated region
      $region37: #{lovasz_bce_loss2.3} parent=31 // pred_check
        %p2810 = pneg %p128
      $region38: #{lovasz_bce_loss2.3} parent=31 // pred_check_branch
        %2812 = sbr.rel (%p2810) target = $region40
      $region39: #{lovasz_bce_loss2.3} parent=31 // pred_region
        _
      $region40: #{lovasz_bce_loss2.3} parent=31 // pred_fallthru
        _
      // Predicated region
      $region41: #{lovasz_bce_loss2.3} parent=31 // pred_check
        %p2813 = pneg %p154
      $region42: #{lovasz_bce_loss2.3} parent=31 // pred_check_branch
        %2815 = sbr.rel (%p2813) target = $region44
      $region43: #{lovasz_bce_loss2.3} parent=31 // pred_region
        _
      $region44: #{lovasz_bce_loss2.3} parent=31 // pred_fallthru
        _
    $region32: #{lovasz_bce_loss2.3} parent=5 // pred_fallthru
      _
    %p2816 = scmp.le.s32.totalorder 2, %s11
    // Predicated region
    $region45: #{lovasz_bce_loss2.3} parent=5 // pred_check
      %p2817 = pneg %p2816
    $region46: #{lovasz_bce_loss2.3} parent=5 // pred_check_branch
      %2819 = sbr.rel (%p2817) target = $region48
    $region47: #{lovasz_bce_loss2.3} parent=5 // pred_region
      %s2820 = ssub.s32 %s11, 2
      // Predicated region
      $region49: #{lovasz_bce_loss2.3} parent=47 // pred_check
        %p2821 = pneg %p134
      $region50: #{lovasz_bce_loss2.3} parent=47 // pred_check_branch
        %2823 = sbr.rel (%p2821) target = $region52
      $region51: #{lovasz_bce_loss2.3} parent=47 // pred_region
        %p2824 = scmp.lt.s32.totalorder %s22, 1
        %s2825 = scalar_select %p2824, %s22, 1
        %s2826 = smul.addr %s2825, 8
        %s2827 = scalar_lea.vmem %s3, %s2826
      $region52: #{lovasz_bce_loss2.3} parent=47 // pred_fallthru
        _
      // Predicated region
      $region53: #{lovasz_bce_loss2.3} parent=47 // pred_check
        %p2828 = pneg %p160
      $region54: #{lovasz_bce_loss2.3} parent=47 // pred_check_branch
        %2830 = sbr.rel (%p2828) target = $region56
      $region55: #{lovasz_bce_loss2.3} parent=47 // pred_region
        %p2831 = scmp.lt.s32.totalorder %s22, 1
        %s2832 = scalar_select %p2831, %s22, 1
        %s2833 = smul.addr %s2832, 8
        %s2834 = scalar_lea.vmem %s4, %s2833
      $region56: #{lovasz_bce_loss2.3} parent=47 // pred_fallthru
        _
    $region48: #{lovasz_bce_loss2.3} parent=5 // pred_fallthru
      _
  $region6: #{lovasz_bce_loss2.3} parent=0 // loop_footer
    %s15 = sadd.s32 1, %s11
  $region7: #{lovasz_bce_loss2.3} parent=0 // loop_footer_branch
    %10 = sbr.rel target = $region3
  $region8: #{lovasz_bce_loss2.3} parent=0 // loop_exit
    _

</llo_original>
